<compile_context>
chip_gen: v7x
topology: tpu7x:2x2x1
jax: 0.10.0
libtpu: 0.0.40
codegen_flags: <defaults>
</compile_context>

<pallas_src>
import numpy as np
import jax
import jax.numpy as jnp
from jax.experimental import pallas as pl
from jax.experimental.pallas import tpu as pltpu

# ---------------------------------------------------------------------------
# Module hyper-parameters (Efficient_Det defaults, small anchor set).
# ---------------------------------------------------------------------------
N_PNTS_FEATURES = 64
N_CLASSES = 3
N_ANCHORS = 2
N_SCALES = 3
XYZ_RANGE = np.array([0.0, -40.32, -2.0, 80.64, 40.32, 3.0])

RESNET_STAGE_CHANNELS = (64, 256, 512, 1024, 2048)
RESNET_STAGE_STRIDES = (2, 4, 8, 16, 32)

_TM = 512  # row tile; >=512 hits ~85% of HBM roofline, per-step overhead ~0.35us


# ---------------------------------------------------------------------------
# Pallas kernels
# ---------------------------------------------------------------------------
def _make_conv1x1_kernel(n_in, relu):
    """(sum of n_in inputs) @ W + b, optional ReLU.  Adds fused in-kernel."""

    def kernel(*refs):
        x_refs = refs[:n_in]
        w_ref, b_ref, o_ref = refs[n_in], refs[n_in + 1], refs[n_in + 2]
        x = x_refs[0][...]
        for r in x_refs[1:]:
            x = x + r[...]
        acc = jnp.dot(x, w_ref[...], preferred_element_type=jnp.float32)
        acc = acc + b_ref[...]
        if relu:
            acc = jnp.maximum(acc, 0.0)
        o_ref[...] = acc.astype(o_ref.dtype)

    return kernel


def _head_kernel(x_ref, w1_ref, b1_ref, w2_ref, b2_ref, o_ref):
    """Fused two-layer 1x1 head: relu(x@w1 + b1) @ w2 + b2."""
    h = jnp.dot(x_ref[...], w1_ref[...], preferred_element_type=jnp.float32)
    h = jnp.maximum(h + b1_ref[...], 0.0)
    o = jnp.dot(h, w2_ref[...], preferred_element_type=jnp.float32)
    o_ref[...] = (o + b2_ref[...]).astype(o_ref.dtype)


def _row_tiling(m):
    """Pick (tm, m_padded).  tm never scales with M beyond the cap."""
    if m <= _TM:
        return m, m  # single full-extent block (exempt from the 8-div rule)
    return _TM, pl.cdiv(m, _TM) * _TM


# ---------------------------------------------------------------------------
# Pallas wrappers (NHWC in / NHWC out, reshape only — no transposes)
# ---------------------------------------------------------------------------
def conv1x1_nhwc(xs, w, b, *, relu=False):
    """Fused (sum of inputs) -> 1x1 conv + bias (+ReLU).

    xs: array or list of arrays [N, H, W, Cin] (summed before the conv).
    w:  [Cin, Cout] (torch weight[o, i, 0, 0] transposed);  b: [Cout].
    """
    if not isinstance(xs, (list, tuple)):
        xs = (xs,)
    n, h, wd, cin = xs[0].shape
    cout = w.shape[1]
    m = n * h * wd
    flats = [x.reshape(m, cin) for x in xs]

    tm, mp = _row_tiling(m)
    if mp != m:
        flats = [jnp.pad(x, ((0, mp - m), (0, 0))) for x in flats]
    grid = (mp // tm,)

    in_specs = [pl.BlockSpec((tm, cin), lambda i: (i, 0)) for _ in flats]
    in_specs += [
        pl.BlockSpec((cin, cout), lambda i: (0, 0)),
        pl.BlockSpec((1, cout), lambda i: (0, 0)),
    ]
    out = pl.pallas_call(
        _make_conv1x1_kernel(len(flats), relu),
        out_shape=jax.ShapeDtypeStruct((mp, cout), xs[0].dtype),
        grid_spec=pltpu.PrefetchScalarGridSpec(
            num_scalar_prefetch=0,
            grid=grid,
            in_specs=in_specs,
            out_specs=pl.BlockSpec((tm, cout), lambda i: (i, 0)),
        ),
        compiler_params=pltpu.CompilerParams(
            dimension_semantics=("parallel",)
        ),
    )(*flats, w, b.reshape(1, cout))
    if mp != m:
        out = out[:m]
    return out.reshape(n, h, wd, cout)


def head2_nhwc(x, w1, b1, w2, b2):
    """Fused two-layer 1x1 head (conv+foldedBN+ReLU, conv+bias), NHWC in/out."""
    n, h, wd, cin = x.shape
    ch = w1.shape[1]
    cout = w2.shape[1]
    m = n * h * wd
    xf = x.reshape(m, cin)

    tm, mp = _row_tiling(m)
    if mp != m:
        xf = jnp.pad(xf, ((0, mp - m), (0, 0)))
    grid = (mp // tm,)

    out = pl.pallas_call(
        _head_kernel,
        out_shape=jax.ShapeDtypeStruct((mp, cout), x.dtype),
        grid_spec=pltpu.PrefetchScalarGridSpec(
            num_scalar_prefetch=0,
            grid=grid,
            in_specs=[
                pl.BlockSpec((tm, cin), lambda i: (i, 0)),
                pl.BlockSpec((cin, ch), lambda i: (0, 0)),
                pl.BlockSpec((1, ch), lambda i: (0, 0)),
                pl.BlockSpec((ch, cout), lambda i: (0, 0)),
                pl.BlockSpec((1, cout), lambda i: (0, 0)),
            ],
            out_specs=pl.BlockSpec((tm, cout), lambda i: (i, 0)),
        ),
        compiler_params=pltpu.CompilerParams(
            dimension_semantics=("parallel",)
        ),
    )(xf, w1, b1.reshape(1, ch), w2, b2.reshape(1, cout))
    if mp != m:
        out = out[:m]
    return out.reshape(n, h, wd, cout)


# ---------------------------------------------------------------------------
# Bilinear resize (align_corners=True) as two small separable matmuls (glue).
# ---------------------------------------------------------------------------
def _resize_matrix(n_out, n_in):
    if n_in == 1:
        return jnp.ones((n_out, 1), jnp.float32)
    if n_out == 1:
        src = np.zeros((1,))
    else:
        src = np.arange(n_out) * (n_in - 1) / (n_out - 1)
    lo = np.clip(np.floor(src).astype(np.int64), 0, n_in - 2)
    frac = src - lo
    mat = np.zeros((n_out, n_in), np.float32)
    mat[np.arange(n_out), lo] = 1.0 - frac
    mat[np.arange(n_out), lo + 1] = frac
    return jnp.asarray(mat)


def bilinear_resize_nhwc(x, ho, wo):
    n, h, w, c = x.shape
    if (h, w) == (ho, wo):
        return x
    rh = _resize_matrix(ho, h)
    rw = _resize_matrix(wo, w)
    x = jnp.einsum('oh,nhwc->nowc', rh, x)
    x = jnp.einsum('pw,nowc->nopc', rw, x)
    return x


# ---------------------------------------------------------------------------
# Parameter init (deterministic; BN folded into conv weights at init).
# ---------------------------------------------------------------------------
def _fold_conv_bn(w, gamma, beta, mean, var, eps=1e-5):
    s = gamma / jnp.sqrt(var + eps)
    return w * s[None, :], beta - mean * s


def init_params(key):
    F = N_PNTS_FEATURES
    keys = iter(jax.random.split(key, 128))

    def nrm(shape, scale):
        return jax.random.normal(next(keys), shape, jnp.float32) * scale

    # stand-in trunk lift (F -> C_stage) and module projection conv_i (C_stage -> F)
    backbone, proj = [], []
    for c in RESNET_STAGE_CHANNELS:
        backbone.append((nrm((F, c), 1.0 / np.sqrt(F)), nrm((c,), 0.01)))
        proj.append((nrm((c, F), 1.0 / np.sqrt(c)), nrm((F,), 0.01)))

    # Conv2d(1x1, bias=False) + BatchNorm2d folded -> (w, b)
    def conv_bn(cin, cout):
        w = nrm((cin, cout), 1.0 / np.sqrt(cin))
        gamma = 1.0 + nrm((cout,), 0.1)
        beta = nrm((cout,), 0.05)
        mean = nrm((cout,), 0.05)
        var = 1.0 + jnp.abs(nrm((cout,), 0.1))
        return _fold_conv_bn(w, gamma, beta, mean, var)

    bifpn = {name: conv_bn(F, F)
             for name in ('conv7up', 'conv6up', 'conv5up', 'conv4up',
                          'conv3up', 'conv4dw', 'conv5dw', 'conv6dw', 'conv7dw')}

    # heads: per scale, bbox (F -> F/2 -> 7A) and class (F -> F/2 -> nc*A),
    # fused into one block-diagonal two-layer matmul.
    heads = []
    hid = F // 2
    for _ in range(N_SCALES):
        w1_bb, b1_bb = conv_bn(F, hid)
        w1_cl, b1_cl = conv_bn(F, hid)
        w2_bb = nrm((hid, 7 * N_ANCHORS), 1.0 / np.sqrt(hid))
        b2_bb = nrm((7 * N_ANCHORS,), 0.01)
        w2_cl = nrm((hid, N_CLASSES * N_ANCHORS), 1.0 / np.sqrt(hid))
        b2_cl = nrm((N_CLASSES * N_ANCHORS,), 0.01)
        w1 = jnp.concatenate([w1_bb, w1_cl], axis=1)            # (F, F)
        b1 = jnp.concatenate([b1_bb, b1_cl], axis=0)            # (F,)
        w2 = jnp.concatenate(
            [jnp.concatenate([w2_bb, jnp.zeros((hid, N_CLASSES * N_ANCHORS))], 1),
             jnp.concatenate([jnp.zeros((hid, 7 * N_ANCHORS)), w2_cl], 1)],
            axis=0)                                             # (F, 7A + ncA)
        b2 = jnp.concatenate([b2_bb, b2_cl], axis=0)
        heads.append({'w1': w1, 'b1': b1, 'w2': w2, 'b2': b2})

    # anchors (mirrors Efficient_Det.setup_anchors: per-column ascending sort)
    anchor_boxes = np.array(
        [[1.6, 3.9, 1.56],
         [0.6, 0.8, 1.73],
         [0.6, 1.76, 1.73],
         [2.0, 6.0, 2.50],
         [0.8, 1.2, 1.90],
         [1.9, 4.5, 1.70]], np.float32)
    a = anchor_boxes.copy()
    a.sort(0)
    a = a[::-1]
    anchors = jnp.asarray(a[::-1].copy(), jnp.float32).reshape(
        N_SCALES, N_ANCHORS, 3)

    return {'backbone': backbone, 'proj': proj, 'bifpn': bifpn,
            'head': heads, 'anchors': anchors}


# ---------------------------------------------------------------------------
# Forward pieces
# ---------------------------------------------------------------------------
def _avg_pool_nhwc(x, s):
    n, h, w, c = x.shape
    return x.reshape(n, h // s, s, w // s, s, c).mean(axis=(2, 4))


def backbone_forward(x_nhwc, backbone_params, proj_params):
    # TODO(synk): the timm pretrained resnet50 trunk (architecture + checkpoint)
    # is not reproducible in-script; replaced by avg-pool downsampling + a 1x1
    # channel lift with identical per-stage shapes.  The lift (F -> C_stage)
    # and the module's conv_i (C_stage -> F) are both linear 1x1 convs, so they
    # are fused into a single matmul per stage (exact) — the wide C_stage
    # intermediate never materializes in HBM.
    feats = []
    for stride, (w_s, b_s), (w_p, b_p) in zip(
            RESNET_STAGE_STRIDES, backbone_params, proj_params):
        pooled = _avg_pool_nhwc(x_nhwc, stride)
        w_f = jnp.dot(w_s, w_p)           # (F, F) — tiny, once per stage
        b_f = jnp.dot(b_s, w_p) + b_p     # (F,)
        feats.append(conv1x1_nhwc(pooled, w_f, b_f, relu=False))
    return tuple(feats)


def bifpn_forward(feats, cv):
    p3, p4, p5, p6, p7 = feats

    def up(name, x_in, prev):
        res = bilinear_resize_nhwc(prev, x_in.shape[1], x_in.shape[2])
        return conv1x1_nhwc([x_in, res], *cv[name], relu=True)

    def dw(name, x_in, x_up, prev_out):
        res = bilinear_resize_nhwc(prev_out, x_up.shape[1], x_up.shape[2])
        return conv1x1_nhwc([x_in, x_up, res], *cv[name], relu=True)

    p7u = conv1x1_nhwc(p7, *cv['conv7up'], relu=True)
    p6u = up('conv6up', p6, p7u)
    p5u = up('conv5up', p5, p6u)
    p4u = up('conv4up', p4, p5u)
    p3o = up('conv3up', p3, p4u)
    p4o = dw('conv4dw', p4, p4u, p3o)
    p5o = dw('conv5dw', p5, p5u, p4o)
    p6o = dw('conv6dw', p6, p6u, p5o)
    p7o = dw('conv7dw', p7, p7u, p6o)
    return p3o, p4o, p5o, p6o, p7o


def decode_scale(bbox_nhwc, clss_nhwc, anchor_i):
    # Mirrors the anchor-decoding loop in Efficient_Det.forward.  The module's
    # X[:w,:w] / Y[:h,:h] indexing implicitly requires square feature maps.
    n, h, w, _ = bbox_nhwc.shape
    assert h == w, "Efficient_Det anchor decode requires square feature maps"
    bbox = bbox_nhwc.reshape(n, h * w, N_ANCHORS, 7)
    clss = clss_nhwc.reshape(n, h * w * N_ANCHORS, N_CLASSES)
    anchor = anchor_i.reshape(1, 1, N_ANCHORS, 3)
    da = jnp.sqrt(anchor[..., 0:1] ** 2 + anchor[..., 1:2] ** 2)
    ha = anchor[..., 2:3]

    xs = jnp.linspace(0.0, 1.0, h + 1)[:w]      # X[:w,:w] row contents
    ys = jnp.linspace(-1.0, 1.0, w + 1)[:h]     # Y[:h,:h] column contents
    x_off = jnp.tile(xs, h) * float(XYZ_RANGE[3] - XYZ_RANGE[0])
    y_off = jnp.repeat(ys, w) * float((XYZ_RANGE[4] - XYZ_RANGE[1]) / 2.0)
    z_off = float((XYZ_RANGE[5] - XYZ_RANGE[2]) / 2.0)

    a = (bbox[..., 0:1] * da + x_off.reshape(1, -1, 1, 1)).reshape(n, -1, 1)
    b = (bbox[..., 1:2] * da + y_off.reshape(1, -1, 1, 1)).reshape(n, -1, 1)
    c = (bbox[..., 2:3] * ha + z_off).reshape(n, -1, 1)
    d = (jnp.exp(bbox[..., 3:6]) * anchor).reshape(n, -1, 3)
    e = jnp.tanh(bbox[..., 6:7].reshape(n, -1, 1)) * np.pi
    return jnp.concatenate([a, b, c, d, e], axis=2), clss


@jax.jit
def forward(x_nchw, params):
    """x_nchw: [N, n_pnts_features, H, W] (NCHW, like the PyTorch module).

    Returns {'pred_logits': [N, T, n_classes], 'pred_boxes': [N, T, 7]}.
    """
    x = jnp.transpose(x_nchw, (0, 2, 3, 1))      # single NCHW->NHWC transpose
    feats = backbone_forward(x, params['backbone'], params['proj'])
    fpn = bifpn_forward(feats, params['bifpn'])
    ffs = (fpn[2], fpn[3], fpn[4])               # strides 8 / 16 / 32
    boxes, logits = [], []
    for i, ff in enumerate(ffs):
        hp = params['head'][i]
        out = head2_nhwc(ff, hp['w1'], hp['b1'], hp['w2'], hp['b2'])
        bbox = out[..., : 7 * N_ANCHORS]
        clss = out[..., 7 * N_ANCHORS:]
        bx, cl = decode_scale(bbox, clss, params['anchors'][i])
        boxes.append(bx)
        logits.append(cl)
    return {'pred_logits': jnp.concatenate(logits, axis=1),
            'pred_boxes': jnp.concatenate(boxes, axis=1)}


# ---------------------------------------------------------------------------
if __name__ == "__main__":
    key = jax.random.PRNGKey(0)
    kx, kp = jax.random.split(key)

    # Small input: batch=2, n_pnts_features=64 channels, 32x32 BEV grid
    # (smallest square spatial size divisible by the deepest stride, 32).
    x = jax.random.normal(kx, (2, N_PNTS_FEATURES, 32, 32), jnp.float32)
    params = init_params(kp)

    out = forward(x, params)
    out = jax.block_until_ready(out)

    # total anchors = sum over head scales (strides 8/16/32) of h*w*A
    t = sum((32 // s) * (32 // s) * N_ANCHORS for s in (8, 16, 32))
    assert out['pred_logits'].shape == (2, t, N_CLASSES), out['pred_logits'].shape
    assert out['pred_boxes'].shape == (2, t, 7), out['pred_boxes'].shape
    assert out['pred_logits'].dtype == jnp.float32
    assert out['pred_boxes'].dtype == jnp.float32
    print("KERNEL_OK")
</pallas_src>

<mosaic_0001>
module attributes {stable_mosaic.version = 11 : i64} {
  func.func @kernel(%arg0: i32, %arg1: memref<2x64xf32, #tpu.memory_space<vmem>>, %arg2: memref<64x64xf32, #tpu.memory_space<vmem>>, %arg3: memref<1x64xf32, #tpu.memory_space<vmem>>, %arg4: memref<2x64xf32, #tpu.memory_space<vmem>>) attributes {dimension_semantics = [#tpu.dimension_semantics<parallel>], iteration_bounds = array<i64: 1>, scalar_prefetch = 0 : i64, scratch_operands = 0 : i64, tpu.core_type = #tpu.core_type<tc>, window_params = [{transform_indices = @transform_0, window_bounds = array<i64: 2, 64>}, {pipeline_mode = #tpu.pipeline_mode<synchronous>, transform_indices = @transform_1, window_bounds = array<i64: 64, 64>}, {pipeline_mode = #tpu.pipeline_mode<synchronous>, transform_indices = @transform_2, window_bounds = array<i64: 1, 64>}, {transform_indices = @transform_3, window_bounds = array<i64: 2, 64>}]} {
    %c0 = arith.constant 0 : index
    %c0_0 = arith.constant 0 : index
    %0 = vector.load %arg1[%c0, %c0_0] : memref<2x64xf32, #tpu.memory_space<vmem>>, vector<2x64xf32>
    %c0_1 = arith.constant 0 : index
    %c0_2 = arith.constant 0 : index
    %1 = vector.load %arg2[%c0_1, %c0_2] : memref<64x64xf32, #tpu.memory_space<vmem>>, vector<64x64xf32>
    %cst = arith.constant dense<0.000000e+00> : vector<2x64xf32>
    %2 = tpu.matmul %0, %1, %cst {dimension_numbers = #tpu.dot_dimension_numbers<[1], [0], [0], [1], [0, 0, 1, 1], [], []>} : vector<2x64xf32>, vector<64x64xf32>, vector<2x64xf32> -> vector<2x64xf32>
    %c0_3 = arith.constant 0 : index
    %c0_4 = arith.constant 0 : index
    %3 = vector.load %arg3[%c0_3, %c0_4] : memref<1x64xf32, #tpu.memory_space<vmem>>, vector<1x64xf32>
    %4 = vector.broadcast %3 : vector<1x64xf32> to vector<2x64xf32>
    %5 = arith.addf %2, %4 : vector<2x64xf32>
    %cst_5 = arith.constant 0.000000e+00 : f32
    %6 = vector.broadcast %cst_5 : f32 to vector<2x64xf32>
    %7 = arith.maximumf %5, %6 : vector<2x64xf32>
    %c0_6 = arith.constant 0 : index
    %c0_7 = arith.constant 0 : index
    %8 = vector.load %arg4[%c0_6, %c0_7] : memref<2x64xf32, #tpu.memory_space<vmem>>, vector<2x64xf32>
    tpu.vector_store %arg4[%c0_6, %c0_7], %7 {strides = array<i32>} : memref<2x64xf32, #tpu.memory_space<vmem>>, vector<2x64xf32>,
    return
  }
  func.func @transform_0(%arg0: i32) -> (i32, i32) {
    %c0_i32 = arith.constant 0 : i32
    %c0_i32_0 = arith.constant 0 : i32
    return %arg0, %c0_i32 : i32, i32
  }
  func.func @transform_1(%arg0: i32) -> (i32, i32) {
    %c0_i32 = arith.constant 0 : i32
    %c0_i32_0 = arith.constant 0 : i32
    %c0_i32_1 = arith.constant 0 : i32
    return %c0_i32, %c0_i32_0 : i32, i32
  }
  func.func @transform_2(%arg0: i32) -> (i32, i32) {
    %c0_i32 = arith.constant 0 : i32
    %c0_i32_0 = arith.constant 0 : i32
    %c0_i32_1 = arith.constant 0 : i32
    return %c0_i32, %c0_i32_0 : i32, i32
  }
  func.func @transform_3(%arg0: i32) -> (i32, i32) {
    %c0_i32 = arith.constant 0 : i32
    %c0_i32_0 = arith.constant 0 : i32
    return %arg0, %c0_i32 : i32, i32
  }
}

module attributes {stable_mosaic.version = 11 : i64} {
  func.func @kernel(%arg0: i32, %arg1: memref<2x64xf32, #tpu.memory_space<vmem>>, %arg2: memref<64x64xf32, #tpu.memory_space<vmem>>, %arg3: memref<1x64xf32, #tpu.memory_space<vmem>>, %arg4: memref<2x64xf32, #tpu.memory_space<vmem>>) attributes {dimension_semantics = [#tpu.dimension_semantics<parallel>], iteration_bounds = array<i64: 1>, scalar_prefetch = 0 : i64, scratch_operands = 0 : i64, tpu.core_type = #tpu.core_type<tc>, window_params = [{transform_indices = @transform_0, window_bounds = array<i64: 2, 64>}, {pipeline_mode = #tpu.pipeline_mode<synchronous>, transform_indices = @transform_1, window_bounds = array<i64: 64, 64>}, {pipeline_mode = #tpu.pipeline_mode<synchronous>, transform_indices = @transform_2, window_bounds = array<i64: 1, 64>}, {transform_indices = @transform_3, window_bounds = array<i64: 2, 64>}]} {
    %c0 = arith.constant 0 : index
    %c0_0 = arith.constant 0 : index
    %0 = vector.load %arg1[%c0, %c0_0] : memref<2x64xf32, #tpu.memory_space<vmem>>, vector<2x64xf32>
    %c0_1 = arith.constant 0 : index
    %c0_2 = arith.constant 0 : index
    %1 = vector.load %arg2[%c0_1, %c0_2] : memref<64x64xf32, #tpu.memory_space<vmem>>, vector<64x64xf32>
    %cst = arith.constant dense<0.000000e+00> : vector<2x64xf32>
    %2 = tpu.matmul %0, %1, %cst {dimension_numbers = #tpu.dot_dimension_numbers<[1], [0], [0], [1], [0, 0, 1, 1], [], []>} : vector<2x64xf32>, vector<64x64xf32>, vector<2x64xf32> -> vector<2x64xf32>
    %c0_3 = arith.constant 0 : index
    %c0_4 = arith.constant 0 : index
    %3 = vector.load %arg3[%c0_3, %c0_4] : memref<1x64xf32, #tpu.memory_space<vmem>>, vector<1x64xf32>
    %4 = vector.broadcast %3 : vector<1x64xf32> to vector<2x64xf32>
    %5 = arith.addf %2, %4 : vector<2x64xf32>
    %c0_5 = arith.constant 0 : index
    %c0_6 = arith.constant 0 : index
    %6 = vector.load %arg4[%c0_5, %c0_6] : memref<2x64xf32, #tpu.memory_space<vmem>>, vector<2x64xf32>
    tpu.vector_store %arg4[%c0_5, %c0_6], %5 {strides = array<i32>} : memref<2x64xf32, #tpu.memory_space<vmem>>, vector<2x64xf32>,
    return
  }
  func.func @transform_0(%arg0: i32) -> (i32, i32) {
    %c0_i32 = arith.constant 0 : i32
    %c0_i32_0 = arith.constant 0 : i32
    return %arg0, %c0_i32 : i32, i32
  }
  func.func @transform_1(%arg0: i32) -> (i32, i32) {
    %c0_i32 = arith.constant 0 : i32
    %c0_i32_0 = arith.constant 0 : i32
    %c0_i32_1 = arith.constant 0 : i32
    return %c0_i32, %c0_i32_0 : i32, i32
  }
  func.func @transform_2(%arg0: i32) -> (i32, i32) {
    %c0_i32 = arith.constant 0 : i32
    %c0_i32_0 = arith.constant 0 : i32
    %c0_i32_1 = arith.constant 0 : i32
    return %c0_i32, %c0_i32_0 : i32, i32
  }
  func.func @transform_3(%arg0: i32) -> (i32, i32) {
    %c0_i32 = arith.constant 0 : i32
    %c0_i32_0 = arith.constant 0 : i32
    return %arg0, %c0_i32 : i32, i32
  }
}

module attributes {stable_mosaic.version = 11 : i64} {
  func.func @kernel(%arg0: i32, %arg1: memref<8x64xf32, #tpu.memory_space<vmem>>, %arg2: memref<64x64xf32, #tpu.memory_space<vmem>>, %arg3: memref<1x64xf32, #tpu.memory_space<vmem>>, %arg4: memref<8x64xf32, #tpu.memory_space<vmem>>) attributes {dimension_semantics = [#tpu.dimension_semantics<parallel>], iteration_bounds = array<i64: 1>, scalar_prefetch = 0 : i64, scratch_operands = 0 : i64, tpu.core_type = #tpu.core_type<tc>, window_params = [{transform_indices = @transform_0, window_bounds = array<i64: 8, 64>}, {pipeline_mode = #tpu.pipeline_mode<synchronous>, transform_indices = @transform_1, window_bounds = array<i64: 64, 64>}, {pipeline_mode = #tpu.pipeline_mode<synchronous>, transform_indices = @transform_2, window_bounds = array<i64: 1, 64>}, {transform_indices = @transform_3, window_bounds = array<i64: 8, 64>}]} {
    %c0 = arith.constant 0 : index
    %c0_0 = arith.constant 0 : index
    %0 = vector.load %arg1[%c0, %c0_0] : memref<8x64xf32, #tpu.memory_space<vmem>>, vector<8x64xf32>
    %c0_1 = arith.constant 0 : index
    %c0_2 = arith.constant 0 : index
    %1 = vector.load %arg2[%c0_1, %c0_2] : memref<64x64xf32, #tpu.memory_space<vmem>>, vector<64x64xf32>
    %cst = arith.constant dense<0.000000e+00> : vector<8x64xf32>
    %2 = tpu.matmul %0, %1, %cst {dimension_numbers = #tpu.dot_dimension_numbers<[1], [0], [0], [1], [0, 0, 1, 1], [], []>} : vector<8x64xf32>, vector<64x64xf32>, vector<8x64xf32> -> vector<8x64xf32>
    %c0_3 = arith.constant 0 : index
    %c0_4 = arith.constant 0 : index
    %3 = vector.load %arg3[%c0_3, %c0_4] : memref<1x64xf32, #tpu.memory_space<vmem>>, vector<1x64xf32>
    %4 = vector.broadcast %3 : vector<1x64xf32> to vector<8x64xf32>
    %5 = arith.addf %2, %4 : vector<8x64xf32>
    %c0_5 = arith.constant 0 : index
    %c0_6 = arith.constant 0 : index
    %6 = vector.load %arg4[%c0_5, %c0_6] : memref<8x64xf32, #tpu.memory_space<vmem>>, vector<8x64xf32>
    tpu.vector_store %arg4[%c0_5, %c0_6], %5 {strides = array<i32>} : memref<8x64xf32, #tpu.memory_space<vmem>>, vector<8x64xf32>,
    return
  }
  func.func @transform_0(%arg0: i32) -> (i32, i32) {
    %c0_i32 = arith.constant 0 : i32
    %c0_i32_0 = arith.constant 0 : i32
    return %arg0, %c0_i32 : i32, i32
  }
  func.func @transform_1(%arg0: i32) -> (i32, i32) {
    %c0_i32 = arith.constant 0 : i32
    %c0_i32_0 = arith.constant 0 : i32
    %c0_i32_1 = arith.constant 0 : i32
    return %c0_i32, %c0_i32_0 : i32, i32
  }
  func.func @transform_2(%arg0: i32) -> (i32, i32) {
    %c0_i32 = arith.constant 0 : i32
    %c0_i32_0 = arith.constant 0 : i32
    %c0_i32_1 = arith.constant 0 : i32
    return %c0_i32, %c0_i32_0 : i32, i32
  }
  func.func @transform_3(%arg0: i32) -> (i32, i32) {
    %c0_i32 = arith.constant 0 : i32
    %c0_i32_0 = arith.constant 0 : i32
    return %arg0, %c0_i32 : i32, i32
  }
}

module attributes {stable_mosaic.version = 11 : i64} {
  func.func @kernel(%arg0: i32, %arg1: memref<8x64xf32, #tpu.memory_space<vmem>>, %arg2: memref<8x64xf32, #tpu.memory_space<vmem>>, %arg3: memref<64x64xf32, #tpu.memory_space<vmem>>, %arg4: memref<1x64xf32, #tpu.memory_space<vmem>>, %arg5: memref<8x64xf32, #tpu.memory_space<vmem>>) attributes {dimension_semantics = [#tpu.dimension_semantics<parallel>], iteration_bounds = array<i64: 1>, scalar_prefetch = 0 : i64, scratch_operands = 0 : i64, tpu.core_type = #tpu.core_type<tc>, window_params = [{transform_indices = @transform_0, window_bounds = array<i64: 8, 64>}, {transform_indices = @transform_1, window_bounds = array<i64: 8, 64>}, {pipeline_mode = #tpu.pipeline_mode<synchronous>, transform_indices = @transform_2, window_bounds = array<i64: 64, 64>}, {pipeline_mode = #tpu.pipeline_mode<synchronous>, transform_indices = @transform_3, window_bounds = array<i64: 1, 64>}, {transform_indices = @transform_4, window_bounds = array<i64: 8, 64>}]} {
    %c0 = arith.constant 0 : index
    %c0_0 = arith.constant 0 : index
    %0 = vector.load %arg1[%c0, %c0_0] : memref<8x64xf32, #tpu.memory_space<vmem>>, vector<8x64xf32>
    %c0_1 = arith.constant 0 : index
    %c0_2 = arith.constant 0 : index
    %1 = vector.load %arg2[%c0_1, %c0_2] : memref<8x64xf32, #tpu.memory_space<vmem>>, vector<8x64xf32>
    %2 = arith.addf %0, %1 : vector<8x64xf32>
    %c0_3 = arith.constant 0 : index
    %c0_4 = arith.constant 0 : index
    %3 = vector.load %arg3[%c0_3, %c0_4] : memref<64x64xf32, #tpu.memory_space<vmem>>, vector<64x64xf32>
    %cst = arith.constant dense<0.000000e+00> : vector<8x64xf32>
    %4 = tpu.matmul %2, %3, %cst {dimension_numbers = #tpu.dot_dimension_numbers<[1], [0], [0], [1], [0, 0, 1, 1], [], []>} : vector<8x64xf32>, vector<64x64xf32>, vector<8x64xf32> -> vector<8x64xf32>
    %c0_5 = arith.constant 0 : index
    %c0_6 = arith.constant 0 : index
    %5 = vector.load %arg4[%c0_5, %c0_6] : memref<1x64xf32, #tpu.memory_space<vmem>>, vector<1x64xf32>
    %6 = vector.broadcast %5 : vector<1x64xf32> to vector<8x64xf32>
    %7 = arith.addf %4, %6 : vector<8x64xf32>
    %cst_7 = arith.constant 0.000000e+00 : f32
    %8 = vector.broadcast %cst_7 : f32 to vector<8x64xf32>
    %9 = arith.maximumf %7, %8 : vector<8x64xf32>
    %c0_8 = arith.constant 0 : index
    %c0_9 = arith.constant 0 : index
    %10 = vector.load %arg5[%c0_8, %c0_9] : memref<8x64xf32, #tpu.memory_space<vmem>>, vector<8x64xf32>
    tpu.vector_store %arg5[%c0_8, %c0_9], %9 {strides = array<i32>} : memref<8x64xf32, #tpu.memory_space<vmem>>, vector<8x64xf32>,
    return
  }
  func.func @transform_0(%arg0: i32) -> (i32, i32) {
    %c0_i32 = arith.constant 0 : i32
    %c0_i32_0 = arith.constant 0 : i32
    return %arg0, %c0_i32 : i32, i32
  }
  func.func @transform_1(%arg0: i32) -> (i32, i32) {
    %c0_i32 = arith.constant 0 : i32
    %c0_i32_0 = arith.constant 0 : i32
    return %arg0, %c0_i32 : i32, i32
  }
  func.func @transform_2(%arg0: i32) -> (i32, i32) {
    %c0_i32 = arith.constant 0 : i32
    %c0_i32_0 = arith.constant 0 : i32
    %c0_i32_1 = arith.constant 0 : i32
    return %c0_i32, %c0_i32_0 : i32, i32
  }
  func.func @transform_3(%arg0: i32) -> (i32, i32) {
    %c0_i32 = arith.constant 0 : i32
    %c0_i32_0 = arith.constant 0 : i32
    %c0_i32_1 = arith.constant 0 : i32
    return %c0_i32, %c0_i32_0 : i32, i32
  }
  func.func @transform_4(%arg0: i32) -> (i32, i32) {
    %c0_i32 = arith.constant 0 : i32
    %c0_i32_0 = arith.constant 0 : i32
    return %arg0, %c0_i32 : i32, i32
  }
}

module attributes {stable_mosaic.version = 11 : i64} {
  func.func @kernel(%arg0: i32, %arg1: memref<32x64xf32, #tpu.memory_space<vmem>>, %arg2: memref<64x64xf32, #tpu.memory_space<vmem>>, %arg3: memref<1x64xf32, #tpu.memory_space<vmem>>, %arg4: memref<32x64xf32, #tpu.memory_space<vmem>>) attributes {dimension_semantics = [#tpu.dimension_semantics<parallel>], iteration_bounds = array<i64: 1>, scalar_prefetch = 0 : i64, scratch_operands = 0 : i64, tpu.core_type = #tpu.core_type<tc>, window_params = [{transform_indices = @transform_0, window_bounds = array<i64: 32, 64>}, {pipeline_mode = #tpu.pipeline_mode<synchronous>, transform_indices = @transform_1, window_bounds = array<i64: 64, 64>}, {pipeline_mode = #tpu.pipeline_mode<synchronous>, transform_indices = @transform_2, window_bounds = array<i64: 1, 64>}, {transform_indices = @transform_3, window_bounds = array<i64: 32, 64>}]} {
    %c0 = arith.constant 0 : index
    %c0_0 = arith.constant 0 : index
    %0 = vector.load %arg1[%c0, %c0_0] : memref<32x64xf32, #tpu.memory_space<vmem>>, vector<32x64xf32>
    %c0_1 = arith.constant 0 : index
    %c0_2 = arith.constant 0 : index
    %1 = vector.load %arg2[%c0_1, %c0_2] : memref<64x64xf32, #tpu.memory_space<vmem>>, vector<64x64xf32>
    %cst = arith.constant dense<0.000000e+00> : vector<32x64xf32>
    %2 = tpu.matmul %0, %1, %cst {dimension_numbers = #tpu.dot_dimension_numbers<[1], [0], [0], [1], [0, 0, 1, 1], [], []>} : vector<32x64xf32>, vector<64x64xf32>, vector<32x64xf32> -> vector<32x64xf32>
    %c0_3 = arith.constant 0 : index
    %c0_4 = arith.constant 0 : index
    %3 = vector.load %arg3[%c0_3, %c0_4] : memref<1x64xf32, #tpu.memory_space<vmem>>, vector<1x64xf32>
    %4 = vector.broadcast %3 : vector<1x64xf32> to vector<32x64xf32>
    %5 = arith.addf %2, %4 : vector<32x64xf32>
    %c0_5 = arith.constant 0 : index
    %c0_6 = arith.constant 0 : index
    %6 = vector.load %arg4[%c0_5, %c0_6] : memref<32x64xf32, #tpu.memory_space<vmem>>, vector<32x64xf32>
    tpu.vector_store %arg4[%c0_5, %c0_6], %5 {strides = array<i32>} : memref<32x64xf32, #tpu.memory_space<vmem>>, vector<32x64xf32>,
    return
  }
  func.func @transform_0(%arg0: i32) -> (i32, i32) {
    %c0_i32 = arith.constant 0 : i32
    %c0_i32_0 = arith.constant 0 : i32
    return %arg0, %c0_i32 : i32, i32
  }
  func.func @transform_1(%arg0: i32) -> (i32, i32) {
    %c0_i32 = arith.constant 0 : i32
    %c0_i32_0 = arith.constant 0 : i32
    %c0_i32_1 = arith.constant 0 : i32
    return %c0_i32, %c0_i32_0 : i32, i32
  }
  func.func @transform_2(%arg0: i32) -> (i32, i32) {
    %c0_i32 = arith.constant 0 : i32
    %c0_i32_0 = arith.constant 0 : i32
    %c0_i32_1 = arith.constant 0 : i32
    return %c0_i32, %c0_i32_0 : i32, i32
  }
  func.func @transform_3(%arg0: i32) -> (i32, i32) {
    %c0_i32 = arith.constant 0 : i32
    %c0_i32_0 = arith.constant 0 : i32
    return %arg0, %c0_i32 : i32, i32
  }
}

module attributes {stable_mosaic.version = 11 : i64} {
  func.func @kernel(%arg0: i32, %arg1: memref<32x64xf32, #tpu.memory_space<vmem>>, %arg2: memref<32x64xf32, #tpu.memory_space<vmem>>, %arg3: memref<64x64xf32, #tpu.memory_space<vmem>>, %arg4: memref<1x64xf32, #tpu.memory_space<vmem>>, %arg5: memref<32x64xf32, #tpu.memory_space<vmem>>) attributes {dimension_semantics = [#tpu.dimension_semantics<parallel>], iteration_bounds = array<i64: 1>, scalar_prefetch = 0 : i64, scratch_operands = 0 : i64, tpu.core_type = #tpu.core_type<tc>, window_params = [{transform_indices = @transform_0, window_bounds = array<i64: 32, 64>}, {transform_indices = @transform_1, window_bounds = array<i64: 32, 64>}, {pipeline_mode = #tpu.pipeline_mode<synchronous>, transform_indices = @transform_2, window_bounds = array<i64: 64, 64>}, {pipeline_mode = #tpu.pipeline_mode<synchronous>, transform_indices = @transform_3, window_bounds = array<i64: 1, 64>}, {transform_indices = @transform_4, window_bounds = array<i64: 32, 64>}]} {
    %c0 = arith.constant 0 : index
    %c0_0 = arith.constant 0 : index
    %0 = vector.load %arg1[%c0, %c0_0] : memref<32x64xf32, #tpu.memory_space<vmem>>, vector<32x64xf32>
    %c0_1 = arith.constant 0 : index
    %c0_2 = arith.constant 0 : index
    %1 = vector.load %arg2[%c0_1, %c0_2] : memref<32x64xf32, #tpu.memory_space<vmem>>, vector<32x64xf32>
    %2 = arith.addf %0, %1 : vector<32x64xf32>
    %c0_3 = arith.constant 0 : index
    %c0_4 = arith.constant 0 : index
    %3 = vector.load %arg3[%c0_3, %c0_4] : memref<64x64xf32, #tpu.memory_space<vmem>>, vector<64x64xf32>
    %cst = arith.constant dense<0.000000e+00> : vector<32x64xf32>
    %4 = tpu.matmul %2, %3, %cst {dimension_numbers = #tpu.dot_dimension_numbers<[1], [0], [0], [1], [0, 0, 1, 1], [], []>} : vector<32x64xf32>, vector<64x64xf32>, vector<32x64xf32> -> vector<32x64xf32>
    %c0_5 = arith.constant 0 : index
    %c0_6 = arith.constant 0 : index
    %5 = vector.load %arg4[%c0_5, %c0_6] : memref<1x64xf32, #tpu.memory_space<vmem>>, vector<1x64xf32>
    %6 = vector.broadcast %5 : vector<1x64xf32> to vector<32x64xf32>
    %7 = arith.addf %4, %6 : vector<32x64xf32>
    %cst_7 = arith.constant 0.000000e+00 : f32
    %8 = vector.broadcast %cst_7 : f32 to vector<32x64xf32>
    %9 = arith.maximumf %7, %8 : vector<32x64xf32>
    %c0_8 = arith.constant 0 : index
    %c0_9 = arith.constant 0 : index
    %10 = vector.load %arg5[%c0_8, %c0_9] : memref<32x64xf32, #tpu.memory_space<vmem>>, vector<32x64xf32>
    tpu.vector_store %arg5[%c0_8, %c0_9], %9 {strides = array<i32>} : memref<32x64xf32, #tpu.memory_space<vmem>>, vector<32x64xf32>,
    return
  }
  func.func @transform_0(%arg0: i32) -> (i32, i32) {
    %c0_i32 = arith.constant 0 : i32
    %c0_i32_0 = arith.constant 0 : i32
    return %arg0, %c0_i32 : i32, i32
  }
  func.func @transform_1(%arg0: i32) -> (i32, i32) {
    %c0_i32 = arith.constant 0 : i32
    %c0_i32_0 = arith.constant 0 : i32
    return %arg0, %c0_i32 : i32, i32
  }
  func.func @transform_2(%arg0: i32) -> (i32, i32) {
    %c0_i32 = arith.constant 0 : i32
    %c0_i32_0 = arith.constant 0 : i32
    %c0_i32_1 = arith.constant 0 : i32
    return %c0_i32, %c0_i32_0 : i32, i32
  }
  func.func @transform_3(%arg0: i32) -> (i32, i32) {
    %c0_i32 = arith.constant 0 : i32
    %c0_i32_0 = arith.constant 0 : i32
    %c0_i32_1 = arith.constant 0 : i32
    return %c0_i32, %c0_i32_0 : i32, i32
  }
  func.func @transform_4(%arg0: i32) -> (i32, i32) {
    %c0_i32 = arith.constant 0 : i32
    %c0_i32_0 = arith.constant 0 : i32
    return %arg0, %c0_i32 : i32, i32
  }
}

module attributes {stable_mosaic.version = 11 : i64} {
  func.func @kernel(%arg0: i32, %arg1: memref<128x64xf32, #tpu.memory_space<vmem>>, %arg2: memref<64x64xf32, #tpu.memory_space<vmem>>, %arg3: memref<1x64xf32, #tpu.memory_space<vmem>>, %arg4: memref<128x64xf32, #tpu.memory_space<vmem>>) attributes {dimension_semantics = [#tpu.dimension_semantics<parallel>], iteration_bounds = array<i64: 1>, scalar_prefetch = 0 : i64, scratch_operands = 0 : i64, tpu.core_type = #tpu.core_type<tc>, window_params = [{transform_indices = @transform_0, window_bounds = array<i64: 128, 64>}, {pipeline_mode = #tpu.pipeline_mode<synchronous>, transform_indices = @transform_1, window_bounds = array<i64: 64, 64>}, {pipeline_mode = #tpu.pipeline_mode<synchronous>, transform_indices = @transform_2, window_bounds = array<i64: 1, 64>}, {transform_indices = @transform_3, window_bounds = array<i64: 128, 64>}]} {
    %c0 = arith.constant 0 : index
    %c0_0 = arith.constant 0 : index
    %0 = vector.load %arg1[%c0, %c0_0] : memref<128x64xf32, #tpu.memory_space<vmem>>, vector<128x64xf32>
    %c0_1 = arith.constant 0 : index
    %c0_2 = arith.constant 0 : index
    %1 = vector.load %arg2[%c0_1, %c0_2] : memref<64x64xf32, #tpu.memory_space<vmem>>, vector<64x64xf32>
    %cst = arith.constant dense<0.000000e+00> : vector<128x64xf32>
    %2 = tpu.matmul %0, %1, %cst {dimension_numbers = #tpu.dot_dimension_numbers<[1], [0], [0], [1], [0, 0, 1, 1], [], []>} : vector<128x64xf32>, vector<64x64xf32>, vector<128x64xf32> -> vector<128x64xf32>
    %c0_3 = arith.constant 0 : index
    %c0_4 = arith.constant 0 : index
    %3 = vector.load %arg3[%c0_3, %c0_4] : memref<1x64xf32, #tpu.memory_space<vmem>>, vector<1x64xf32>
    %4 = vector.broadcast %3 : vector<1x64xf32> to vector<128x64xf32>
    %5 = arith.addf %2, %4 : vector<128x64xf32>
    %c0_5 = arith.constant 0 : index
    %c0_6 = arith.constant 0 : index
    %6 = vector.load %arg4[%c0_5, %c0_6] : memref<128x64xf32, #tpu.memory_space<vmem>>, vector<128x64xf32>
    tpu.vector_store %arg4[%c0_5, %c0_6], %5 {strides = array<i32>} : memref<128x64xf32, #tpu.memory_space<vmem>>, vector<128x64xf32>,
    return
  }
  func.func @transform_0(%arg0: i32) -> (i32, i32) {
    %c0_i32 = arith.constant 0 : i32
    %c0_i32_0 = arith.constant 0 : i32
    return %arg0, %c0_i32 : i32, i32
  }
  func.func @transform_1(%arg0: i32) -> (i32, i32) {
    %c0_i32 = arith.constant 0 : i32
    %c0_i32_0 = arith.constant 0 : i32
    %c0_i32_1 = arith.constant 0 : i32
    return %c0_i32, %c0_i32_0 : i32, i32
  }
  func.func @transform_2(%arg0: i32) -> (i32, i32) {
    %c0_i32 = arith.constant 0 : i32
    %c0_i32_0 = arith.constant 0 : i32
    %c0_i32_1 = arith.constant 0 : i32
    return %c0_i32, %c0_i32_0 : i32, i32
  }
  func.func @transform_3(%arg0: i32) -> (i32, i32) {
    %c0_i32 = arith.constant 0 : i32
    %c0_i32_0 = arith.constant 0 : i32
    return %arg0, %c0_i32 : i32, i32
  }
}

module attributes {stable_mosaic.version = 11 : i64} {
  func.func @kernel(%arg0: i32, %arg1: memref<128x64xf32, #tpu.memory_space<vmem>>, %arg2: memref<128x64xf32, #tpu.memory_space<vmem>>, %arg3: memref<64x64xf32, #tpu.memory_space<vmem>>, %arg4: memref<1x64xf32, #tpu.memory_space<vmem>>, %arg5: memref<128x64xf32, #tpu.memory_space<vmem>>) attributes {dimension_semantics = [#tpu.dimension_semantics<parallel>], iteration_bounds = array<i64: 1>, scalar_prefetch = 0 : i64, scratch_operands = 0 : i64, tpu.core_type = #tpu.core_type<tc>, window_params = [{transform_indices = @transform_0, window_bounds = array<i64: 128, 64>}, {transform_indices = @transform_1, window_bounds = array<i64: 128, 64>}, {pipeline_mode = #tpu.pipeline_mode<synchronous>, transform_indices = @transform_2, window_bounds = array<i64: 64, 64>}, {pipeline_mode = #tpu.pipeline_mode<synchronous>, transform_indices = @transform_3, window_bounds = array<i64: 1, 64>}, {transform_indices = @transform_4, window_bounds = array<i64: 128, 64>}]} {
    %c0 = arith.constant 0 : index
    %c0_0 = arith.constant 0 : index
    %0 = vector.load %arg1[%c0, %c0_0] : memref<128x64xf32, #tpu.memory_space<vmem>>, vector<128x64xf32>
    %c0_1 = arith.constant 0 : index
    %c0_2 = arith.constant 0 : index
    %1 = vector.load %arg2[%c0_1, %c0_2] : memref<128x64xf32, #tpu.memory_space<vmem>>, vector<128x64xf32>
    %2 = arith.addf %0, %1 : vector<128x64xf32>
    %c0_3 = arith.constant 0 : index
    %c0_4 = arith.constant 0 : index
    %3 = vector.load %arg3[%c0_3, %c0_4] : memref<64x64xf32, #tpu.memory_space<vmem>>, vector<64x64xf32>
    %cst = arith.constant dense<0.000000e+00> : vector<128x64xf32>
    %4 = tpu.matmul %2, %3, %cst {dimension_numbers = #tpu.dot_dimension_numbers<[1], [0], [0], [1], [0, 0, 1, 1], [], []>} : vector<128x64xf32>, vector<64x64xf32>, vector<128x64xf32> -> vector<128x64xf32>
    %c0_5 = arith.constant 0 : index
    %c0_6 = arith.constant 0 : index
    %5 = vector.load %arg4[%c0_5, %c0_6] : memref<1x64xf32, #tpu.memory_space<vmem>>, vector<1x64xf32>
    %6 = vector.broadcast %5 : vector<1x64xf32> to vector<128x64xf32>
    %7 = arith.addf %4, %6 : vector<128x64xf32>
    %cst_7 = arith.constant 0.000000e+00 : f32
    %8 = vector.broadcast %cst_7 : f32 to vector<128x64xf32>
    %9 = arith.maximumf %7, %8 : vector<128x64xf32>
    %c0_8 = arith.constant 0 : index
    %c0_9 = arith.constant 0 : index
    %10 = vector.load %arg5[%c0_8, %c0_9] : memref<128x64xf32, #tpu.memory_space<vmem>>, vector<128x64xf32>
    tpu.vector_store %arg5[%c0_8, %c0_9], %9 {strides = array<i32>} : memref<128x64xf32, #tpu.memory_space<vmem>>, vector<128x64xf32>,
    return
  }
  func.func @transform_0(%arg0: i32) -> (i32, i32) {
    %c0_i32 = arith.constant 0 : i32
    %c0_i32_0 = arith.constant 0 : i32
    return %arg0, %c0_i32 : i32, i32
  }
  func.func @transform_1(%arg0: i32) -> (i32, i32) {
    %c0_i32 = arith.constant 0 : i32
    %c0_i32_0 = arith.constant 0 : i32
    return %arg0, %c0_i32 : i32, i32
  }
  func.func @transform_2(%arg0: i32) -> (i32, i32) {
    %c0_i32 = arith.constant 0 : i32
    %c0_i32_0 = arith.constant 0 : i32
    %c0_i32_1 = arith.constant 0 : i32
    return %c0_i32, %c0_i32_0 : i32, i32
  }
  func.func @transform_3(%arg0: i32) -> (i32, i32) {
    %c0_i32 = arith.constant 0 : i32
    %c0_i32_0 = arith.constant 0 : i32
    %c0_i32_1 = arith.constant 0 : i32
    return %c0_i32, %c0_i32_0 : i32, i32
  }
  func.func @transform_4(%arg0: i32) -> (i32, i32) {
    %c0_i32 = arith.constant 0 : i32
    %c0_i32_0 = arith.constant 0 : i32
    return %arg0, %c0_i32 : i32, i32
  }
}

module attributes {stable_mosaic.version = 11 : i64} {
  func.func @kernel(%arg0: i32, %arg1: memref<512x64xf32, #tpu.memory_space<vmem>>, %arg2: memref<64x64xf32, #tpu.memory_space<vmem>>, %arg3: memref<1x64xf32, #tpu.memory_space<vmem>>, %arg4: memref<512x64xf32, #tpu.memory_space<vmem>>) attributes {dimension_semantics = [#tpu.dimension_semantics<parallel>], iteration_bounds = array<i64: 1>, scalar_prefetch = 0 : i64, scratch_operands = 0 : i64, tpu.core_type = #tpu.core_type<tc>, window_params = [{transform_indices = @transform_0, window_bounds = array<i64: 512, 64>}, {pipeline_mode = #tpu.pipeline_mode<synchronous>, transform_indices = @transform_1, window_bounds = array<i64: 64, 64>}, {pipeline_mode = #tpu.pipeline_mode<synchronous>, transform_indices = @transform_2, window_bounds = array<i64: 1, 64>}, {transform_indices = @transform_3, window_bounds = array<i64: 512, 64>}]} {
    %c0 = arith.constant 0 : index
    %c0_0 = arith.constant 0 : index
    %0 = vector.load %arg1[%c0, %c0_0] : memref<512x64xf32, #tpu.memory_space<vmem>>, vector<512x64xf32>
    %c0_1 = arith.constant 0 : index
    %c0_2 = arith.constant 0 : index
    %1 = vector.load %arg2[%c0_1, %c0_2] : memref<64x64xf32, #tpu.memory_space<vmem>>, vector<64x64xf32>
    %cst = arith.constant dense<0.000000e+00> : vector<512x64xf32>
    %2 = tpu.matmul %0, %1, %cst {dimension_numbers = #tpu.dot_dimension_numbers<[1], [0], [0], [1], [0, 0, 1, 1], [], []>} : vector<512x64xf32>, vector<64x64xf32>, vector<512x64xf32> -> vector<512x64xf32>
    %c0_3 = arith.constant 0 : index
    %c0_4 = arith.constant 0 : index
    %3 = vector.load %arg3[%c0_3, %c0_4] : memref<1x64xf32, #tpu.memory_space<vmem>>, vector<1x64xf32>
    %4 = vector.broadcast %3 : vector<1x64xf32> to vector<512x64xf32>
    %5 = arith.addf %2, %4 : vector<512x64xf32>
    %c0_5 = arith.constant 0 : index
    %c0_6 = arith.constant 0 : index
    %6 = vector.load %arg4[%c0_5, %c0_6] : memref<512x64xf32, #tpu.memory_space<vmem>>, vector<512x64xf32>
    tpu.vector_store %arg4[%c0_5, %c0_6], %5 {strides = array<i32>} : memref<512x64xf32, #tpu.memory_space<vmem>>, vector<512x64xf32>,
    return
  }
  func.func @transform_0(%arg0: i32) -> (i32, i32) {
    %c0_i32 = arith.constant 0 : i32
    %c0_i32_0 = arith.constant 0 : i32
    return %arg0, %c0_i32 : i32, i32
  }
  func.func @transform_1(%arg0: i32) -> (i32, i32) {
    %c0_i32 = arith.constant 0 : i32
    %c0_i32_0 = arith.constant 0 : i32
    %c0_i32_1 = arith.constant 0 : i32
    return %c0_i32, %c0_i32_0 : i32, i32
  }
  func.func @transform_2(%arg0: i32) -> (i32, i32) {
    %c0_i32 = arith.constant 0 : i32
    %c0_i32_0 = arith.constant 0 : i32
    %c0_i32_1 = arith.constant 0 : i32
    return %c0_i32, %c0_i32_0 : i32, i32
  }
  func.func @transform_3(%arg0: i32) -> (i32, i32) {
    %c0_i32 = arith.constant 0 : i32
    %c0_i32_0 = arith.constant 0 : i32
    return %arg0, %c0_i32 : i32, i32
  }
}

module attributes {stable_mosaic.version = 11 : i64} {
  func.func @kernel(%arg0: i32, %arg1: memref<512x64xf32, #tpu.memory_space<vmem>>, %arg2: memref<512x64xf32, #tpu.memory_space<vmem>>, %arg3: memref<64x64xf32, #tpu.memory_space<vmem>>, %arg4: memref<1x64xf32, #tpu.memory_space<vmem>>, %arg5: memref<512x64xf32, #tpu.memory_space<vmem>>) attributes {dimension_semantics = [#tpu.dimension_semantics<parallel>], iteration_bounds = array<i64: 1>, scalar_prefetch = 0 : i64, scratch_operands = 0 : i64, tpu.core_type = #tpu.core_type<tc>, window_params = [{transform_indices = @transform_0, window_bounds = array<i64: 512, 64>}, {transform_indices = @transform_1, window_bounds = array<i64: 512, 64>}, {pipeline_mode = #tpu.pipeline_mode<synchronous>, transform_indices = @transform_2, window_bounds = array<i64: 64, 64>}, {pipeline_mode = #tpu.pipeline_mode<synchronous>, transform_indices = @transform_3, window_bounds = array<i64: 1, 64>}, {transform_indices = @transform_4, window_bounds = array<i64: 512, 64>}]} {
    %c0 = arith.constant 0 : index
    %c0_0 = arith.constant 0 : index
    %0 = vector.load %arg1[%c0, %c0_0] : memref<512x64xf32, #tpu.memory_space<vmem>>, vector<512x64xf32>
    %c0_1 = arith.constant 0 : index
    %c0_2 = arith.constant 0 : index
    %1 = vector.load %arg2[%c0_1, %c0_2] : memref<512x64xf32, #tpu.memory_space<vmem>>, vector<512x64xf32>
    %2 = arith.addf %0, %1 : vector<512x64xf32>
    %c0_3 = arith.constant 0 : index
    %c0_4 = arith.constant 0 : index
    %3 = vector.load %arg3[%c0_3, %c0_4] : memref<64x64xf32, #tpu.memory_space<vmem>>, vector<64x64xf32>
    %cst = arith.constant dense<0.000000e+00> : vector<512x64xf32>
    %4 = tpu.matmul %2, %3, %cst {dimension_numbers = #tpu.dot_dimension_numbers<[1], [0], [0], [1], [0, 0, 1, 1], [], []>} : vector<512x64xf32>, vector<64x64xf32>, vector<512x64xf32> -> vector<512x64xf32>
    %c0_5 = arith.constant 0 : index
    %c0_6 = arith.constant 0 : index
    %5 = vector.load %arg4[%c0_5, %c0_6] : memref<1x64xf32, #tpu.memory_space<vmem>>, vector<1x64xf32>
    %6 = vector.broadcast %5 : vector<1x64xf32> to vector<512x64xf32>
    %7 = arith.addf %4, %6 : vector<512x64xf32>
    %cst_7 = arith.constant 0.000000e+00 : f32
    %8 = vector.broadcast %cst_7 : f32 to vector<512x64xf32>
    %9 = arith.maximumf %7, %8 : vector<512x64xf32>
    %c0_8 = arith.constant 0 : index
    %c0_9 = arith.constant 0 : index
    %10 = vector.load %arg5[%c0_8, %c0_9] : memref<512x64xf32, #tpu.memory_space<vmem>>, vector<512x64xf32>
    tpu.vector_store %arg5[%c0_8, %c0_9], %9 {strides = array<i32>} : memref<512x64xf32, #tpu.memory_space<vmem>>, vector<512x64xf32>,
    return
  }
  func.func @transform_0(%arg0: i32) -> (i32, i32) {
    %c0_i32 = arith.constant 0 : i32
    %c0_i32_0 = arith.constant 0 : i32
    return %arg0, %c0_i32 : i32, i32
  }
  func.func @transform_1(%arg0: i32) -> (i32, i32) {
    %c0_i32 = arith.constant 0 : i32
    %c0_i32_0 = arith.constant 0 : i32
    return %arg0, %c0_i32 : i32, i32
  }
  func.func @transform_2(%arg0: i32) -> (i32, i32) {
    %c0_i32 = arith.constant 0 : i32
    %c0_i32_0 = arith.constant 0 : i32
    %c0_i32_1 = arith.constant 0 : i32
    return %c0_i32, %c0_i32_0 : i32, i32
  }
  func.func @transform_3(%arg0: i32) -> (i32, i32) {
    %c0_i32 = arith.constant 0 : i32
    %c0_i32_0 = arith.constant 0 : i32
    %c0_i32_1 = arith.constant 0 : i32
    return %c0_i32, %c0_i32_0 : i32, i32
  }
  func.func @transform_4(%arg0: i32) -> (i32, i32) {
    %c0_i32 = arith.constant 0 : i32
    %c0_i32_0 = arith.constant 0 : i32
    return %arg0, %c0_i32 : i32, i32
  }
}

module attributes {stable_mosaic.version = 11 : i64} {
  func.func @kernel(%arg0: i32, %arg1: memref<128x64xf32, #tpu.memory_space<vmem>>, %arg2: memref<128x64xf32, #tpu.memory_space<vmem>>, %arg3: memref<128x64xf32, #tpu.memory_space<vmem>>, %arg4: memref<64x64xf32, #tpu.memory_space<vmem>>, %arg5: memref<1x64xf32, #tpu.memory_space<vmem>>, %arg6: memref<128x64xf32, #tpu.memory_space<vmem>>) attributes {dimension_semantics = [#tpu.dimension_semantics<parallel>], iteration_bounds = array<i64: 1>, scalar_prefetch = 0 : i64, scratch_operands = 0 : i64, tpu.core_type = #tpu.core_type<tc>, window_params = [{transform_indices = @transform_0, window_bounds = array<i64: 128, 64>}, {transform_indices = @transform_1, window_bounds = array<i64: 128, 64>}, {transform_indices = @transform_2, window_bounds = array<i64: 128, 64>}, {pipeline_mode = #tpu.pipeline_mode<synchronous>, transform_indices = @transform_3, window_bounds = array<i64: 64, 64>}, {pipeline_mode = #tpu.pipeline_mode<synchronous>, transform_indices = @transform_4, window_bounds = array<i64: 1, 64>}, {transform_indices = @transform_5, window_bounds = array<i64: 128, 64>}]} {
    %c0 = arith.constant 0 : index
    %c0_0 = arith.constant 0 : index
    %0 = vector.load %arg1[%c0, %c0_0] : memref<128x64xf32, #tpu.memory_space<vmem>>, vector<128x64xf32>
    %c0_1 = arith.constant 0 : index
    %c0_2 = arith.constant 0 : index
    %1 = vector.load %arg2[%c0_1, %c0_2] : memref<128x64xf32, #tpu.memory_space<vmem>>, vector<128x64xf32>
    %2 = arith.addf %0, %1 : vector<128x64xf32>
    %c0_3 = arith.constant 0 : index
    %c0_4 = arith.constant 0 : index
    %3 = vector.load %arg3[%c0_3, %c0_4] : memref<128x64xf32, #tpu.memory_space<vmem>>, vector<128x64xf32>
    %4 = arith.addf %2, %3 : vector<128x64xf32>
    %c0_5 = arith.constant 0 : index
    %c0_6 = arith.constant 0 : index
    %5 = vector.load %arg4[%c0_5, %c0_6] : memref<64x64xf32, #tpu.memory_space<vmem>>, vector<64x64xf32>
    %cst = arith.constant dense<0.000000e+00> : vector<128x64xf32>
    %6 = tpu.matmul %4, %5, %cst {dimension_numbers = #tpu.dot_dimension_numbers<[1], [0], [0], [1], [0, 0, 1, 1], [], []>} : vector<128x64xf32>, vector<64x64xf32>, vector<128x64xf32> -> vector<128x64xf32>
    %c0_7 = arith.constant 0 : index
    %c0_8 = arith.constant 0 : index
    %7 = vector.load %arg5[%c0_7, %c0_8] : memref<1x64xf32, #tpu.memory_space<vmem>>, vector<1x64xf32>
    %8 = vector.broadcast %7 : vector<1x64xf32> to vector<128x64xf32>
    %9 = arith.addf %6, %8 : vector<128x64xf32>
    %cst_9 = arith.constant 0.000000e+00 : f32
    %10 = vector.broadcast %cst_9 : f32 to vector<128x64xf32>
    %11 = arith.maximumf %9, %10 : vector<128x64xf32>
    %c0_10 = arith.constant 0 : index
    %c0_11 = arith.constant 0 : index
    %12 = vector.load %arg6[%c0_10, %c0_11] : memref<128x64xf32, #tpu.memory_space<vmem>>, vector<128x64xf32>
    tpu.vector_store %arg6[%c0_10, %c0_11], %11 {strides = array<i32>} : memref<128x64xf32, #tpu.memory_space<vmem>>, vector<128x64xf32>,
    return
  }
  func.func @transform_0(%arg0: i32) -> (i32, i32) {
    %c0_i32 = arith.constant 0 : i32
    %c0_i32_0 = arith.constant 0 : i32
    return %arg0, %c0_i32 : i32, i32
  }
  func.func @transform_1(%arg0: i32) -> (i32, i32) {
    %c0_i32 = arith.constant 0 : i32
    %c0_i32_0 = arith.constant 0 : i32
    return %arg0, %c0_i32 : i32, i32
  }
  func.func @transform_2(%arg0: i32) -> (i32, i32) {
    %c0_i32 = arith.constant 0 : i32
    %c0_i32_0 = arith.constant 0 : i32
    return %arg0, %c0_i32 : i32, i32
  }
  func.func @transform_3(%arg0: i32) -> (i32, i32) {
    %c0_i32 = arith.constant 0 : i32
    %c0_i32_0 = arith.constant 0 : i32
    %c0_i32_1 = arith.constant 0 : i32
    return %c0_i32, %c0_i32_0 : i32, i32
  }
  func.func @transform_4(%arg0: i32) -> (i32, i32) {
    %c0_i32 = arith.constant 0 : i32
    %c0_i32_0 = arith.constant 0 : i32
    %c0_i32_1 = arith.constant 0 : i32
    return %c0_i32, %c0_i32_0 : i32, i32
  }
  func.func @transform_5(%arg0: i32) -> (i32, i32) {
    %c0_i32 = arith.constant 0 : i32
    %c0_i32_0 = arith.constant 0 : i32
    return %arg0, %c0_i32 : i32, i32
  }
}

module attributes {stable_mosaic.version = 11 : i64} {
  func.func @kernel(%arg0: i32, %arg1: memref<32x64xf32, #tpu.memory_space<vmem>>, %arg2: memref<32x64xf32, #tpu.memory_space<vmem>>, %arg3: memref<32x64xf32, #tpu.memory_space<vmem>>, %arg4: memref<64x64xf32, #tpu.memory_space<vmem>>, %arg5: memref<1x64xf32, #tpu.memory_space<vmem>>, %arg6: memref<32x64xf32, #tpu.memory_space<vmem>>) attributes {dimension_semantics = [#tpu.dimension_semantics<parallel>], iteration_bounds = array<i64: 1>, scalar_prefetch = 0 : i64, scratch_operands = 0 : i64, tpu.core_type = #tpu.core_type<tc>, window_params = [{transform_indices = @transform_0, window_bounds = array<i64: 32, 64>}, {transform_indices = @transform_1, window_bounds = array<i64: 32, 64>}, {transform_indices = @transform_2, window_bounds = array<i64: 32, 64>}, {pipeline_mode = #tpu.pipeline_mode<synchronous>, transform_indices = @transform_3, window_bounds = array<i64: 64, 64>}, {pipeline_mode = #tpu.pipeline_mode<synchronous>, transform_indices = @transform_4, window_bounds = array<i64: 1, 64>}, {transform_indices = @transform_5, window_bounds = array<i64: 32, 64>}]} {
    %c0 = arith.constant 0 : index
    %c0_0 = arith.constant 0 : index
    %0 = vector.load %arg1[%c0, %c0_0] : memref<32x64xf32, #tpu.memory_space<vmem>>, vector<32x64xf32>
    %c0_1 = arith.constant 0 : index
    %c0_2 = arith.constant 0 : index
    %1 = vector.load %arg2[%c0_1, %c0_2] : memref<32x64xf32, #tpu.memory_space<vmem>>, vector<32x64xf32>
    %2 = arith.addf %0, %1 : vector<32x64xf32>
    %c0_3 = arith.constant 0 : index
    %c0_4 = arith.constant 0 : index
    %3 = vector.load %arg3[%c0_3, %c0_4] : memref<32x64xf32, #tpu.memory_space<vmem>>, vector<32x64xf32>
    %4 = arith.addf %2, %3 : vector<32x64xf32>
    %c0_5 = arith.constant 0 : index
    %c0_6 = arith.constant 0 : index
    %5 = vector.load %arg4[%c0_5, %c0_6] : memref<64x64xf32, #tpu.memory_space<vmem>>, vector<64x64xf32>
    %cst = arith.constant dense<0.000000e+00> : vector<32x64xf32>
    %6 = tpu.matmul %4, %5, %cst {dimension_numbers = #tpu.dot_dimension_numbers<[1], [0], [0], [1], [0, 0, 1, 1], [], []>} : vector<32x64xf32>, vector<64x64xf32>, vector<32x64xf32> -> vector<32x64xf32>
    %c0_7 = arith.constant 0 : index
    %c0_8 = arith.constant 0 : index
    %7 = vector.load %arg5[%c0_7, %c0_8] : memref<1x64xf32, #tpu.memory_space<vmem>>, vector<1x64xf32>
    %8 = vector.broadcast %7 : vector<1x64xf32> to vector<32x64xf32>
    %9 = arith.addf %6, %8 : vector<32x64xf32>
    %cst_9 = arith.constant 0.000000e+00 : f32
    %10 = vector.broadcast %cst_9 : f32 to vector<32x64xf32>
    %11 = arith.maximumf %9, %10 : vector<32x64xf32>
    %c0_10 = arith.constant 0 : index
    %c0_11 = arith.constant 0 : index
    %12 = vector.load %arg6[%c0_10, %c0_11] : memref<32x64xf32, #tpu.memory_space<vmem>>, vector<32x64xf32>
    tpu.vector_store %arg6[%c0_10, %c0_11], %11 {strides = array<i32>} : memref<32x64xf32, #tpu.memory_space<vmem>>, vector<32x64xf32>,
    return
  }
  func.func @transform_0(%arg0: i32) -> (i32, i32) {
    %c0_i32 = arith.constant 0 : i32
    %c0_i32_0 = arith.constant 0 : i32
    return %arg0, %c0_i32 : i32, i32
  }
  func.func @transform_1(%arg0: i32) -> (i32, i32) {
    %c0_i32 = arith.constant 0 : i32
    %c0_i32_0 = arith.constant 0 : i32
    return %arg0, %c0_i32 : i32, i32
  }
  func.func @transform_2(%arg0: i32) -> (i32, i32) {
    %c0_i32 = arith.constant 0 : i32
    %c0_i32_0 = arith.constant 0 : i32
    return %arg0, %c0_i32 : i32, i32
  }
  func.func @transform_3(%arg0: i32) -> (i32, i32) {
    %c0_i32 = arith.constant 0 : i32
    %c0_i32_0 = arith.constant 0 : i32
    %c0_i32_1 = arith.constant 0 : i32
    return %c0_i32, %c0_i32_0 : i32, i32
  }
  func.func @transform_4(%arg0: i32) -> (i32, i32) {
    %c0_i32 = arith.constant 0 : i32
    %c0_i32_0 = arith.constant 0 : i32
    %c0_i32_1 = arith.constant 0 : i32
    return %c0_i32, %c0_i32_0 : i32, i32
  }
  func.func @transform_5(%arg0: i32) -> (i32, i32) {
    %c0_i32 = arith.constant 0 : i32
    %c0_i32_0 = arith.constant 0 : i32
    return %arg0, %c0_i32 : i32, i32
  }
}

module attributes {stable_mosaic.version = 11 : i64} {
  func.func @kernel(%arg0: i32, %arg1: memref<8x64xf32, #tpu.memory_space<vmem>>, %arg2: memref<8x64xf32, #tpu.memory_space<vmem>>, %arg3: memref<8x64xf32, #tpu.memory_space<vmem>>, %arg4: memref<64x64xf32, #tpu.memory_space<vmem>>, %arg5: memref<1x64xf32, #tpu.memory_space<vmem>>, %arg6: memref<8x64xf32, #tpu.memory_space<vmem>>) attributes {dimension_semantics = [#tpu.dimension_semantics<parallel>], iteration_bounds = array<i64: 1>, scalar_prefetch = 0 : i64, scratch_operands = 0 : i64, tpu.core_type = #tpu.core_type<tc>, window_params = [{transform_indices = @transform_0, window_bounds = array<i64: 8, 64>}, {transform_indices = @transform_1, window_bounds = array<i64: 8, 64>}, {transform_indices = @transform_2, window_bounds = array<i64: 8, 64>}, {pipeline_mode = #tpu.pipeline_mode<synchronous>, transform_indices = @transform_3, window_bounds = array<i64: 64, 64>}, {pipeline_mode = #tpu.pipeline_mode<synchronous>, transform_indices = @transform_4, window_bounds = array<i64: 1, 64>}, {transform_indices = @transform_5, window_bounds = array<i64: 8, 64>}]} {
    %c0 = arith.constant 0 : index
    %c0_0 = arith.constant 0 : index
    %0 = vector.load %arg1[%c0, %c0_0] : memref<8x64xf32, #tpu.memory_space<vmem>>, vector<8x64xf32>
    %c0_1 = arith.constant 0 : index
    %c0_2 = arith.constant 0 : index
    %1 = vector.load %arg2[%c0_1, %c0_2] : memref<8x64xf32, #tpu.memory_space<vmem>>, vector<8x64xf32>
    %2 = arith.addf %0, %1 : vector<8x64xf32>
    %c0_3 = arith.constant 0 : index
    %c0_4 = arith.constant 0 : index
    %3 = vector.load %arg3[%c0_3, %c0_4] : memref<8x64xf32, #tpu.memory_space<vmem>>, vector<8x64xf32>
    %4 = arith.addf %2, %3 : vector<8x64xf32>
    %c0_5 = arith.constant 0 : index
    %c0_6 = arith.constant 0 : index
    %5 = vector.load %arg4[%c0_5, %c0_6] : memref<64x64xf32, #tpu.memory_space<vmem>>, vector<64x64xf32>
    %cst = arith.constant dense<0.000000e+00> : vector<8x64xf32>
    %6 = tpu.matmul %4, %5, %cst {dimension_numbers = #tpu.dot_dimension_numbers<[1], [0], [0], [1], [0, 0, 1, 1], [], []>} : vector<8x64xf32>, vector<64x64xf32>, vector<8x64xf32> -> vector<8x64xf32>
    %c0_7 = arith.constant 0 : index
    %c0_8 = arith.constant 0 : index
    %7 = vector.load %arg5[%c0_7, %c0_8] : memref<1x64xf32, #tpu.memory_space<vmem>>, vector<1x64xf32>
    %8 = vector.broadcast %7 : vector<1x64xf32> to vector<8x64xf32>
    %9 = arith.addf %6, %8 : vector<8x64xf32>
    %cst_9 = arith.constant 0.000000e+00 : f32
    %10 = vector.broadcast %cst_9 : f32 to vector<8x64xf32>
    %11 = arith.maximumf %9, %10 : vector<8x64xf32>
    %c0_10 = arith.constant 0 : index
    %c0_11 = arith.constant 0 : index
    %12 = vector.load %arg6[%c0_10, %c0_11] : memref<8x64xf32, #tpu.memory_space<vmem>>, vector<8x64xf32>
    tpu.vector_store %arg6[%c0_10, %c0_11], %11 {strides = array<i32>} : memref<8x64xf32, #tpu.memory_space<vmem>>, vector<8x64xf32>,
    return
  }
  func.func @transform_0(%arg0: i32) -> (i32, i32) {
    %c0_i32 = arith.constant 0 : i32
    %c0_i32_0 = arith.constant 0 : i32
    return %arg0, %c0_i32 : i32, i32
  }
  func.func @transform_1(%arg0: i32) -> (i32, i32) {
    %c0_i32 = arith.constant 0 : i32
    %c0_i32_0 = arith.constant 0 : i32
    return %arg0, %c0_i32 : i32, i32
  }
  func.func @transform_2(%arg0: i32) -> (i32, i32) {
    %c0_i32 = arith.constant 0 : i32
    %c0_i32_0 = arith.constant 0 : i32
    return %arg0, %c0_i32 : i32, i32
  }
  func.func @transform_3(%arg0: i32) -> (i32, i32) {
    %c0_i32 = arith.constant 0 : i32
    %c0_i32_0 = arith.constant 0 : i32
    %c0_i32_1 = arith.constant 0 : i32
    return %c0_i32, %c0_i32_0 : i32, i32
  }
  func.func @transform_4(%arg0: i32) -> (i32, i32) {
    %c0_i32 = arith.constant 0 : i32
    %c0_i32_0 = arith.constant 0 : i32
    %c0_i32_1 = arith.constant 0 : i32
    return %c0_i32, %c0_i32_0 : i32, i32
  }
  func.func @transform_5(%arg0: i32) -> (i32, i32) {
    %c0_i32 = arith.constant 0 : i32
    %c0_i32_0 = arith.constant 0 : i32
    return %arg0, %c0_i32 : i32, i32
  }
}

module attributes {stable_mosaic.version = 11 : i64} {
  func.func @kernel(%arg0: i32, %arg1: memref<2x64xf32, #tpu.memory_space<vmem>>, %arg2: memref<2x64xf32, #tpu.memory_space<vmem>>, %arg3: memref<2x64xf32, #tpu.memory_space<vmem>>, %arg4: memref<64x64xf32, #tpu.memory_space<vmem>>, %arg5: memref<1x64xf32, #tpu.memory_space<vmem>>, %arg6: memref<2x64xf32, #tpu.memory_space<vmem>>) attributes {dimension_semantics = [#tpu.dimension_semantics<parallel>], iteration_bounds = array<i64: 1>, scalar_prefetch = 0 : i64, scratch_operands = 0 : i64, tpu.core_type = #tpu.core_type<tc>, window_params = [{transform_indices = @transform_0, window_bounds = array<i64: 2, 64>}, {transform_indices = @transform_1, window_bounds = array<i64: 2, 64>}, {transform_indices = @transform_2, window_bounds = array<i64: 2, 64>}, {pipeline_mode = #tpu.pipeline_mode<synchronous>, transform_indices = @transform_3, window_bounds = array<i64: 64, 64>}, {pipeline_mode = #tpu.pipeline_mode<synchronous>, transform_indices = @transform_4, window_bounds = array<i64: 1, 64>}, {transform_indices = @transform_5, window_bounds = array<i64: 2, 64>}]} {
    %c0 = arith.constant 0 : index
    %c0_0 = arith.constant 0 : index
    %0 = vector.load %arg1[%c0, %c0_0] : memref<2x64xf32, #tpu.memory_space<vmem>>, vector<2x64xf32>
    %c0_1 = arith.constant 0 : index
    %c0_2 = arith.constant 0 : index
    %1 = vector.load %arg2[%c0_1, %c0_2] : memref<2x64xf32, #tpu.memory_space<vmem>>, vector<2x64xf32>
    %2 = arith.addf %0, %1 : vector<2x64xf32>
    %c0_3 = arith.constant 0 : index
    %c0_4 = arith.constant 0 : index
    %3 = vector.load %arg3[%c0_3, %c0_4] : memref<2x64xf32, #tpu.memory_space<vmem>>, vector<2x64xf32>
    %4 = arith.addf %2, %3 : vector<2x64xf32>
    %c0_5 = arith.constant 0 : index
    %c0_6 = arith.constant 0 : index
    %5 = vector.load %arg4[%c0_5, %c0_6] : memref<64x64xf32, #tpu.memory_space<vmem>>, vector<64x64xf32>
    %cst = arith.constant dense<0.000000e+00> : vector<2x64xf32>
    %6 = tpu.matmul %4, %5, %cst {dimension_numbers = #tpu.dot_dimension_numbers<[1], [0], [0], [1], [0, 0, 1, 1], [], []>} : vector<2x64xf32>, vector<64x64xf32>, vector<2x64xf32> -> vector<2x64xf32>
    %c0_7 = arith.constant 0 : index
    %c0_8 = arith.constant 0 : index
    %7 = vector.load %arg5[%c0_7, %c0_8] : memref<1x64xf32, #tpu.memory_space<vmem>>, vector<1x64xf32>
    %8 = vector.broadcast %7 : vector<1x64xf32> to vector<2x64xf32>
    %9 = arith.addf %6, %8 : vector<2x64xf32>
    %cst_9 = arith.constant 0.000000e+00 : f32
    %10 = vector.broadcast %cst_9 : f32 to vector<2x64xf32>
    %11 = arith.maximumf %9, %10 : vector<2x64xf32>
    %c0_10 = arith.constant 0 : index
    %c0_11 = arith.constant 0 : index
    %12 = vector.load %arg6[%c0_10, %c0_11] : memref<2x64xf32, #tpu.memory_space<vmem>>, vector<2x64xf32>
    tpu.vector_store %arg6[%c0_10, %c0_11], %11 {strides = array<i32>} : memref<2x64xf32, #tpu.memory_space<vmem>>, vector<2x64xf32>,
    return
  }
  func.func @transform_0(%arg0: i32) -> (i32, i32) {
    %c0_i32 = arith.constant 0 : i32
    %c0_i32_0 = arith.constant 0 : i32
    return %arg0, %c0_i32 : i32, i32
  }
  func.func @transform_1(%arg0: i32) -> (i32, i32) {
    %c0_i32 = arith.constant 0 : i32
    %c0_i32_0 = arith.constant 0 : i32
    return %arg0, %c0_i32 : i32, i32
  }
  func.func @transform_2(%arg0: i32) -> (i32, i32) {
    %c0_i32 = arith.constant 0 : i32
    %c0_i32_0 = arith.constant 0 : i32
    return %arg0, %c0_i32 : i32, i32
  }
  func.func @transform_3(%arg0: i32) -> (i32, i32) {
    %c0_i32 = arith.constant 0 : i32
    %c0_i32_0 = arith.constant 0 : i32
    %c0_i32_1 = arith.constant 0 : i32
    return %c0_i32, %c0_i32_0 : i32, i32
  }
  func.func @transform_4(%arg0: i32) -> (i32, i32) {
    %c0_i32 = arith.constant 0 : i32
    %c0_i32_0 = arith.constant 0 : i32
    %c0_i32_1 = arith.constant 0 : i32
    return %c0_i32, %c0_i32_0 : i32, i32
  }
  func.func @transform_5(%arg0: i32) -> (i32, i32) {
    %c0_i32 = arith.constant 0 : i32
    %c0_i32_0 = arith.constant 0 : i32
    return %arg0, %c0_i32 : i32, i32
  }
}

module attributes {stable_mosaic.version = 11 : i64} {
  func.func @_head_kernel(%arg0: i32, %arg1: memref<2x64xf32, #tpu.memory_space<vmem>>, %arg2: memref<64x64xf32, #tpu.memory_space<vmem>>, %arg3: memref<1x64xf32, #tpu.memory_space<vmem>>, %arg4: memref<64x20xf32, #tpu.memory_space<vmem>>, %arg5: memref<1x20xf32, #tpu.memory_space<vmem>>, %arg6: memref<2x20xf32, #tpu.memory_space<vmem>>) attributes {dimension_semantics = [#tpu.dimension_semantics<parallel>], iteration_bounds = array<i64: 1>, scalar_prefetch = 0 : i64, scratch_operands = 0 : i64, tpu.core_type = #tpu.core_type<tc>, window_params = [{transform_indices = @transform_0, window_bounds = array<i64: 2, 64>}, {pipeline_mode = #tpu.pipeline_mode<synchronous>, transform_indices = @transform_1, window_bounds = array<i64: 64, 64>}, {pipeline_mode = #tpu.pipeline_mode<synchronous>, transform_indices = @transform_2, window_bounds = array<i64: 1, 64>}, {pipeline_mode = #tpu.pipeline_mode<synchronous>, transform_indices = @transform_3, window_bounds = array<i64: 64, 20>}, {pipeline_mode = #tpu.pipeline_mode<synchronous>, transform_indices = @transform_4, window_bounds = array<i64: 1, 20>}, {transform_indices = @transform_5, window_bounds = array<i64: 2, 20>}]} {
    %c0 = arith.constant 0 : index
    %c0_0 = arith.constant 0 : index
    %0 = vector.load %arg1[%c0, %c0_0] : memref<2x64xf32, #tpu.memory_space<vmem>>, vector<2x64xf32>
    %c0_1 = arith.constant 0 : index
    %c0_2 = arith.constant 0 : index
    %1 = vector.load %arg2[%c0_1, %c0_2] : memref<64x64xf32, #tpu.memory_space<vmem>>, vector<64x64xf32>
    %cst = arith.constant dense<0.000000e+00> : vector<2x64xf32>
    %2 = tpu.matmul %0, %1, %cst {dimension_numbers = #tpu.dot_dimension_numbers<[1], [0], [0], [1], [0, 0, 1, 1], [], []>} : vector<2x64xf32>, vector<64x64xf32>, vector<2x64xf32> -> vector<2x64xf32>
    %c0_3 = arith.constant 0 : index
    %c0_4 = arith.constant 0 : index
    %3 = vector.load %arg3[%c0_3, %c0_4] : memref<1x64xf32, #tpu.memory_space<vmem>>, vector<1x64xf32>
    %4 = vector.broadcast %3 : vector<1x64xf32> to vector<2x64xf32>
    %5 = arith.addf %2, %4 : vector<2x64xf32>
    %cst_5 = arith.constant 0.000000e+00 : f32
    %6 = vector.broadcast %cst_5 : f32 to vector<2x64xf32>
    %7 = arith.maximumf %5, %6 : vector<2x64xf32>
    %c0_6 = arith.constant 0 : index
    %c0_7 = arith.constant 0 : index
    %8 = vector.load %arg4[%c0_6, %c0_7] : memref<64x20xf32, #tpu.memory_space<vmem>>, vector<64x20xf32>
    %cst_8 = arith.constant dense<0.000000e+00> : vector<2x20xf32>
    %9 = tpu.matmul %7, %8, %cst_8 {dimension_numbers = #tpu.dot_dimension_numbers<[1], [0], [0], [1], [0, 0, 1, 1], [], []>} : vector<2x64xf32>, vector<64x20xf32>, vector<2x20xf32> -> vector<2x20xf32>
    %c0_9 = arith.constant 0 : index
    %c0_10 = arith.constant 0 : index
    %10 = vector.load %arg5[%c0_9, %c0_10] : memref<1x20xf32, #tpu.memory_space<vmem>>, vector<1x20xf32>
    %11 = vector.broadcast %10 : vector<1x20xf32> to vector<2x20xf32>
    %12 = arith.addf %9, %11 : vector<2x20xf32>
    %c0_11 = arith.constant 0 : index
    %c0_12 = arith.constant 0 : index
    %13 = vector.load %arg6[%c0_11, %c0_12] : memref<2x20xf32, #tpu.memory_space<vmem>>, vector<2x20xf32>
    tpu.vector_store %arg6[%c0_11, %c0_12], %12 {strides = array<i32>} : memref<2x20xf32, #tpu.memory_space<vmem>>, vector<2x20xf32>,
    return
  }
  func.func @transform_0(%arg0: i32) -> (i32, i32) {
    %c0_i32 = arith.constant 0 : i32
    %c0_i32_0 = arith.constant 0 : i32
    return %arg0, %c0_i32 : i32, i32
  }
  func.func @transform_1(%arg0: i32) -> (i32, i32) {
    %c0_i32 = arith.constant 0 : i32
    %c0_i32_0 = arith.constant 0 : i32
    %c0_i32_1 = arith.constant 0 : i32
    return %c0_i32, %c0_i32_0 : i32, i32
  }
  func.func @transform_2(%arg0: i32) -> (i32, i32) {
    %c0_i32 = arith.constant 0 : i32
    %c0_i32_0 = arith.constant 0 : i32
    %c0_i32_1 = arith.constant 0 : i32
    return %c0_i32, %c0_i32_0 : i32, i32
  }
  func.func @transform_3(%arg0: i32) -> (i32, i32) {
    %c0_i32 = arith.constant 0 : i32
    %c0_i32_0 = arith.constant 0 : i32
    %c0_i32_1 = arith.constant 0 : i32
    return %c0_i32, %c0_i32_0 : i32, i32
  }
  func.func @transform_4(%arg0: i32) -> (i32, i32) {
    %c0_i32 = arith.constant 0 : i32
    %c0_i32_0 = arith.constant 0 : i32
    %c0_i32_1 = arith.constant 0 : i32
    return %c0_i32, %c0_i32_0 : i32, i32
  }
  func.func @transform_5(%arg0: i32) -> (i32, i32) {
    %c0_i32 = arith.constant 0 : i32
    %c0_i32_0 = arith.constant 0 : i32
    return %arg0, %c0_i32 : i32, i32
  }
}

module attributes {stable_mosaic.version = 11 : i64} {
  func.func @_head_kernel(%arg0: i32, %arg1: memref<8x64xf32, #tpu.memory_space<vmem>>, %arg2: memref<64x64xf32, #tpu.memory_space<vmem>>, %arg3: memref<1x64xf32, #tpu.memory_space<vmem>>, %arg4: memref<64x20xf32, #tpu.memory_space<vmem>>, %arg5: memref<1x20xf32, #tpu.memory_space<vmem>>, %arg6: memref<8x20xf32, #tpu.memory_space<vmem>>) attributes {dimension_semantics = [#tpu.dimension_semantics<parallel>], iteration_bounds = array<i64: 1>, scalar_prefetch = 0 : i64, scratch_operands = 0 : i64, tpu.core_type = #tpu.core_type<tc>, window_params = [{transform_indices = @transform_0, window_bounds = array<i64: 8, 64>}, {pipeline_mode = #tpu.pipeline_mode<synchronous>, transform_indices = @transform_1, window_bounds = array<i64: 64, 64>}, {pipeline_mode = #tpu.pipeline_mode<synchronous>, transform_indices = @transform_2, window_bounds = array<i64: 1, 64>}, {pipeline_mode = #tpu.pipeline_mode<synchronous>, transform_indices = @transform_3, window_bounds = array<i64: 64, 20>}, {pipeline_mode = #tpu.pipeline_mode<synchronous>, transform_indices = @transform_4, window_bounds = array<i64: 1, 20>}, {transform_indices = @transform_5, window_bounds = array<i64: 8, 20>}]} {
    %c0 = arith.constant 0 : index
    %c0_0 = arith.constant 0 : index
    %0 = vector.load %arg1[%c0, %c0_0] : memref<8x64xf32, #tpu.memory_space<vmem>>, vector<8x64xf32>
    %c0_1 = arith.constant 0 : index
    %c0_2 = arith.constant 0 : index
    %1 = vector.load %arg2[%c0_1, %c0_2] : memref<64x64xf32, #tpu.memory_space<vmem>>, vector<64x64xf32>
    %cst = arith.constant dense<0.000000e+00> : vector<8x64xf32>
    %2 = tpu.matmul %0, %1, %cst {dimension_numbers = #tpu.dot_dimension_numbers<[1], [0], [0], [1], [0, 0, 1, 1], [], []>} : vector<8x64xf32>, vector<64x64xf32>, vector<8x64xf32> -> vector<8x64xf32>
    %c0_3 = arith.constant 0 : index
    %c0_4 = arith.constant 0 : index
    %3 = vector.load %arg3[%c0_3, %c0_4] : memref<1x64xf32, #tpu.memory_space<vmem>>, vector<1x64xf32>
    %4 = vector.broadcast %3 : vector<1x64xf32> to vector<8x64xf32>
    %5 = arith.addf %2, %4 : vector<8x64xf32>
    %cst_5 = arith.constant 0.000000e+00 : f32
    %6 = vector.broadcast %cst_5 : f32 to vector<8x64xf32>
    %7 = arith.maximumf %5, %6 : vector<8x64xf32>
    %c0_6 = arith.constant 0 : index
    %c0_7 = arith.constant 0 : index
    %8 = vector.load %arg4[%c0_6, %c0_7] : memref<64x20xf32, #tpu.memory_space<vmem>>, vector<64x20xf32>
    %cst_8 = arith.constant dense<0.000000e+00> : vector<8x20xf32>
    %9 = tpu.matmul %7, %8, %cst_8 {dimension_numbers = #tpu.dot_dimension_numbers<[1], [0], [0], [1], [0, 0, 1, 1], [], []>} : vector<8x64xf32>, vector<64x20xf32>, vector<8x20xf32> -> vector<8x20xf32>
    %c0_9 = arith.constant 0 : index
    %c0_10 = arith.constant 0 : index
    %10 = vector.load %arg5[%c0_9, %c0_10] : memref<1x20xf32, #tpu.memory_space<vmem>>, vector<1x20xf32>
    %11 = vector.broadcast %10 : vector<1x20xf32> to vector<8x20xf32>
    %12 = arith.addf %9, %11 : vector<8x20xf32>
    %c0_11 = arith.constant 0 : index
    %c0_12 = arith.constant 0 : index
    %13 = vector.load %arg6[%c0_11, %c0_12] : memref<8x20xf32, #tpu.memory_space<vmem>>, vector<8x20xf32>
    tpu.vector_store %arg6[%c0_11, %c0_12], %12 {strides = array<i32>} : memref<8x20xf32, #tpu.memory_space<vmem>>, vector<8x20xf32>,
    return
  }
  func.func @transform_0(%arg0: i32) -> (i32, i32) {
    %c0_i32 = arith.constant 0 : i32
    %c0_i32_0 = arith.constant 0 : i32
    return %arg0, %c0_i32 : i32, i32
  }
  func.func @transform_1(%arg0: i32) -> (i32, i32) {
    %c0_i32 = arith.constant 0 : i32
    %c0_i32_0 = arith.constant 0 : i32
    %c0_i32_1 = arith.constant 0 : i32
    return %c0_i32, %c0_i32_0 : i32, i32
  }
  func.func @transform_2(%arg0: i32) -> (i32, i32) {
    %c0_i32 = arith.constant 0 : i32
    %c0_i32_0 = arith.constant 0 : i32
    %c0_i32_1 = arith.constant 0 : i32
    return %c0_i32, %c0_i32_0 : i32, i32
  }
  func.func @transform_3(%arg0: i32) -> (i32, i32) {
    %c0_i32 = arith.constant 0 : i32
    %c0_i32_0 = arith.constant 0 : i32
    %c0_i32_1 = arith.constant 0 : i32
    return %c0_i32, %c0_i32_0 : i32, i32
  }
  func.func @transform_4(%arg0: i32) -> (i32, i32) {
    %c0_i32 = arith.constant 0 : i32
    %c0_i32_0 = arith.constant 0 : i32
    %c0_i32_1 = arith.constant 0 : i32
    return %c0_i32, %c0_i32_0 : i32, i32
  }
  func.func @transform_5(%arg0: i32) -> (i32, i32) {
    %c0_i32 = arith.constant 0 : i32
    %c0_i32_0 = arith.constant 0 : i32
    return %arg0, %c0_i32 : i32, i32
  }
}

module attributes {stable_mosaic.version = 11 : i64} {
  func.func @_head_kernel(%arg0: i32, %arg1: memref<32x64xf32, #tpu.memory_space<vmem>>, %arg2: memref<64x64xf32, #tpu.memory_space<vmem>>, %arg3: memref<1x64xf32, #tpu.memory_space<vmem>>, %arg4: memref<64x20xf32, #tpu.memory_space<vmem>>, %arg5: memref<1x20xf32, #tpu.memory_space<vmem>>, %arg6: memref<32x20xf32, #tpu.memory_space<vmem>>) attributes {dimension_semantics = [#tpu.dimension_semantics<parallel>], iteration_bounds = array<i64: 1>, scalar_prefetch = 0 : i64, scratch_operands = 0 : i64, tpu.core_type = #tpu.core_type<tc>, window_params = [{transform_indices = @transform_0, window_bounds = array<i64: 32, 64>}, {pipeline_mode = #tpu.pipeline_mode<synchronous>, transform_indices = @transform_1, window_bounds = array<i64: 64, 64>}, {pipeline_mode = #tpu.pipeline_mode<synchronous>, transform_indices = @transform_2, window_bounds = array<i64: 1, 64>}, {pipeline_mode = #tpu.pipeline_mode<synchronous>, transform_indices = @transform_3, window_bounds = array<i64: 64, 20>}, {pipeline_mode = #tpu.pipeline_mode<synchronous>, transform_indices = @transform_4, window_bounds = array<i64: 1, 20>}, {transform_indices = @transform_5, window_bounds = array<i64: 32, 20>}]} {
    %c0 = arith.constant 0 : index
    %c0_0 = arith.constant 0 : index
    %0 = vector.load %arg1[%c0, %c0_0] : memref<32x64xf32, #tpu.memory_space<vmem>>, vector<32x64xf32>
    %c0_1 = arith.constant 0 : index
    %c0_2 = arith.constant 0 : index
    %1 = vector.load %arg2[%c0_1, %c0_2] : memref<64x64xf32, #tpu.memory_space<vmem>>, vector<64x64xf32>
    %cst = arith.constant dense<0.000000e+00> : vector<32x64xf32>
    %2 = tpu.matmul %0, %1, %cst {dimension_numbers = #tpu.dot_dimension_numbers<[1], [0], [0], [1], [0, 0, 1, 1], [], []>} : vector<32x64xf32>, vector<64x64xf32>, vector<32x64xf32> -> vector<32x64xf32>
    %c0_3 = arith.constant 0 : index
    %c0_4 = arith.constant 0 : index
    %3 = vector.load %arg3[%c0_3, %c0_4] : memref<1x64xf32, #tpu.memory_space<vmem>>, vector<1x64xf32>
    %4 = vector.broadcast %3 : vector<1x64xf32> to vector<32x64xf32>
    %5 = arith.addf %2, %4 : vector<32x64xf32>
    %cst_5 = arith.constant 0.000000e+00 : f32
    %6 = vector.broadcast %cst_5 : f32 to vector<32x64xf32>
    %7 = arith.maximumf %5, %6 : vector<32x64xf32>
    %c0_6 = arith.constant 0 : index
    %c0_7 = arith.constant 0 : index
    %8 = vector.load %arg4[%c0_6, %c0_7] : memref<64x20xf32, #tpu.memory_space<vmem>>, vector<64x20xf32>
    %cst_8 = arith.constant dense<0.000000e+00> : vector<32x20xf32>
    %9 = tpu.matmul %7, %8, %cst_8 {dimension_numbers = #tpu.dot_dimension_numbers<[1], [0], [0], [1], [0, 0, 1, 1], [], []>} : vector<32x64xf32>, vector<64x20xf32>, vector<32x20xf32> -> vector<32x20xf32>
    %c0_9 = arith.constant 0 : index
    %c0_10 = arith.constant 0 : index
    %10 = vector.load %arg5[%c0_9, %c0_10] : memref<1x20xf32, #tpu.memory_space<vmem>>, vector<1x20xf32>
    %11 = vector.broadcast %10 : vector<1x20xf32> to vector<32x20xf32>
    %12 = arith.addf %9, %11 : vector<32x20xf32>
    %c0_11 = arith.constant 0 : index
    %c0_12 = arith.constant 0 : index
    %13 = vector.load %arg6[%c0_11, %c0_12] : memref<32x20xf32, #tpu.memory_space<vmem>>, vector<32x20xf32>
    tpu.vector_store %arg6[%c0_11, %c0_12], %12 {strides = array<i32>} : memref<32x20xf32, #tpu.memory_space<vmem>>, vector<32x20xf32>,
    return
  }
  func.func @transform_0(%arg0: i32) -> (i32, i32) {
    %c0_i32 = arith.constant 0 : i32
    %c0_i32_0 = arith.constant 0 : i32
    return %arg0, %c0_i32 : i32, i32
  }
  func.func @transform_1(%arg0: i32) -> (i32, i32) {
    %c0_i32 = arith.constant 0 : i32
    %c0_i32_0 = arith.constant 0 : i32
    %c0_i32_1 = arith.constant 0 : i32
    return %c0_i32, %c0_i32_0 : i32, i32
  }
  func.func @transform_2(%arg0: i32) -> (i32, i32) {
    %c0_i32 = arith.constant 0 : i32
    %c0_i32_0 = arith.constant 0 : i32
    %c0_i32_1 = arith.constant 0 : i32
    return %c0_i32, %c0_i32_0 : i32, i32
  }
  func.func @transform_3(%arg0: i32) -> (i32, i32) {
    %c0_i32 = arith.constant 0 : i32
    %c0_i32_0 = arith.constant 0 : i32
    %c0_i32_1 = arith.constant 0 : i32
    return %c0_i32, %c0_i32_0 : i32, i32
  }
  func.func @transform_4(%arg0: i32) -> (i32, i32) {
    %c0_i32 = arith.constant 0 : i32
    %c0_i32_0 = arith.constant 0 : i32
    %c0_i32_1 = arith.constant 0 : i32
    return %c0_i32, %c0_i32_0 : i32, i32
  }
  func.func @transform_5(%arg0: i32) -> (i32, i32) {
    %c0_i32 = arith.constant 0 : i32
    %c0_i32_0 = arith.constant 0 : i32
    return %arg0, %c0_i32 : i32, i32
  }
}

</mosaic_0001>

<llo_original>
// kernel: forward.21
$region0: #{forward.21}
  #allocation0 [shape = 'u32[]', space=smem, size = 0x4, offset = 0x4, fixed_abs, tag = 'smem constant byte address 0x4 - core index']
  #allocation1 [shape = 'u32[144,128]{1,0:T(1,128)}', space=vmem, size = 0x12000, scoped, tag = 'internal scratch']
  %s0 = inlined_call_operand.vmem [shape: f32[2,64], index: 0, kind: input, shape index: {}]
  %s1 = inlined_call_operand.vmem [shape: f32[64,64], index: 1, kind: input, shape index: {}]
  %s2 = inlined_call_operand.vmem [shape: f32[1,64], index: 2, kind: input, shape index: {}]
  %s3 = inlined_call_operand.vmem [shape: f32[2,64], index: 3, kind: output, shape index: {}]
  %s4 = sld [smem:[#allocation0]]
  $region22: #{forward.21} parent=0
    _
  %s6 = ssub.s32 1, %s4
  %s7 = scalar_select 0, %s6, %s4
  // Predicated region
  $region2: #{forward.21} parent=0 // pred_check
    _
  $region3: #{forward.21} parent=0 // pred_check_branch
    %9 = sbr.rel (0) target = $region5
  $region4: #{forward.21} parent=0 // pred_region
    _
  $region5: #{forward.21} parent=0 // pred_fallthru
    _
  // Predicated region
  $region6: #{forward.21} parent=0 // pred_check
    _
  $region7: #{forward.21} parent=0 // pred_check_branch
    %11 = sbr.rel (0) target = $region9
  $region8: #{forward.21} parent=0 // pred_region
    _
  $region9: #{forward.21} parent=0 // pred_fallthru
    _
  // Predicated region
  $region10: #{forward.21} parent=0 // pred_check
    _
  $region11: #{forward.21} parent=0 // pred_check_branch
    %13 = sbr.rel (0) target = $region13
  $region12: #{forward.21} parent=0 // pred_region
    _
  $region13: #{forward.21} parent=0 // pred_fallthru
    _
  %v14 = vld [vmem:[%s0] sm:$0x3]
  %v15 = vld [vmem:[%s1] sm:$0xff]
  %v16 = vld [vmem:[%s1 + $0x8] sm:$0xff]
  %v17 = vld [vmem:[%s1 + $0x10] sm:$0xff]
  %v18 = vld [vmem:[%s1 + $0x18] sm:$0xff]
  %v19 = vld [vmem:[%s1 + $0x20] sm:$0xff]
  %v20 = vld [vmem:[%s1 + $0x28] sm:$0xff]
  %v21 = vld [vmem:[%s1 + $0x30] sm:$0xff]
  %v22 = vld [vmem:[%s1 + $0x38] sm:$0xff]
  %v23 = vld [vmem:[%s2] sm:$0x1]
  %v25 = vlaneseq
  %v26 = vshrl.u32 %v25, 7
  %v27 = vsub.s32 0, %v26
  %v28 = vrot.slane %v23, %v27
  %vm30 = vcmask 523264
  %v32 = vsel %vm30, %v14, 0
  %34 = vmatprep.subr.mxu0 0.0
  %35 = vmatpush1.msra.mxu0 %v15
  %36 = vmatprep.subr.mxu0 0.0
  %37 = vmatpush1.msra.mxu0 %v16
  %38 = vmatprep.subr.mxu0 0.0
  %39 = vmatpush1.msra.mxu0 %v17
  %40 = vmatprep.subr.mxu0 0.0
  %41 = vmatpush1.msra.mxu0 %v18
  %42 = vmatprep.subr.mxu0 0.0
  %43 = vmatpush1.msra.mxu0 %v19
  %44 = vmatprep.subr.mxu0 0.0
  %45 = vmatpush1.msra.mxu0 %v20
  %46 = vmatprep.subr.mxu0 0.0
  %47 = vmatpush1.msra.mxu0 %v21
  %48 = vmatprep.subr.mxu0 0.0
  %49 = vmatpush1.msra.mxu0 %v22
  %50 = vmatprep.subr.mxu0 0.0
  %51 = vmatpush1.msra.mxu0 0.0
  %52 = vmatprep.subr.mxu0 0.0
  %53 = vmatpush1.msra.mxu0 0.0
  %54 = vmatprep.subr.mxu0 0.0
  %55 = vmatpush1.msra.mxu0 0.0
  %56 = vmatprep.subr.mxu0 0.0
  %57 = vmatpush1.msra.mxu0 0.0
  %58 = vmatprep.subr.mxu0 0.0
  %59 = vmatpush1.msra.mxu0 0.0
  %60 = vmatprep.subr.mxu0 0.0
  %61 = vmatpush1.msra.mxu0 0.0
  %62 = vmatprep.subr.mxu0 0.0
  %63 = vmatpush1.msra.mxu0 0.0
  %64 = vmatprep.subr.mxu0 0.0
  %65 = vmatpush1.msra.mxu0 0.0
  %66 = vmatprep.subr.mxu0 0.0
  %67 = vmatpush1.msra.mxu0 0.0
  %68 = vmatprep.subr.mxu0 0.0
  %69 = vmatpush1.msra.mxu0 0.0
  %70 = vmatprep.subr.mxu0 0.0
  %71 = vmatpush1.msra.mxu0 0.0
  %72 = vmatprep.subr.mxu0 0.0
  %73 = vmatpush1.msra.mxu0 0.0
  %74 = vmatprep.subr.mxu0 0.0
  %75 = vmatpush1.msra.mxu0 0.0
  %76 = vmatprep.subr.mxu0 0.0
  %77 = vmatpush1.msra.mxu0 0.0
  %78 = vmatprep.subr.mxu0 0.0
  %79 = vmatpush1.msra.mxu0 0.0
  %80 = vmatprep.subr.mxu0 0.0
  %81 = vmatpush1.msra.mxu0 0.0
  %82 = vmatprep.subr.mxu0 0.0
  %83 = vmatpush1.msra.mxu0 0.0
  %84 = vmatprep.subr.mxu0 0.0
  %85 = vmatpush1.msra.mxu0 0.0
  %86 = vmatprep.subr.mxu0 0.0
  %87 = vmatpush1.msra.mxu0 0.0
  %88 = vmatprep.subr.mxu0 0.0
  %89 = vmatpush1.msra.mxu0 0.0
  %90 = vmatprep.subr.mxu0 0.0
  %91 = vmatpush1.msra.mxu0 0.0
  %92 = vmatprep.subr.mxu0 0.0
  %93 = vmatpush1.msra.mxu0 0.0
  %94 = vmatprep.subr.mxu0 0.0
  %95 = vmatpush1.msra.mxu0 0.0
  %96 = vmatprep.subr.mxu0 0.0
  %97 = vmatpush1.msra.mxu0 0.0
  %98 = vmatprep.mubr.f32.mxu0 0.0
  %99 = vmatmul.mubr.f32.gmra.mrb[0].mxu0 %v32
  %v100 = vpop.f32.mrb[0].mxu0
  %v101 = vadd.f32 %v28, %v100
  %v102 = vpop.f32.mrb[0].mxu0
  %103 = vdwg.mxu0
  %vm104 = vcmask 517120
  %105 = vst.msk [vmem:[%s3] sm:$0x3] %vm104, %v101
  // Predicated region
  $region14: #{forward.21} parent=0 // pred_check
    _
  $region15: #{forward.21} parent=0 // pred_check_branch
    %107 = sbr.rel (0) target = $region17
  $region16: #{forward.21} parent=0 // pred_region
    _
  $region17: #{forward.21} parent=0 // pred_fallthru
    _
  // Predicated region
  $region18: #{forward.21} parent=0 // pred_check
    _
  $region19: #{forward.21} parent=0 // pred_check_branch
    %109 = sbr.rel (0) target = $region21
  $region20: #{forward.21} parent=0 // pred_region
    _
  $region21: #{forward.21} parent=0 // pred_fallthru
    _

// kernel: forward.22
$region0: #{forward.22}
  #allocation0 [shape = 'u32[]', space=smem, size = 0x4, offset = 0x4, fixed_abs, tag = 'smem constant byte address 0x4 - core index']
  #allocation1 [shape = 'u32[144,128]{1,0:T(1,128)}', space=vmem, size = 0x12000, scoped, tag = 'internal scratch']
  %s0 = inlined_call_operand.vmem [shape: f32[2,64], index: 0, kind: input, shape index: {}]
  %s1 = inlined_call_operand.vmem [shape: f32[64,64], index: 1, kind: input, shape index: {}]
  %s2 = inlined_call_operand.vmem [shape: f32[1,64], index: 2, kind: input, shape index: {}]
  %s3 = inlined_call_operand.vmem [shape: f32[2,64], index: 3, kind: output, shape index: {}]
  %s4 = sld [smem:[#allocation0]]
  $region22: #{forward.22} parent=0
    _
  %s6 = ssub.s32 1, %s4
  %s7 = scalar_select 0, %s6, %s4
  // Predicated region
  $region2: #{forward.22} parent=0 // pred_check
    _
  $region3: #{forward.22} parent=0 // pred_check_branch
    %9 = sbr.rel (0) target = $region5
  $region4: #{forward.22} parent=0 // pred_region
    _
  $region5: #{forward.22} parent=0 // pred_fallthru
    _
  // Predicated region
  $region6: #{forward.22} parent=0 // pred_check
    _
  $region7: #{forward.22} parent=0 // pred_check_branch
    %11 = sbr.rel (0) target = $region9
  $region8: #{forward.22} parent=0 // pred_region
    _
  $region9: #{forward.22} parent=0 // pred_fallthru
    _
  // Predicated region
  $region10: #{forward.22} parent=0 // pred_check
    _
  $region11: #{forward.22} parent=0 // pred_check_branch
    %13 = sbr.rel (0) target = $region13
  $region12: #{forward.22} parent=0 // pred_region
    _
  $region13: #{forward.22} parent=0 // pred_fallthru
    _
  %v14 = vld [vmem:[%s0] sm:$0x3]
  %v15 = vld [vmem:[%s1] sm:$0xff]
  %v16 = vld [vmem:[%s1 + $0x8] sm:$0xff]
  %v17 = vld [vmem:[%s1 + $0x10] sm:$0xff]
  %v18 = vld [vmem:[%s1 + $0x18] sm:$0xff]
  %v19 = vld [vmem:[%s1 + $0x20] sm:$0xff]
  %v20 = vld [vmem:[%s1 + $0x28] sm:$0xff]
  %v21 = vld [vmem:[%s1 + $0x30] sm:$0xff]
  %v22 = vld [vmem:[%s1 + $0x38] sm:$0xff]
  %v23 = vld [vmem:[%s2] sm:$0x1]
  %v25 = vlaneseq
  %v26 = vshrl.u32 %v25, 7
  %v27 = vsub.s32 0, %v26
  %v28 = vrot.slane %v23, %v27
  %vm30 = vcmask 523264
  %v32 = vsel %vm30, %v14, 0
  %34 = vmatprep.subr.mxu0 0.0
  %35 = vmatpush1.msra.mxu0 %v15
  %36 = vmatprep.subr.mxu0 0.0
  %37 = vmatpush1.msra.mxu0 %v16
  %38 = vmatprep.subr.mxu0 0.0
  %39 = vmatpush1.msra.mxu0 %v17
  %40 = vmatprep.subr.mxu0 0.0
  %41 = vmatpush1.msra.mxu0 %v18
  %42 = vmatprep.subr.mxu0 0.0
  %43 = vmatpush1.msra.mxu0 %v19
  %44 = vmatprep.subr.mxu0 0.0
  %45 = vmatpush1.msra.mxu0 %v20
  %46 = vmatprep.subr.mxu0 0.0
  %47 = vmatpush1.msra.mxu0 %v21
  %48 = vmatprep.subr.mxu0 0.0
  %49 = vmatpush1.msra.mxu0 %v22
  %50 = vmatprep.subr.mxu0 0.0
  %51 = vmatpush1.msra.mxu0 0.0
  %52 = vmatprep.subr.mxu0 0.0
  %53 = vmatpush1.msra.mxu0 0.0
  %54 = vmatprep.subr.mxu0 0.0
  %55 = vmatpush1.msra.mxu0 0.0
  %56 = vmatprep.subr.mxu0 0.0
  %57 = vmatpush1.msra.mxu0 0.0
  %58 = vmatprep.subr.mxu0 0.0
  %59 = vmatpush1.msra.mxu0 0.0
  %60 = vmatprep.subr.mxu0 0.0
  %61 = vmatpush1.msra.mxu0 0.0
  %62 = vmatprep.subr.mxu0 0.0
  %63 = vmatpush1.msra.mxu0 0.0
  %64 = vmatprep.subr.mxu0 0.0
  %65 = vmatpush1.msra.mxu0 0.0
  %66 = vmatprep.subr.mxu0 0.0
  %67 = vmatpush1.msra.mxu0 0.0
  %68 = vmatprep.subr.mxu0 0.0
  %69 = vmatpush1.msra.mxu0 0.0
  %70 = vmatprep.subr.mxu0 0.0
  %71 = vmatpush1.msra.mxu0 0.0
  %72 = vmatprep.subr.mxu0 0.0
  %73 = vmatpush1.msra.mxu0 0.0
  %74 = vmatprep.subr.mxu0 0.0
  %75 = vmatpush1.msra.mxu0 0.0
  %76 = vmatprep.subr.mxu0 0.0
  %77 = vmatpush1.msra.mxu0 0.0
  %78 = vmatprep.subr.mxu0 0.0
  %79 = vmatpush1.msra.mxu0 0.0
  %80 = vmatprep.subr.mxu0 0.0
  %81 = vmatpush1.msra.mxu0 0.0
  %82 = vmatprep.subr.mxu0 0.0
  %83 = vmatpush1.msra.mxu0 0.0
  %84 = vmatprep.subr.mxu0 0.0
  %85 = vmatpush1.msra.mxu0 0.0
  %86 = vmatprep.subr.mxu0 0.0
  %87 = vmatpush1.msra.mxu0 0.0
  %88 = vmatprep.subr.mxu0 0.0
  %89 = vmatpush1.msra.mxu0 0.0
  %90 = vmatprep.subr.mxu0 0.0
  %91 = vmatpush1.msra.mxu0 0.0
  %92 = vmatprep.subr.mxu0 0.0
  %93 = vmatpush1.msra.mxu0 0.0
  %94 = vmatprep.subr.mxu0 0.0
  %95 = vmatpush1.msra.mxu0 0.0
  %96 = vmatprep.subr.mxu0 0.0
  %97 = vmatpush1.msra.mxu0 0.0
  %98 = vmatprep.mubr.f32.mxu0 0.0
  %99 = vmatmul.mubr.f32.gmra.mrb[0].mxu0 %v32
  %v100 = vpop.f32.mrb[0].mxu0
  %v101 = vadd.f32 %v28, %v100
  %v102 = vpop.f32.mrb[0].mxu0
  %103 = vdwg.mxu0
  %v104 = vmax.f32 %v101, 0.0
  %vm105 = vcmask 517120
  %106 = vst.msk [vmem:[%s3] sm:$0x3] %vm105, %v104
  // Predicated region
  $region14: #{forward.22} parent=0 // pred_check
    _
  $region15: #{forward.22} parent=0 // pred_check_branch
    %108 = sbr.rel (0) target = $region17
  $region16: #{forward.22} parent=0 // pred_region
    _
  $region17: #{forward.22} parent=0 // pred_fallthru
    _
  // Predicated region
  $region18: #{forward.22} parent=0 // pred_check
    _
  $region19: #{forward.22} parent=0 // pred_check_branch
    %110 = sbr.rel (0) target = $region21
  $region20: #{forward.22} parent=0 // pred_region
    _
  $region21: #{forward.22} parent=0 // pred_fallthru
    _

// kernel: forward.20
$region0: #{forward.20}
  #allocation0 [shape = 'u32[]', space=smem, size = 0x4, offset = 0x4, fixed_abs, tag = 'smem constant byte address 0x4 - core index']
  #allocation1 [shape = 'u32[144,128]{1,0:T(1,128)}', space=vmem, size = 0x12000, scoped, tag = 'internal scratch']
  %s0 = inlined_call_operand.vmem [shape: f32[8,64], index: 0, kind: input, shape index: {}]
  %s1 = inlined_call_operand.vmem [shape: f32[64,64], index: 1, kind: input, shape index: {}]
  %s2 = inlined_call_operand.vmem [shape: f32[1,64], index: 2, kind: input, shape index: {}]
  %s3 = inlined_call_operand.vmem [shape: f32[8,64], index: 3, kind: output, shape index: {}]
  %s4 = sld [smem:[#allocation0]]
  $region22: #{forward.20} parent=0
    _
  %s6 = ssub.s32 1, %s4
  %s7 = scalar_select 0, %s6, %s4
  // Predicated region
  $region2: #{forward.20} parent=0 // pred_check
    _
  $region3: #{forward.20} parent=0 // pred_check_branch
    %9 = sbr.rel (0) target = $region5
  $region4: #{forward.20} parent=0 // pred_region
    _
  $region5: #{forward.20} parent=0 // pred_fallthru
    _
  // Predicated region
  $region6: #{forward.20} parent=0 // pred_check
    _
  $region7: #{forward.20} parent=0 // pred_check_branch
    %11 = sbr.rel (0) target = $region9
  $region8: #{forward.20} parent=0 // pred_region
    _
  $region9: #{forward.20} parent=0 // pred_fallthru
    _
  // Predicated region
  $region10: #{forward.20} parent=0 // pred_check
    _
  $region11: #{forward.20} parent=0 // pred_check_branch
    %13 = sbr.rel (0) target = $region13
  $region12: #{forward.20} parent=0 // pred_region
    _
  $region13: #{forward.20} parent=0 // pred_fallthru
    _
  %v14 = vld [vmem:[%s0] sm:$0xff]
  %v15 = vld [vmem:[%s1] sm:$0xff]
  %v16 = vld [vmem:[%s1 + $0x8] sm:$0xff]
  %v17 = vld [vmem:[%s1 + $0x10] sm:$0xff]
  %v18 = vld [vmem:[%s1 + $0x18] sm:$0xff]
  %v19 = vld [vmem:[%s1 + $0x20] sm:$0xff]
  %v20 = vld [vmem:[%s1 + $0x28] sm:$0xff]
  %v21 = vld [vmem:[%s1 + $0x30] sm:$0xff]
  %v22 = vld [vmem:[%s1 + $0x38] sm:$0xff]
  %v23 = vld [vmem:[%s2] sm:$0x1]
  %v25 = vlaneseq
  %v26 = vshrl.u32 %v25, 7
  %v27 = vsub.s32 0, %v26
  %v28 = vrot.slane %v23, %v27
  %vm30 = vcmask 523264
  %v32 = vsel %vm30, %v14, 0
  %34 = vmatprep.subr.mxu0 0.0
  %35 = vmatpush1.msra.mxu0 %v15
  %36 = vmatprep.subr.mxu0 0.0
  %37 = vmatpush1.msra.mxu0 %v16
  %38 = vmatprep.subr.mxu0 0.0
  %39 = vmatpush1.msra.mxu0 %v17
  %40 = vmatprep.subr.mxu0 0.0
  %41 = vmatpush1.msra.mxu0 %v18
  %42 = vmatprep.subr.mxu0 0.0
  %43 = vmatpush1.msra.mxu0 %v19
  %44 = vmatprep.subr.mxu0 0.0
  %45 = vmatpush1.msra.mxu0 %v20
  %46 = vmatprep.subr.mxu0 0.0
  %47 = vmatpush1.msra.mxu0 %v21
  %48 = vmatprep.subr.mxu0 0.0
  %49 = vmatpush1.msra.mxu0 %v22
  %50 = vmatprep.subr.mxu0 0.0
  %51 = vmatpush1.msra.mxu0 0.0
  %52 = vmatprep.subr.mxu0 0.0
  %53 = vmatpush1.msra.mxu0 0.0
  %54 = vmatprep.subr.mxu0 0.0
  %55 = vmatpush1.msra.mxu0 0.0
  %56 = vmatprep.subr.mxu0 0.0
  %57 = vmatpush1.msra.mxu0 0.0
  %58 = vmatprep.subr.mxu0 0.0
  %59 = vmatpush1.msra.mxu0 0.0
  %60 = vmatprep.subr.mxu0 0.0
  %61 = vmatpush1.msra.mxu0 0.0
  %62 = vmatprep.subr.mxu0 0.0
  %63 = vmatpush1.msra.mxu0 0.0
  %64 = vmatprep.subr.mxu0 0.0
  %65 = vmatpush1.msra.mxu0 0.0
  %66 = vmatprep.subr.mxu0 0.0
  %67 = vmatpush1.msra.mxu0 0.0
  %68 = vmatprep.subr.mxu0 0.0
  %69 = vmatpush1.msra.mxu0 0.0
  %70 = vmatprep.subr.mxu0 0.0
  %71 = vmatpush1.msra.mxu0 0.0
  %72 = vmatprep.subr.mxu0 0.0
  %73 = vmatpush1.msra.mxu0 0.0
  %74 = vmatprep.subr.mxu0 0.0
  %75 = vmatpush1.msra.mxu0 0.0
  %76 = vmatprep.subr.mxu0 0.0
  %77 = vmatpush1.msra.mxu0 0.0
  %78 = vmatprep.subr.mxu0 0.0
  %79 = vmatpush1.msra.mxu0 0.0
  %80 = vmatprep.subr.mxu0 0.0
  %81 = vmatpush1.msra.mxu0 0.0
  %82 = vmatprep.subr.mxu0 0.0
  %83 = vmatpush1.msra.mxu0 0.0
  %84 = vmatprep.subr.mxu0 0.0
  %85 = vmatpush1.msra.mxu0 0.0
  %86 = vmatprep.subr.mxu0 0.0
  %87 = vmatpush1.msra.mxu0 0.0
  %88 = vmatprep.subr.mxu0 0.0
  %89 = vmatpush1.msra.mxu0 0.0
  %90 = vmatprep.subr.mxu0 0.0
  %91 = vmatpush1.msra.mxu0 0.0
  %92 = vmatprep.subr.mxu0 0.0
  %93 = vmatpush1.msra.mxu0 0.0
  %94 = vmatprep.subr.mxu0 0.0
  %95 = vmatpush1.msra.mxu0 0.0
  %96 = vmatprep.subr.mxu0 0.0
  %97 = vmatpush1.msra.mxu0 0.0
  %98 = vmatprep.mubr.f32.mxu0 0.0
  %99 = vmatmul.mubr.f32.gmra.mrb[0].mxu0 %v32
  %v100 = vpop.f32.mrb[0].mxu0
  %v101 = vadd.f32 %v28, %v100
  %v102 = vpop.f32.mrb[0].mxu0
  %103 = vdwg.mxu0
  %104 = vst.msk [vmem:[%s3] sm:$0xff] %vm30, %v101
  // Predicated region
  $region14: #{forward.20} parent=0 // pred_check
    _
  $region15: #{forward.20} parent=0 // pred_check_branch
    %106 = sbr.rel (0) target = $region17
  $region16: #{forward.20} parent=0 // pred_region
    _
  $region17: #{forward.20} parent=0 // pred_fallthru
    _
  // Predicated region
  $region18: #{forward.20} parent=0 // pred_check
    _
  $region19: #{forward.20} parent=0 // pred_check_branch
    %108 = sbr.rel (0) target = $region21
  $region20: #{forward.20} parent=0 // pred_region
    _
  $region21: #{forward.20} parent=0 // pred_fallthru
    _

// kernel: forward.23
$region0: #{forward.23}
  #allocation0 [shape = 'u32[]', space=smem, size = 0x4, offset = 0x4, fixed_abs, tag = 'smem constant byte address 0x4 - core index']
  #allocation1 [shape = 'u32[144,128]{1,0:T(1,128)}', space=vmem, size = 0x12000, scoped, tag = 'internal scratch']
  %s0 = inlined_call_operand.vmem [shape: f32[8,64], index: 0, kind: input, shape index: {}]
  %s1 = inlined_call_operand.vmem [shape: f32[8,64], index: 1, kind: input, shape index: {}]
  %s2 = inlined_call_operand.vmem [shape: f32[64,64], index: 2, kind: input, shape index: {}]
  %s3 = inlined_call_operand.vmem [shape: f32[1,64], index: 3, kind: input, shape index: {}]
  %s4 = inlined_call_operand.vmem [shape: f32[8,64], index: 4, kind: output, shape index: {}]
  %s5 = sld [smem:[#allocation0]]
  $region26: #{forward.23} parent=0
    _
  %s7 = ssub.s32 1, %s5
  %s8 = scalar_select 0, %s7, %s5
  // Predicated region
  $region2: #{forward.23} parent=0 // pred_check
    _
  $region3: #{forward.23} parent=0 // pred_check_branch
    %10 = sbr.rel (0) target = $region5
  $region4: #{forward.23} parent=0 // pred_region
    _
  $region5: #{forward.23} parent=0 // pred_fallthru
    _
  // Predicated region
  $region6: #{forward.23} parent=0 // pred_check
    _
  $region7: #{forward.23} parent=0 // pred_check_branch
    %12 = sbr.rel (0) target = $region9
  $region8: #{forward.23} parent=0 // pred_region
    _
  $region9: #{forward.23} parent=0 // pred_fallthru
    _
  // Predicated region
  $region10: #{forward.23} parent=0 // pred_check
    _
  $region11: #{forward.23} parent=0 // pred_check_branch
    %14 = sbr.rel (0) target = $region13
  $region12: #{forward.23} parent=0 // pred_region
    _
  $region13: #{forward.23} parent=0 // pred_fallthru
    _
  // Predicated region
  $region14: #{forward.23} parent=0 // pred_check
    _
  $region15: #{forward.23} parent=0 // pred_check_branch
    %16 = sbr.rel (0) target = $region17
  $region16: #{forward.23} parent=0 // pred_region
    _
  $region17: #{forward.23} parent=0 // pred_fallthru
    _
  %v17 = vld [vmem:[%s0] sm:$0xff]
  %v18 = vld [vmem:[%s1] sm:$0xff]
  %v19 = vadd.f32 %v17, %v18
  %v20 = vld [vmem:[%s2] sm:$0xff]
  %v21 = vld [vmem:[%s2 + $0x8] sm:$0xff]
  %v22 = vld [vmem:[%s2 + $0x10] sm:$0xff]
  %v23 = vld [vmem:[%s2 + $0x18] sm:$0xff]
  %v24 = vld [vmem:[%s2 + $0x20] sm:$0xff]
  %v25 = vld [vmem:[%s2 + $0x28] sm:$0xff]
  %v26 = vld [vmem:[%s2 + $0x30] sm:$0xff]
  %v27 = vld [vmem:[%s2 + $0x38] sm:$0xff]
  %v28 = vld [vmem:[%s3] sm:$0x1]
  %v30 = vlaneseq
  %v31 = vshrl.u32 %v30, 7
  %v32 = vsub.s32 0, %v31
  %v33 = vrot.slane %v28, %v32
  %vm35 = vcmask 523264
  %v37 = vsel %vm35, %v19, 0
  %39 = vmatprep.subr.mxu0 0.0
  %40 = vmatpush1.msra.mxu0 %v20
  %41 = vmatprep.subr.mxu0 0.0
  %42 = vmatpush1.msra.mxu0 %v21
  %43 = vmatprep.subr.mxu0 0.0
  %44 = vmatpush1.msra.mxu0 %v22
  %45 = vmatprep.subr.mxu0 0.0
  %46 = vmatpush1.msra.mxu0 %v23
  %47 = vmatprep.subr.mxu0 0.0
  %48 = vmatpush1.msra.mxu0 %v24
  %49 = vmatprep.subr.mxu0 0.0
  %50 = vmatpush1.msra.mxu0 %v25
  %51 = vmatprep.subr.mxu0 0.0
  %52 = vmatpush1.msra.mxu0 %v26
  %53 = vmatprep.subr.mxu0 0.0
  %54 = vmatpush1.msra.mxu0 %v27
  %55 = vmatprep.subr.mxu0 0.0
  %56 = vmatpush1.msra.mxu0 0.0
  %57 = vmatprep.subr.mxu0 0.0
  %58 = vmatpush1.msra.mxu0 0.0
  %59 = vmatprep.subr.mxu0 0.0
  %60 = vmatpush1.msra.mxu0 0.0
  %61 = vmatprep.subr.mxu0 0.0
  %62 = vmatpush1.msra.mxu0 0.0
  %63 = vmatprep.subr.mxu0 0.0
  %64 = vmatpush1.msra.mxu0 0.0
  %65 = vmatprep.subr.mxu0 0.0
  %66 = vmatpush1.msra.mxu0 0.0
  %67 = vmatprep.subr.mxu0 0.0
  %68 = vmatpush1.msra.mxu0 0.0
  %69 = vmatprep.subr.mxu0 0.0
  %70 = vmatpush1.msra.mxu0 0.0
  %71 = vmatprep.subr.mxu0 0.0
  %72 = vmatpush1.msra.mxu0 0.0
  %73 = vmatprep.subr.mxu0 0.0
  %74 = vmatpush1.msra.mxu0 0.0
  %75 = vmatprep.subr.mxu0 0.0
  %76 = vmatpush1.msra.mxu0 0.0
  %77 = vmatprep.subr.mxu0 0.0
  %78 = vmatpush1.msra.mxu0 0.0
  %79 = vmatprep.subr.mxu0 0.0
  %80 = vmatpush1.msra.mxu0 0.0
  %81 = vmatprep.subr.mxu0 0.0
  %82 = vmatpush1.msra.mxu0 0.0
  %83 = vmatprep.subr.mxu0 0.0
  %84 = vmatpush1.msra.mxu0 0.0
  %85 = vmatprep.subr.mxu0 0.0
  %86 = vmatpush1.msra.mxu0 0.0
  %87 = vmatprep.subr.mxu0 0.0
  %88 = vmatpush1.msra.mxu0 0.0
  %89 = vmatprep.subr.mxu0 0.0
  %90 = vmatpush1.msra.mxu0 0.0
  %91 = vmatprep.subr.mxu0 0.0
  %92 = vmatpush1.msra.mxu0 0.0
  %93 = vmatprep.subr.mxu0 0.0
  %94 = vmatpush1.msra.mxu0 0.0
  %95 = vmatprep.subr.mxu0 0.0
  %96 = vmatpush1.msra.mxu0 0.0
  %97 = vmatprep.subr.mxu0 0.0
  %98 = vmatpush1.msra.mxu0 0.0
  %99 = vmatprep.subr.mxu0 0.0
  %100 = vmatpush1.msra.mxu0 0.0
  %101 = vmatprep.subr.mxu0 0.0
  %102 = vmatpush1.msra.mxu0 0.0
  %103 = vmatprep.mubr.f32.mxu0 0.0
  %104 = vmatmul.mubr.f32.gmra.mrb[0].mxu0 %v37
  %v105 = vpop.f32.mrb[0].mxu0
  %v106 = vadd.f32 %v33, %v105
  %v107 = vpop.f32.mrb[0].mxu0
  %108 = vdwg.mxu0
  %v109 = vmax.f32 %v106, 0.0
  %110 = vst.msk [vmem:[%s4] sm:$0xff] %vm35, %v109
  // Predicated region
  $region18: #{forward.23} parent=0 // pred_check
    _
  $region19: #{forward.23} parent=0 // pred_check_branch
    %112 = sbr.rel (0) target = $region21
  $region20: #{forward.23} parent=0 // pred_region
    _
  $region21: #{forward.23} parent=0 // pred_fallthru
    _
  // Predicated region
  $region22: #{forward.23} parent=0 // pred_check
    _
  $region23: #{forward.23} parent=0 // pred_check_branch
    %114 = sbr.rel (0) target = $region25
  $region24: #{forward.23} parent=0 // pred_region
    _
  $region25: #{forward.23} parent=0 // pred_fallthru
    _

// kernel: forward.19
$region0: #{forward.19}
  #allocation0 [shape = 'u32[]', space=smem, size = 0x4, offset = 0x4, fixed_abs, tag = 'smem constant byte address 0x4 - core index']
  #allocation1 [shape = 'u32[144,128]{1,0:T(1,128)}', space=vmem, size = 0x12000, scoped, tag = 'internal scratch']
  %s0 = inlined_call_operand.vmem [shape: f32[32,64], index: 0, kind: input, shape index: {}]
  %s1 = inlined_call_operand.vmem [shape: f32[64,64], index: 1, kind: input, shape index: {}]
  %s2 = inlined_call_operand.vmem [shape: f32[1,64], index: 2, kind: input, shape index: {}]
  %s3 = inlined_call_operand.vmem [shape: f32[32,64], index: 3, kind: output, shape index: {}]
  %s4 = sld [smem:[#allocation0]]
  $region22: #{forward.19} parent=0
    _
  %s6 = ssub.s32 1, %s4
  %s7 = scalar_select 0, %s6, %s4
  // Predicated region
  $region2: #{forward.19} parent=0 // pred_check
    _
  $region3: #{forward.19} parent=0 // pred_check_branch
    %9 = sbr.rel (0) target = $region5
  $region4: #{forward.19} parent=0 // pred_region
    _
  $region5: #{forward.19} parent=0 // pred_fallthru
    _
  // Predicated region
  $region6: #{forward.19} parent=0 // pred_check
    _
  $region7: #{forward.19} parent=0 // pred_check_branch
    %11 = sbr.rel (0) target = $region9
  $region8: #{forward.19} parent=0 // pred_region
    _
  $region9: #{forward.19} parent=0 // pred_fallthru
    _
  // Predicated region
  $region10: #{forward.19} parent=0 // pred_check
    _
  $region11: #{forward.19} parent=0 // pred_check_branch
    %13 = sbr.rel (0) target = $region13
  $region12: #{forward.19} parent=0 // pred_region
    _
  $region13: #{forward.19} parent=0 // pred_fallthru
    _
  %v14 = vld [vmem:[%s0] sm:$0xff]
  %v15 = vld [vmem:[%s0 + $0x8] sm:$0xff]
  %v16 = vld [vmem:[%s0 + $0x10] sm:$0xff]
  %v17 = vld [vmem:[%s0 + $0x18] sm:$0xff]
  %v18 = vld [vmem:[%s1] sm:$0xff]
  %v19 = vld [vmem:[%s1 + $0x8] sm:$0xff]
  %v20 = vld [vmem:[%s1 + $0x10] sm:$0xff]
  %v21 = vld [vmem:[%s1 + $0x18] sm:$0xff]
  %v22 = vld [vmem:[%s1 + $0x20] sm:$0xff]
  %v23 = vld [vmem:[%s1 + $0x28] sm:$0xff]
  %v24 = vld [vmem:[%s1 + $0x30] sm:$0xff]
  %v25 = vld [vmem:[%s1 + $0x38] sm:$0xff]
  %v26 = vld [vmem:[%s2] sm:$0x1]
  %v28 = vlaneseq
  %v29 = vshrl.u32 %v28, 7
  %v30 = vsub.s32 0, %v29
  %v31 = vrot.slane %v26, %v30
  %vm33 = vcmask 523264
  %v35 = vsel %vm33, %v14, 0
  %v38 = vsel %vm33, %v15, 0
  %v41 = vsel %vm33, %v16, 0
  %v44 = vsel %vm33, %v17, 0
  %46 = vmatprep.subr.mxu0 0.0
  %47 = vmatpush1.msra.mxu0 %v18
  %48 = vmatprep.subr.mxu0 0.0
  %49 = vmatpush1.msra.mxu0 %v19
  %50 = vmatprep.subr.mxu0 0.0
  %51 = vmatpush1.msra.mxu0 %v20
  %52 = vmatprep.subr.mxu0 0.0
  %53 = vmatpush1.msra.mxu0 %v21
  %54 = vmatprep.subr.mxu0 0.0
  %55 = vmatpush1.msra.mxu0 %v22
  %56 = vmatprep.subr.mxu0 0.0
  %57 = vmatpush1.msra.mxu0 %v23
  %58 = vmatprep.subr.mxu0 0.0
  %59 = vmatpush1.msra.mxu0 %v24
  %60 = vmatprep.subr.mxu0 0.0
  %61 = vmatpush1.msra.mxu0 %v25
  %62 = vmatprep.subr.mxu0 0.0
  %63 = vmatpush1.msra.mxu0 0.0
  %64 = vmatprep.subr.mxu0 0.0
  %65 = vmatpush1.msra.mxu0 0.0
  %66 = vmatprep.subr.mxu0 0.0
  %67 = vmatpush1.msra.mxu0 0.0
  %68 = vmatprep.subr.mxu0 0.0
  %69 = vmatpush1.msra.mxu0 0.0
  %70 = vmatprep.subr.mxu0 0.0
  %71 = vmatpush1.msra.mxu0 0.0
  %72 = vmatprep.subr.mxu0 0.0
  %73 = vmatpush1.msra.mxu0 0.0
  %74 = vmatprep.subr.mxu0 0.0
  %75 = vmatpush1.msra.mxu0 0.0
  %76 = vmatprep.subr.mxu0 0.0
  %77 = vmatpush1.msra.mxu0 0.0
  %78 = vmatprep.subr.mxu0 0.0
  %79 = vmatpush1.msra.mxu0 0.0
  %80 = vmatprep.subr.mxu0 0.0
  %81 = vmatpush1.msra.mxu0 0.0
  %82 = vmatprep.subr.mxu0 0.0
  %83 = vmatpush1.msra.mxu0 0.0
  %84 = vmatprep.subr.mxu0 0.0
  %85 = vmatpush1.msra.mxu0 0.0
  %86 = vmatprep.subr.mxu0 0.0
  %87 = vmatpush1.msra.mxu0 0.0
  %88 = vmatprep.subr.mxu0 0.0
  %89 = vmatpush1.msra.mxu0 0.0
  %90 = vmatprep.subr.mxu0 0.0
  %91 = vmatpush1.msra.mxu0 0.0
  %92 = vmatprep.subr.mxu0 0.0
  %93 = vmatpush1.msra.mxu0 0.0
  %94 = vmatprep.subr.mxu0 0.0
  %95 = vmatpush1.msra.mxu0 0.0
  %96 = vmatprep.subr.mxu0 0.0
  %97 = vmatpush1.msra.mxu0 0.0
  %98 = vmatprep.subr.mxu0 0.0
  %99 = vmatpush1.msra.mxu0 0.0
  %100 = vmatprep.subr.mxu0 0.0
  %101 = vmatpush1.msra.mxu0 0.0
  %102 = vmatprep.subr.mxu0 0.0
  %103 = vmatpush1.msra.mxu0 0.0
  %104 = vmatprep.subr.mxu0 0.0
  %105 = vmatpush1.msra.mxu0 0.0
  %106 = vmatprep.subr.mxu0 0.0
  %107 = vmatpush1.msra.mxu0 0.0
  %108 = vmatprep.subr.mxu0 0.0
  %109 = vmatpush1.msra.mxu0 0.0
  %110 = vmatprep.mubr.f32.mxu0 0.0
  %111 = vmatmul.mubr.f32.gmra.mrb[0].mxu0 %v35
  %v112 = vpop.f32.mrb[0].mxu0
  %v113 = vadd.f32 %v31, %v112
  %v114 = vpop.f32.mrb[0].mxu0
  %115 = vmatprep.mubr.f32.mxu0 0.0
  %116 = vmatmul.mubr.f32.gmra.mrb[0].mxu0 %v38
  %v117 = vpop.f32.mrb[0].mxu0
  %v118 = vadd.f32 %v31, %v117
  %v119 = vpop.f32.mrb[0].mxu0
  %120 = vmatprep.mubr.f32.mxu0 0.0
  %121 = vmatmul.mubr.f32.gmra.mrb[0].mxu0 %v41
  %v122 = vpop.f32.mrb[0].mxu0
  %v123 = vadd.f32 %v31, %v122
  %v124 = vpop.f32.mrb[0].mxu0
  %125 = vmatprep.mubr.f32.mxu0 0.0
  %126 = vmatmul.mubr.f32.gmra.mrb[0].mxu0 %v44
  %v127 = vpop.f32.mrb[0].mxu0
  %v128 = vadd.f32 %v31, %v127
  %v129 = vpop.f32.mrb[0].mxu0
  %130 = vdwg.mxu0
  %131 = vst.msk [vmem:[%s3] sm:$0xff] %vm33, %v113
  %132 = vst.msk [vmem:[%s3 + $0x8] sm:$0xff] %vm33, %v118
  %133 = vst.msk [vmem:[%s3 + $0x10] sm:$0xff] %vm33, %v123
  %134 = vst.msk [vmem:[%s3 + $0x18] sm:$0xff] %vm33, %v128
  // Predicated region
  $region14: #{forward.19} parent=0 // pred_check
    _
  $region15: #{forward.19} parent=0 // pred_check_branch
    %136 = sbr.rel (0) target = $region17
  $region16: #{forward.19} parent=0 // pred_region
    _
  $region17: #{forward.19} parent=0 // pred_fallthru
    _
  // Predicated region
  $region18: #{forward.19} parent=0 // pred_check
    _
  $region19: #{forward.19} parent=0 // pred_check_branch
    %138 = sbr.rel (0) target = $region21
  $region20: #{forward.19} parent=0 // pred_region
    _
  $region21: #{forward.19} parent=0 // pred_fallthru
    _

// kernel: forward.18
$region0: #{forward.18}
  #allocation0 [shape = 'u32[]', space=smem, size = 0x4, offset = 0x4, fixed_abs, tag = 'smem constant byte address 0x4 - core index']
  #allocation1 [shape = 'u32[144,128]{1,0:T(1,128)}', space=vmem, size = 0x12000, scoped, tag = 'internal scratch']
  %s0 = inlined_call_operand.vmem [shape: f32[128,64], index: 0, kind: input, shape index: {}]
  %s1 = inlined_call_operand.vmem [shape: f32[64,64], index: 1, kind: input, shape index: {}]
  %s2 = inlined_call_operand.vmem [shape: f32[1,64], index: 2, kind: input, shape index: {}]
  %s3 = inlined_call_operand.vmem [shape: f32[128,64], index: 3, kind: output, shape index: {}]
  %s4 = sld [smem:[#allocation0]]
  $region22: #{forward.18} parent=0
    _
  %s6 = ssub.s32 1, %s4
  %s7 = scalar_select 0, %s6, %s4
  // Predicated region
  $region2: #{forward.18} parent=0 // pred_check
    _
  $region3: #{forward.18} parent=0 // pred_check_branch
    %9 = sbr.rel (0) target = $region5
  $region4: #{forward.18} parent=0 // pred_region
    _
  $region5: #{forward.18} parent=0 // pred_fallthru
    _
  // Predicated region
  $region6: #{forward.18} parent=0 // pred_check
    _
  $region7: #{forward.18} parent=0 // pred_check_branch
    %11 = sbr.rel (0) target = $region9
  $region8: #{forward.18} parent=0 // pred_region
    _
  $region9: #{forward.18} parent=0 // pred_fallthru
    _
  // Predicated region
  $region10: #{forward.18} parent=0 // pred_check
    _
  $region11: #{forward.18} parent=0 // pred_check_branch
    %13 = sbr.rel (0) target = $region13
  $region12: #{forward.18} parent=0 // pred_region
    _
  $region13: #{forward.18} parent=0 // pred_fallthru
    _
  %v14 = vld [vmem:[%s0] sm:$0xff]
  %v15 = vld [vmem:[%s0 + $0x8] sm:$0xff]
  %v16 = vld [vmem:[%s0 + $0x10] sm:$0xff]
  %v17 = vld [vmem:[%s0 + $0x18] sm:$0xff]
  %v18 = vld [vmem:[%s0 + $0x20] sm:$0xff]
  %v19 = vld [vmem:[%s0 + $0x28] sm:$0xff]
  %v20 = vld [vmem:[%s0 + $0x30] sm:$0xff]
  %v21 = vld [vmem:[%s0 + $0x38] sm:$0xff]
  %v22 = vld [vmem:[%s0 + $0x40] sm:$0xff]
  %v23 = vld [vmem:[%s0 + $0x48] sm:$0xff]
  %v24 = vld [vmem:[%s0 + $0x50] sm:$0xff]
  %v25 = vld [vmem:[%s0 + $0x58] sm:$0xff]
  %v26 = vld [vmem:[%s0 + $0x60] sm:$0xff]
  %v27 = vld [vmem:[%s0 + $0x68] sm:$0xff]
  %v28 = vld [vmem:[%s0 + $0x70] sm:$0xff]
  %v29 = vld [vmem:[%s0 + $0x78] sm:$0xff]
  %v30 = vld [vmem:[%s1] sm:$0xff]
  %v31 = vld [vmem:[%s1 + $0x8] sm:$0xff]
  %v32 = vld [vmem:[%s1 + $0x10] sm:$0xff]
  %v33 = vld [vmem:[%s1 + $0x18] sm:$0xff]
  %v34 = vld [vmem:[%s1 + $0x20] sm:$0xff]
  %v35 = vld [vmem:[%s1 + $0x28] sm:$0xff]
  %v36 = vld [vmem:[%s1 + $0x30] sm:$0xff]
  %v37 = vld [vmem:[%s1 + $0x38] sm:$0xff]
  %v38 = vld [vmem:[%s2] sm:$0x1]
  %v40 = vlaneseq
  %v41 = vshrl.u32 %v40, 7
  %v42 = vsub.s32 0, %v41
  %v43 = vrot.slane %v38, %v42
  %vm45 = vcmask 523264
  %v47 = vsel %vm45, %v14, 0
  %v50 = vsel %vm45, %v15, 0
  %v53 = vsel %vm45, %v16, 0
  %v56 = vsel %vm45, %v17, 0
  %v59 = vsel %vm45, %v18, 0
  %v62 = vsel %vm45, %v19, 0
  %v65 = vsel %vm45, %v20, 0
  %v68 = vsel %vm45, %v21, 0
  %v71 = vsel %vm45, %v22, 0
  %v74 = vsel %vm45, %v23, 0
  %v77 = vsel %vm45, %v24, 0
  %v80 = vsel %vm45, %v25, 0
  %v83 = vsel %vm45, %v26, 0
  %v86 = vsel %vm45, %v27, 0
  %v89 = vsel %vm45, %v28, 0
  %v92 = vsel %vm45, %v29, 0
  %94 = vmatprep.subr.mxu0 0.0
  %95 = vmatpush1.msra.mxu0 %v30
  %96 = vmatprep.subr.mxu0 0.0
  %97 = vmatpush1.msra.mxu0 %v31
  %98 = vmatprep.subr.mxu0 0.0
  %99 = vmatpush1.msra.mxu0 %v32
  %100 = vmatprep.subr.mxu0 0.0
  %101 = vmatpush1.msra.mxu0 %v33
  %102 = vmatprep.subr.mxu0 0.0
  %103 = vmatpush1.msra.mxu0 %v34
  %104 = vmatprep.subr.mxu0 0.0
  %105 = vmatpush1.msra.mxu0 %v35
  %106 = vmatprep.subr.mxu0 0.0
  %107 = vmatpush1.msra.mxu0 %v36
  %108 = vmatprep.subr.mxu0 0.0
  %109 = vmatpush1.msra.mxu0 %v37
  %110 = vmatprep.subr.mxu0 0.0
  %111 = vmatpush1.msra.mxu0 0.0
  %112 = vmatprep.subr.mxu0 0.0
  %113 = vmatpush1.msra.mxu0 0.0
  %114 = vmatprep.subr.mxu0 0.0
  %115 = vmatpush1.msra.mxu0 0.0
  %116 = vmatprep.subr.mxu0 0.0
  %117 = vmatpush1.msra.mxu0 0.0
  %118 = vmatprep.subr.mxu0 0.0
  %119 = vmatpush1.msra.mxu0 0.0
  %120 = vmatprep.subr.mxu0 0.0
  %121 = vmatpush1.msra.mxu0 0.0
  %122 = vmatprep.subr.mxu0 0.0
  %123 = vmatpush1.msra.mxu0 0.0
  %124 = vmatprep.subr.mxu0 0.0
  %125 = vmatpush1.msra.mxu0 0.0
  %126 = vmatprep.subr.mxu0 0.0
  %127 = vmatpush1.msra.mxu0 0.0
  %128 = vmatprep.subr.mxu0 0.0
  %129 = vmatpush1.msra.mxu0 0.0
  %130 = vmatprep.subr.mxu0 0.0
  %131 = vmatpush1.msra.mxu0 0.0
  %132 = vmatprep.subr.mxu0 0.0
  %133 = vmatpush1.msra.mxu0 0.0
  %134 = vmatprep.subr.mxu0 0.0
  %135 = vmatpush1.msra.mxu0 0.0
  %136 = vmatprep.subr.mxu0 0.0
  %137 = vmatpush1.msra.mxu0 0.0
  %138 = vmatprep.subr.mxu0 0.0
  %139 = vmatpush1.msra.mxu0 0.0
  %140 = vmatprep.subr.mxu0 0.0
  %141 = vmatpush1.msra.mxu0 0.0
  %142 = vmatprep.subr.mxu0 0.0
  %143 = vmatpush1.msra.mxu0 0.0
  %144 = vmatprep.subr.mxu0 0.0
  %145 = vmatpush1.msra.mxu0 0.0
  %146 = vmatprep.subr.mxu0 0.0
  %147 = vmatpush1.msra.mxu0 0.0
  %148 = vmatprep.subr.mxu0 0.0
  %149 = vmatpush1.msra.mxu0 0.0
  %150 = vmatprep.subr.mxu0 0.0
  %151 = vmatpush1.msra.mxu0 0.0
  %152 = vmatprep.subr.mxu0 0.0
  %153 = vmatpush1.msra.mxu0 0.0
  %154 = vmatprep.subr.mxu0 0.0
  %155 = vmatpush1.msra.mxu0 0.0
  %156 = vmatprep.subr.mxu0 0.0
  %157 = vmatpush1.msra.mxu0 0.0
  %158 = vmatprep.mubr.f32.mxu0 0.0
  %159 = vmatmul.mubr.f32.gmra.mrb[0].mxu0 %v47
  %v160 = vpop.f32.mrb[0].mxu0
  %v161 = vadd.f32 %v43, %v160
  %v162 = vpop.f32.mrb[0].mxu0
  %163 = vmatprep.mubr.f32.mxu0 0.0
  %164 = vmatmul.mubr.f32.gmra.mrb[0].mxu0 %v50
  %v165 = vpop.f32.mrb[0].mxu0
  %v166 = vadd.f32 %v43, %v165
  %v167 = vpop.f32.mrb[0].mxu0
  %168 = vmatprep.mubr.f32.mxu0 0.0
  %169 = vmatmul.mubr.f32.gmra.mrb[0].mxu0 %v53
  %v170 = vpop.f32.mrb[0].mxu0
  %v171 = vadd.f32 %v43, %v170
  %v172 = vpop.f32.mrb[0].mxu0
  %173 = vmatprep.mubr.f32.mxu0 0.0
  %174 = vmatmul.mubr.f32.gmra.mrb[0].mxu0 %v56
  %v175 = vpop.f32.mrb[0].mxu0
  %v176 = vadd.f32 %v43, %v175
  %v177 = vpop.f32.mrb[0].mxu0
  %178 = vmatprep.mubr.f32.mxu0 0.0
  %179 = vmatmul.mubr.f32.gmra.mrb[0].mxu0 %v59
  %v180 = vpop.f32.mrb[0].mxu0
  %v181 = vadd.f32 %v43, %v180
  %v182 = vpop.f32.mrb[0].mxu0
  %183 = vmatprep.mubr.f32.mxu0 0.0
  %184 = vmatmul.mubr.f32.gmra.mrb[0].mxu0 %v62
  %v185 = vpop.f32.mrb[0].mxu0
  %v186 = vadd.f32 %v43, %v185
  %v187 = vpop.f32.mrb[0].mxu0
  %188 = vmatprep.mubr.f32.mxu0 0.0
  %189 = vmatmul.mubr.f32.gmra.mrb[0].mxu0 %v65
  %v190 = vpop.f32.mrb[0].mxu0
  %v191 = vadd.f32 %v43, %v190
  %v192 = vpop.f32.mrb[0].mxu0
  %193 = vmatprep.mubr.f32.mxu0 0.0
  %194 = vmatmul.mubr.f32.gmra.mrb[0].mxu0 %v68
  %v195 = vpop.f32.mrb[0].mxu0
  %v196 = vadd.f32 %v43, %v195
  %v197 = vpop.f32.mrb[0].mxu0
  %198 = vmatprep.mubr.f32.mxu0 0.0
  %199 = vmatmul.mubr.f32.gmra.mrb[0].mxu0 %v71
  %v200 = vpop.f32.mrb[0].mxu0
  %v201 = vadd.f32 %v43, %v200
  %v202 = vpop.f32.mrb[0].mxu0
  %203 = vmatprep.mubr.f32.mxu0 0.0
  %204 = vmatmul.mubr.f32.gmra.mrb[0].mxu0 %v74
  %v205 = vpop.f32.mrb[0].mxu0
  %v206 = vadd.f32 %v43, %v205
  %v207 = vpop.f32.mrb[0].mxu0
  %208 = vmatprep.mubr.f32.mxu0 0.0
  %209 = vmatmul.mubr.f32.gmra.mrb[0].mxu0 %v77
  %v210 = vpop.f32.mrb[0].mxu0
  %v211 = vadd.f32 %v43, %v210
  %v212 = vpop.f32.mrb[0].mxu0
  %213 = vmatprep.mubr.f32.mxu0 0.0
  %214 = vmatmul.mubr.f32.gmra.mrb[0].mxu0 %v80
  %v215 = vpop.f32.mrb[0].mxu0
  %v216 = vadd.f32 %v43, %v215
  %v217 = vpop.f32.mrb[0].mxu0
  %218 = vmatprep.mubr.f32.mxu0 0.0
  %219 = vmatmul.mubr.f32.gmra.mrb[0].mxu0 %v83
  %v220 = vpop.f32.mrb[0].mxu0
  %v221 = vadd.f32 %v43, %v220
  %v222 = vpop.f32.mrb[0].mxu0
  %223 = vmatprep.mubr.f32.mxu0 0.0
  %224 = vmatmul.mubr.f32.gmra.mrb[0].mxu0 %v86
  %v225 = vpop.f32.mrb[0].mxu0
  %v226 = vadd.f32 %v43, %v225
  %v227 = vpop.f32.mrb[0].mxu0
  %228 = vmatprep.mubr.f32.mxu0 0.0
  %229 = vmatmul.mubr.f32.gmra.mrb[0].mxu0 %v89
  %v230 = vpop.f32.mrb[0].mxu0
  %v231 = vadd.f32 %v43, %v230
  %v232 = vpop.f32.mrb[0].mxu0
  %233 = vmatprep.mubr.f32.mxu0 0.0
  %234 = vmatmul.mubr.f32.gmra.mrb[0].mxu0 %v92
  %v235 = vpop.f32.mrb[0].mxu0
  %v236 = vadd.f32 %v43, %v235
  %v237 = vpop.f32.mrb[0].mxu0
  %238 = vdwg.mxu0
  %239 = vst.msk [vmem:[%s3] sm:$0xff] %vm45, %v161
  %240 = vst.msk [vmem:[%s3 + $0x8] sm:$0xff] %vm45, %v166
  %241 = vst.msk [vmem:[%s3 + $0x10] sm:$0xff] %vm45, %v171
  %242 = vst.msk [vmem:[%s3 + $0x18] sm:$0xff] %vm45, %v176
  %243 = vst.msk [vmem:[%s3 + $0x20] sm:$0xff] %vm45, %v181
  %244 = vst.msk [vmem:[%s3 + $0x28] sm:$0xff] %vm45, %v186
  %245 = vst.msk [vmem:[%s3 + $0x30] sm:$0xff] %vm45, %v191
  %246 = vst.msk [vmem:[%s3 + $0x38] sm:$0xff] %vm45, %v196
  %247 = vst.msk [vmem:[%s3 + $0x40] sm:$0xff] %vm45, %v201
  %248 = vst.msk [vmem:[%s3 + $0x48] sm:$0xff] %vm45, %v206
  %249 = vst.msk [vmem:[%s3 + $0x50] sm:$0xff] %vm45, %v211
  %250 = vst.msk [vmem:[%s3 + $0x58] sm:$0xff] %vm45, %v216
  %251 = vst.msk [vmem:[%s3 + $0x60] sm:$0xff] %vm45, %v221
  %252 = vst.msk [vmem:[%s3 + $0x68] sm:$0xff] %vm45, %v226
  %253 = vst.msk [vmem:[%s3 + $0x70] sm:$0xff] %vm45, %v231
  %254 = vst.msk [vmem:[%s3 + $0x78] sm:$0xff] %vm45, %v236
  // Predicated region
  $region14: #{forward.18} parent=0 // pred_check
    _
  $region15: #{forward.18} parent=0 // pred_check_branch
    %256 = sbr.rel (0) target = $region17
  $region16: #{forward.18} parent=0 // pred_region
    _
  $region17: #{forward.18} parent=0 // pred_fallthru
    _
  // Predicated region
  $region18: #{forward.18} parent=0 // pred_check
    _
  $region19: #{forward.18} parent=0 // pred_check_branch
    %258 = sbr.rel (0) target = $region21
  $region20: #{forward.18} parent=0 // pred_region
    _
  $region21: #{forward.18} parent=0 // pred_fallthru
    _

// kernel: forward.24
$region0: #{forward.24}
  #allocation0 [shape = 'u32[]', space=smem, size = 0x4, offset = 0x4, fixed_abs, tag = 'smem constant byte address 0x4 - core index']
  #allocation1 [shape = 'u32[144,128]{1,0:T(1,128)}', space=vmem, size = 0x12000, scoped, tag = 'internal scratch']
  %s0 = inlined_call_operand.vmem [shape: f32[32,64], index: 0, kind: input, shape index: {}]
  %s1 = inlined_call_operand.vmem [shape: f32[32,64], index: 1, kind: input, shape index: {}]
  %s2 = inlined_call_operand.vmem [shape: f32[64,64], index: 2, kind: input, shape index: {}]
  %s3 = inlined_call_operand.vmem [shape: f32[1,64], index: 3, kind: input, shape index: {}]
  %s4 = inlined_call_operand.vmem [shape: f32[32,64], index: 4, kind: output, shape index: {}]
  %s5 = sld [smem:[#allocation0]]
  $region26: #{forward.24} parent=0
    _
  %s7 = ssub.s32 1, %s5
  %s8 = scalar_select 0, %s7, %s5
  // Predicated region
  $region2: #{forward.24} parent=0 // pred_check
    _
  $region3: #{forward.24} parent=0 // pred_check_branch
    %10 = sbr.rel (0) target = $region5
  $region4: #{forward.24} parent=0 // pred_region
    _
  $region5: #{forward.24} parent=0 // pred_fallthru
    _
  // Predicated region
  $region6: #{forward.24} parent=0 // pred_check
    _
  $region7: #{forward.24} parent=0 // pred_check_branch
    %12 = sbr.rel (0) target = $region9
  $region8: #{forward.24} parent=0 // pred_region
    _
  $region9: #{forward.24} parent=0 // pred_fallthru
    _
  // Predicated region
  $region10: #{forward.24} parent=0 // pred_check
    _
  $region11: #{forward.24} parent=0 // pred_check_branch
    %14 = sbr.rel (0) target = $region13
  $region12: #{forward.24} parent=0 // pred_region
    _
  $region13: #{forward.24} parent=0 // pred_fallthru
    _
  // Predicated region
  $region14: #{forward.24} parent=0 // pred_check
    _
  $region15: #{forward.24} parent=0 // pred_check_branch
    %16 = sbr.rel (0) target = $region17
  $region16: #{forward.24} parent=0 // pred_region
    _
  $region17: #{forward.24} parent=0 // pred_fallthru
    _
  %v17 = vld [vmem:[%s0] sm:$0xff]
  %v18 = vld [vmem:[%s0 + $0x8] sm:$0xff]
  %v19 = vld [vmem:[%s0 + $0x10] sm:$0xff]
  %v20 = vld [vmem:[%s0 + $0x18] sm:$0xff]
  %v21 = vld [vmem:[%s1] sm:$0xff]
  %v22 = vld [vmem:[%s1 + $0x8] sm:$0xff]
  %v23 = vld [vmem:[%s1 + $0x10] sm:$0xff]
  %v24 = vld [vmem:[%s1 + $0x18] sm:$0xff]
  %v25 = vadd.f32 %v17, %v21
  %v26 = vadd.f32 %v18, %v22
  %v27 = vadd.f32 %v19, %v23
  %v28 = vadd.f32 %v20, %v24
  %v29 = vld [vmem:[%s2] sm:$0xff]
  %v30 = vld [vmem:[%s2 + $0x8] sm:$0xff]
  %v31 = vld [vmem:[%s2 + $0x10] sm:$0xff]
  %v32 = vld [vmem:[%s2 + $0x18] sm:$0xff]
  %v33 = vld [vmem:[%s2 + $0x20] sm:$0xff]
  %v34 = vld [vmem:[%s2 + $0x28] sm:$0xff]
  %v35 = vld [vmem:[%s2 + $0x30] sm:$0xff]
  %v36 = vld [vmem:[%s2 + $0x38] sm:$0xff]
  %v37 = vld [vmem:[%s3] sm:$0x1]
  %v39 = vlaneseq
  %v40 = vshrl.u32 %v39, 7
  %v41 = vsub.s32 0, %v40
  %v42 = vrot.slane %v37, %v41
  %vm44 = vcmask 523264
  %v46 = vsel %vm44, %v25, 0
  %v49 = vsel %vm44, %v26, 0
  %v52 = vsel %vm44, %v27, 0
  %v55 = vsel %vm44, %v28, 0
  %57 = vmatprep.subr.mxu0 0.0
  %58 = vmatpush1.msra.mxu0 %v29
  %59 = vmatprep.subr.mxu0 0.0
  %60 = vmatpush1.msra.mxu0 %v30
  %61 = vmatprep.subr.mxu0 0.0
  %62 = vmatpush1.msra.mxu0 %v31
  %63 = vmatprep.subr.mxu0 0.0
  %64 = vmatpush1.msra.mxu0 %v32
  %65 = vmatprep.subr.mxu0 0.0
  %66 = vmatpush1.msra.mxu0 %v33
  %67 = vmatprep.subr.mxu0 0.0
  %68 = vmatpush1.msra.mxu0 %v34
  %69 = vmatprep.subr.mxu0 0.0
  %70 = vmatpush1.msra.mxu0 %v35
  %71 = vmatprep.subr.mxu0 0.0
  %72 = vmatpush1.msra.mxu0 %v36
  %73 = vmatprep.subr.mxu0 0.0
  %74 = vmatpush1.msra.mxu0 0.0
  %75 = vmatprep.subr.mxu0 0.0
  %76 = vmatpush1.msra.mxu0 0.0
  %77 = vmatprep.subr.mxu0 0.0
  %78 = vmatpush1.msra.mxu0 0.0
  %79 = vmatprep.subr.mxu0 0.0
  %80 = vmatpush1.msra.mxu0 0.0
  %81 = vmatprep.subr.mxu0 0.0
  %82 = vmatpush1.msra.mxu0 0.0
  %83 = vmatprep.subr.mxu0 0.0
  %84 = vmatpush1.msra.mxu0 0.0
  %85 = vmatprep.subr.mxu0 0.0
  %86 = vmatpush1.msra.mxu0 0.0
  %87 = vmatprep.subr.mxu0 0.0
  %88 = vmatpush1.msra.mxu0 0.0
  %89 = vmatprep.subr.mxu0 0.0
  %90 = vmatpush1.msra.mxu0 0.0
  %91 = vmatprep.subr.mxu0 0.0
  %92 = vmatpush1.msra.mxu0 0.0
  %93 = vmatprep.subr.mxu0 0.0
  %94 = vmatpush1.msra.mxu0 0.0
  %95 = vmatprep.subr.mxu0 0.0
  %96 = vmatpush1.msra.mxu0 0.0
  %97 = vmatprep.subr.mxu0 0.0
  %98 = vmatpush1.msra.mxu0 0.0
  %99 = vmatprep.subr.mxu0 0.0
  %100 = vmatpush1.msra.mxu0 0.0
  %101 = vmatprep.subr.mxu0 0.0
  %102 = vmatpush1.msra.mxu0 0.0
  %103 = vmatprep.subr.mxu0 0.0
  %104 = vmatpush1.msra.mxu0 0.0
  %105 = vmatprep.subr.mxu0 0.0
  %106 = vmatpush1.msra.mxu0 0.0
  %107 = vmatprep.subr.mxu0 0.0
  %108 = vmatpush1.msra.mxu0 0.0
  %109 = vmatprep.subr.mxu0 0.0
  %110 = vmatpush1.msra.mxu0 0.0
  %111 = vmatprep.subr.mxu0 0.0
  %112 = vmatpush1.msra.mxu0 0.0
  %113 = vmatprep.subr.mxu0 0.0
  %114 = vmatpush1.msra.mxu0 0.0
  %115 = vmatprep.subr.mxu0 0.0
  %116 = vmatpush1.msra.mxu0 0.0
  %117 = vmatprep.subr.mxu0 0.0
  %118 = vmatpush1.msra.mxu0 0.0
  %119 = vmatprep.subr.mxu0 0.0
  %120 = vmatpush1.msra.mxu0 0.0
  %121 = vmatprep.mubr.f32.mxu0 0.0
  %122 = vmatmul.mubr.f32.gmra.mrb[0].mxu0 %v46
  %v123 = vpop.f32.mrb[0].mxu0
  %v124 = vadd.f32 %v42, %v123
  %v125 = vpop.f32.mrb[0].mxu0
  %126 = vmatprep.mubr.f32.mxu0 0.0
  %127 = vmatmul.mubr.f32.gmra.mrb[0].mxu0 %v49
  %v128 = vpop.f32.mrb[0].mxu0
  %v129 = vadd.f32 %v42, %v128
  %v130 = vpop.f32.mrb[0].mxu0
  %131 = vmatprep.mubr.f32.mxu0 0.0
  %132 = vmatmul.mubr.f32.gmra.mrb[0].mxu0 %v52
  %v133 = vpop.f32.mrb[0].mxu0
  %v134 = vadd.f32 %v42, %v133
  %v135 = vpop.f32.mrb[0].mxu0
  %136 = vmatprep.mubr.f32.mxu0 0.0
  %137 = vmatmul.mubr.f32.gmra.mrb[0].mxu0 %v55
  %v138 = vpop.f32.mrb[0].mxu0
  %v139 = vadd.f32 %v42, %v138
  %v140 = vpop.f32.mrb[0].mxu0
  %141 = vdwg.mxu0
  %v142 = vmax.f32 %v124, 0.0
  %v143 = vmax.f32 %v129, 0.0
  %v144 = vmax.f32 %v134, 0.0
  %v145 = vmax.f32 %v139, 0.0
  %146 = vst.msk [vmem:[%s4] sm:$0xff] %vm44, %v142
  %147 = vst.msk [vmem:[%s4 + $0x8] sm:$0xff] %vm44, %v143
  %148 = vst.msk [vmem:[%s4 + $0x10] sm:$0xff] %vm44, %v144
  %149 = vst.msk [vmem:[%s4 + $0x18] sm:$0xff] %vm44, %v145
  // Predicated region
  $region18: #{forward.24} parent=0 // pred_check
    _
  $region19: #{forward.24} parent=0 // pred_check_branch
    %151 = sbr.rel (0) target = $region21
  $region20: #{forward.24} parent=0 // pred_region
    _
  $region21: #{forward.24} parent=0 // pred_fallthru
    _
  // Predicated region
  $region22: #{forward.24} parent=0 // pred_check
    _
  $region23: #{forward.24} parent=0 // pred_check_branch
    %153 = sbr.rel (0) target = $region25
  $region24: #{forward.24} parent=0 // pred_region
    _
  $region25: #{forward.24} parent=0 // pred_fallthru
    _

// kernel: forward.25
$region0: #{forward.25}
  #allocation0 [shape = 'u32[]', space=smem, size = 0x4, offset = 0x4, fixed_abs, tag = 'smem constant byte address 0x4 - core index']
  #allocation1 [shape = 'u32[144,128]{1,0:T(1,128)}', space=vmem, size = 0x12000, scoped, tag = 'internal scratch']
  %s0 = inlined_call_operand.vmem [shape: f32[128,64], index: 0, kind: input, shape index: {}]
  %s1 = inlined_call_operand.vmem [shape: f32[128,64], index: 1, kind: input, shape index: {}]
  %s2 = inlined_call_operand.vmem [shape: f32[64,64], index: 2, kind: input, shape index: {}]
  %s3 = inlined_call_operand.vmem [shape: f32[1,64], index: 3, kind: input, shape index: {}]
  %s4 = inlined_call_operand.vmem [shape: f32[128,64], index: 4, kind: output, shape index: {}]
  %s5 = sld [smem:[#allocation0]]
  $region26: #{forward.25} parent=0
    _
  %s7 = ssub.s32 1, %s5
  %s8 = scalar_select 0, %s7, %s5
  // Predicated region
  $region2: #{forward.25} parent=0 // pred_check
    _
  $region3: #{forward.25} parent=0 // pred_check_branch
    %10 = sbr.rel (0) target = $region5
  $region4: #{forward.25} parent=0 // pred_region
    _
  $region5: #{forward.25} parent=0 // pred_fallthru
    _
  // Predicated region
  $region6: #{forward.25} parent=0 // pred_check
    _
  $region7: #{forward.25} parent=0 // pred_check_branch
    %12 = sbr.rel (0) target = $region9
  $region8: #{forward.25} parent=0 // pred_region
    _
  $region9: #{forward.25} parent=0 // pred_fallthru
    _
  // Predicated region
  $region10: #{forward.25} parent=0 // pred_check
    _
  $region11: #{forward.25} parent=0 // pred_check_branch
    %14 = sbr.rel (0) target = $region13
  $region12: #{forward.25} parent=0 // pred_region
    _
  $region13: #{forward.25} parent=0 // pred_fallthru
    _
  // Predicated region
  $region14: #{forward.25} parent=0 // pred_check
    _
  $region15: #{forward.25} parent=0 // pred_check_branch
    %16 = sbr.rel (0) target = $region17
  $region16: #{forward.25} parent=0 // pred_region
    _
  $region17: #{forward.25} parent=0 // pred_fallthru
    _
  %v17 = vld [vmem:[%s0] sm:$0xff]
  %v18 = vld [vmem:[%s0 + $0x8] sm:$0xff]
  %v19 = vld [vmem:[%s0 + $0x10] sm:$0xff]
  %v20 = vld [vmem:[%s0 + $0x18] sm:$0xff]
  %v21 = vld [vmem:[%s0 + $0x20] sm:$0xff]
  %v22 = vld [vmem:[%s0 + $0x28] sm:$0xff]
  %v23 = vld [vmem:[%s0 + $0x30] sm:$0xff]
  %v24 = vld [vmem:[%s0 + $0x38] sm:$0xff]
  %v25 = vld [vmem:[%s0 + $0x40] sm:$0xff]
  %v26 = vld [vmem:[%s0 + $0x48] sm:$0xff]
  %v27 = vld [vmem:[%s0 + $0x50] sm:$0xff]
  %v28 = vld [vmem:[%s0 + $0x58] sm:$0xff]
  %v29 = vld [vmem:[%s0 + $0x60] sm:$0xff]
  %v30 = vld [vmem:[%s0 + $0x68] sm:$0xff]
  %v31 = vld [vmem:[%s0 + $0x70] sm:$0xff]
  %v32 = vld [vmem:[%s0 + $0x78] sm:$0xff]
  %v33 = vld [vmem:[%s1] sm:$0xff]
  %v34 = vld [vmem:[%s1 + $0x8] sm:$0xff]
  %v35 = vld [vmem:[%s1 + $0x10] sm:$0xff]
  %v36 = vld [vmem:[%s1 + $0x18] sm:$0xff]
  %v37 = vld [vmem:[%s1 + $0x20] sm:$0xff]
  %v38 = vld [vmem:[%s1 + $0x28] sm:$0xff]
  %v39 = vld [vmem:[%s1 + $0x30] sm:$0xff]
  %v40 = vld [vmem:[%s1 + $0x38] sm:$0xff]
  %v41 = vld [vmem:[%s1 + $0x40] sm:$0xff]
  %v42 = vld [vmem:[%s1 + $0x48] sm:$0xff]
  %v43 = vld [vmem:[%s1 + $0x50] sm:$0xff]
  %v44 = vld [vmem:[%s1 + $0x58] sm:$0xff]
  %v45 = vld [vmem:[%s1 + $0x60] sm:$0xff]
  %v46 = vld [vmem:[%s1 + $0x68] sm:$0xff]
  %v47 = vld [vmem:[%s1 + $0x70] sm:$0xff]
  %v48 = vld [vmem:[%s1 + $0x78] sm:$0xff]
  %v49 = vadd.f32 %v17, %v33
  %v50 = vadd.f32 %v18, %v34
  %v51 = vadd.f32 %v19, %v35
  %v52 = vadd.f32 %v20, %v36
  %v53 = vadd.f32 %v21, %v37
  %v54 = vadd.f32 %v22, %v38
  %v55 = vadd.f32 %v23, %v39
  %v56 = vadd.f32 %v24, %v40
  %v57 = vadd.f32 %v25, %v41
  %v58 = vadd.f32 %v26, %v42
  %v59 = vadd.f32 %v27, %v43
  %v60 = vadd.f32 %v28, %v44
  %v61 = vadd.f32 %v29, %v45
  %v62 = vadd.f32 %v30, %v46
  %v63 = vadd.f32 %v31, %v47
  %v64 = vadd.f32 %v32, %v48
  %v65 = vld [vmem:[%s2] sm:$0xff]
  %v66 = vld [vmem:[%s2 + $0x8] sm:$0xff]
  %v67 = vld [vmem:[%s2 + $0x10] sm:$0xff]
  %v68 = vld [vmem:[%s2 + $0x18] sm:$0xff]
  %v69 = vld [vmem:[%s2 + $0x20] sm:$0xff]
  %v70 = vld [vmem:[%s2 + $0x28] sm:$0xff]
  %v71 = vld [vmem:[%s2 + $0x30] sm:$0xff]
  %v72 = vld [vmem:[%s2 + $0x38] sm:$0xff]
  %v73 = vld [vmem:[%s3] sm:$0x1]
  %v75 = vlaneseq
  %v76 = vshrl.u32 %v75, 7
  %v77 = vsub.s32 0, %v76
  %v78 = vrot.slane %v73, %v77
  %vm80 = vcmask 523264
  %v82 = vsel %vm80, %v49, 0
  %v85 = vsel %vm80, %v50, 0
  %v88 = vsel %vm80, %v51, 0
  %v91 = vsel %vm80, %v52, 0
  %v94 = vsel %vm80, %v53, 0
  %v97 = vsel %vm80, %v54, 0
  %v100 = vsel %vm80, %v55, 0
  %v103 = vsel %vm80, %v56, 0
  %v106 = vsel %vm80, %v57, 0
  %v109 = vsel %vm80, %v58, 0
  %v112 = vsel %vm80, %v59, 0
  %v115 = vsel %vm80, %v60, 0
  %v118 = vsel %vm80, %v61, 0
  %v121 = vsel %vm80, %v62, 0
  %v124 = vsel %vm80, %v63, 0
  %v127 = vsel %vm80, %v64, 0
  %129 = vmatprep.subr.mxu0 0.0
  %130 = vmatpush1.msra.mxu0 %v65
  %131 = vmatprep.subr.mxu0 0.0
  %132 = vmatpush1.msra.mxu0 %v66
  %133 = vmatprep.subr.mxu0 0.0
  %134 = vmatpush1.msra.mxu0 %v67
  %135 = vmatprep.subr.mxu0 0.0
  %136 = vmatpush1.msra.mxu0 %v68
  %137 = vmatprep.subr.mxu0 0.0
  %138 = vmatpush1.msra.mxu0 %v69
  %139 = vmatprep.subr.mxu0 0.0
  %140 = vmatpush1.msra.mxu0 %v70
  %141 = vmatprep.subr.mxu0 0.0
  %142 = vmatpush1.msra.mxu0 %v71
  %143 = vmatprep.subr.mxu0 0.0
  %144 = vmatpush1.msra.mxu0 %v72
  %145 = vmatprep.subr.mxu0 0.0
  %146 = vmatpush1.msra.mxu0 0.0
  %147 = vmatprep.subr.mxu0 0.0
  %148 = vmatpush1.msra.mxu0 0.0
  %149 = vmatprep.subr.mxu0 0.0
  %150 = vmatpush1.msra.mxu0 0.0
  %151 = vmatprep.subr.mxu0 0.0
  %152 = vmatpush1.msra.mxu0 0.0
  %153 = vmatprep.subr.mxu0 0.0
  %154 = vmatpush1.msra.mxu0 0.0
  %155 = vmatprep.subr.mxu0 0.0
  %156 = vmatpush1.msra.mxu0 0.0
  %157 = vmatprep.subr.mxu0 0.0
  %158 = vmatpush1.msra.mxu0 0.0
  %159 = vmatprep.subr.mxu0 0.0
  %160 = vmatpush1.msra.mxu0 0.0
  %161 = vmatprep.subr.mxu0 0.0
  %162 = vmatpush1.msra.mxu0 0.0
  %163 = vmatprep.subr.mxu0 0.0
  %164 = vmatpush1.msra.mxu0 0.0
  %165 = vmatprep.subr.mxu0 0.0
  %166 = vmatpush1.msra.mxu0 0.0
  %167 = vmatprep.subr.mxu0 0.0
  %168 = vmatpush1.msra.mxu0 0.0
  %169 = vmatprep.subr.mxu0 0.0
  %170 = vmatpush1.msra.mxu0 0.0
  %171 = vmatprep.subr.mxu0 0.0
  %172 = vmatpush1.msra.mxu0 0.0
  %173 = vmatprep.subr.mxu0 0.0
  %174 = vmatpush1.msra.mxu0 0.0
  %175 = vmatprep.subr.mxu0 0.0
  %176 = vmatpush1.msra.mxu0 0.0
  %177 = vmatprep.subr.mxu0 0.0
  %178 = vmatpush1.msra.mxu0 0.0
  %179 = vmatprep.subr.mxu0 0.0
  %180 = vmatpush1.msra.mxu0 0.0
  %181 = vmatprep.subr.mxu0 0.0
  %182 = vmatpush1.msra.mxu0 0.0
  %183 = vmatprep.subr.mxu0 0.0
  %184 = vmatpush1.msra.mxu0 0.0
  %185 = vmatprep.subr.mxu0 0.0
  %186 = vmatpush1.msra.mxu0 0.0
  %187 = vmatprep.subr.mxu0 0.0
  %188 = vmatpush1.msra.mxu0 0.0
  %189 = vmatprep.subr.mxu0 0.0
  %190 = vmatpush1.msra.mxu0 0.0
  %191 = vmatprep.subr.mxu0 0.0
  %192 = vmatpush1.msra.mxu0 0.0
  %193 = vmatprep.mubr.f32.mxu0 0.0
  %194 = vmatmul.mubr.f32.gmra.mrb[0].mxu0 %v82
  %v195 = vpop.f32.mrb[0].mxu0
  %v196 = vadd.f32 %v78, %v195
  %v197 = vpop.f32.mrb[0].mxu0
  %198 = vmatprep.mubr.f32.mxu0 0.0
  %199 = vmatmul.mubr.f32.gmra.mrb[0].mxu0 %v85
  %v200 = vpop.f32.mrb[0].mxu0
  %v201 = vadd.f32 %v78, %v200
  %v202 = vpop.f32.mrb[0].mxu0
  %203 = vmatprep.mubr.f32.mxu0 0.0
  %204 = vmatmul.mubr.f32.gmra.mrb[0].mxu0 %v88
  %v205 = vpop.f32.mrb[0].mxu0
  %v206 = vadd.f32 %v78, %v205
  %v207 = vpop.f32.mrb[0].mxu0
  %208 = vmatprep.mubr.f32.mxu0 0.0
  %209 = vmatmul.mubr.f32.gmra.mrb[0].mxu0 %v91
  %v210 = vpop.f32.mrb[0].mxu0
  %v211 = vadd.f32 %v78, %v210
  %v212 = vpop.f32.mrb[0].mxu0
  %213 = vmatprep.mubr.f32.mxu0 0.0
  %214 = vmatmul.mubr.f32.gmra.mrb[0].mxu0 %v94
  %v215 = vpop.f32.mrb[0].mxu0
  %v216 = vadd.f32 %v78, %v215
  %v217 = vpop.f32.mrb[0].mxu0
  %218 = vmatprep.mubr.f32.mxu0 0.0
  %219 = vmatmul.mubr.f32.gmra.mrb[0].mxu0 %v97
  %v220 = vpop.f32.mrb[0].mxu0
  %v221 = vadd.f32 %v78, %v220
  %v222 = vpop.f32.mrb[0].mxu0
  %223 = vmatprep.mubr.f32.mxu0 0.0
  %224 = vmatmul.mubr.f32.gmra.mrb[0].mxu0 %v100
  %v225 = vpop.f32.mrb[0].mxu0
  %v226 = vadd.f32 %v78, %v225
  %v227 = vpop.f32.mrb[0].mxu0
  %228 = vmatprep.mubr.f32.mxu0 0.0
  %229 = vmatmul.mubr.f32.gmra.mrb[0].mxu0 %v103
  %v230 = vpop.f32.mrb[0].mxu0
  %v231 = vadd.f32 %v78, %v230
  %v232 = vpop.f32.mrb[0].mxu0
  %233 = vmatprep.mubr.f32.mxu0 0.0
  %234 = vmatmul.mubr.f32.gmra.mrb[0].mxu0 %v106
  %v235 = vpop.f32.mrb[0].mxu0
  %v236 = vadd.f32 %v78, %v235
  %v237 = vpop.f32.mrb[0].mxu0
  %238 = vmatprep.mubr.f32.mxu0 0.0
  %239 = vmatmul.mubr.f32.gmra.mrb[0].mxu0 %v109
  %v240 = vpop.f32.mrb[0].mxu0
  %v241 = vadd.f32 %v78, %v240
  %v242 = vpop.f32.mrb[0].mxu0
  %243 = vmatprep.mubr.f32.mxu0 0.0
  %244 = vmatmul.mubr.f32.gmra.mrb[0].mxu0 %v112
  %v245 = vpop.f32.mrb[0].mxu0
  %v246 = vadd.f32 %v78, %v245
  %v247 = vpop.f32.mrb[0].mxu0
  %248 = vmatprep.mubr.f32.mxu0 0.0
  %249 = vmatmul.mubr.f32.gmra.mrb[0].mxu0 %v115
  %v250 = vpop.f32.mrb[0].mxu0
  %v251 = vadd.f32 %v78, %v250
  %v252 = vpop.f32.mrb[0].mxu0
  %253 = vmatprep.mubr.f32.mxu0 0.0
  %254 = vmatmul.mubr.f32.gmra.mrb[0].mxu0 %v118
  %v255 = vpop.f32.mrb[0].mxu0
  %v256 = vadd.f32 %v78, %v255
  %v257 = vpop.f32.mrb[0].mxu0
  %258 = vmatprep.mubr.f32.mxu0 0.0
  %259 = vmatmul.mubr.f32.gmra.mrb[0].mxu0 %v121
  %v260 = vpop.f32.mrb[0].mxu0
  %v261 = vadd.f32 %v78, %v260
  %v262 = vpop.f32.mrb[0].mxu0
  %263 = vmatprep.mubr.f32.mxu0 0.0
  %264 = vmatmul.mubr.f32.gmra.mrb[0].mxu0 %v124
  %v265 = vpop.f32.mrb[0].mxu0
  %v266 = vadd.f32 %v78, %v265
  %v267 = vpop.f32.mrb[0].mxu0
  %268 = vmatprep.mubr.f32.mxu0 0.0
  %269 = vmatmul.mubr.f32.gmra.mrb[0].mxu0 %v127
  %v270 = vpop.f32.mrb[0].mxu0
  %v271 = vadd.f32 %v78, %v270
  %v272 = vpop.f32.mrb[0].mxu0
  %273 = vdwg.mxu0
  %v274 = vmax.f32 %v196, 0.0
  %v275 = vmax.f32 %v201, 0.0
  %v276 = vmax.f32 %v206, 0.0
  %v277 = vmax.f32 %v211, 0.0
  %v278 = vmax.f32 %v216, 0.0
  %v279 = vmax.f32 %v221, 0.0
  %v280 = vmax.f32 %v226, 0.0
  %v281 = vmax.f32 %v231, 0.0
  %v282 = vmax.f32 %v236, 0.0
  %v283 = vmax.f32 %v241, 0.0
  %v284 = vmax.f32 %v246, 0.0
  %v285 = vmax.f32 %v251, 0.0
  %v286 = vmax.f32 %v256, 0.0
  %v287 = vmax.f32 %v261, 0.0
  %v288 = vmax.f32 %v266, 0.0
  %v289 = vmax.f32 %v271, 0.0
  %290 = vst.msk [vmem:[%s4] sm:$0xff] %vm80, %v274
  %291 = vst.msk [vmem:[%s4 + $0x8] sm:$0xff] %vm80, %v275
  %292 = vst.msk [vmem:[%s4 + $0x10] sm:$0xff] %vm80, %v276
  %293 = vst.msk [vmem:[%s4 + $0x18] sm:$0xff] %vm80, %v277
  %294 = vst.msk [vmem:[%s4 + $0x20] sm:$0xff] %vm80, %v278
  %295 = vst.msk [vmem:[%s4 + $0x28] sm:$0xff] %vm80, %v279
  %296 = vst.msk [vmem:[%s4 + $0x30] sm:$0xff] %vm80, %v280
  %297 = vst.msk [vmem:[%s4 + $0x38] sm:$0xff] %vm80, %v281
  %298 = vst.msk [vmem:[%s4 + $0x40] sm:$0xff] %vm80, %v282
  %299 = vst.msk [vmem:[%s4 + $0x48] sm:$0xff] %vm80, %v283
  %300 = vst.msk [vmem:[%s4 + $0x50] sm:$0xff] %vm80, %v284
  %301 = vst.msk [vmem:[%s4 + $0x58] sm:$0xff] %vm80, %v285
  %302 = vst.msk [vmem:[%s4 + $0x60] sm:$0xff] %vm80, %v286
  %303 = vst.msk [vmem:[%s4 + $0x68] sm:$0xff] %vm80, %v287
  %304 = vst.msk [vmem:[%s4 + $0x70] sm:$0xff] %vm80, %v288
  %305 = vst.msk [vmem:[%s4 + $0x78] sm:$0xff] %vm80, %v289
  // Predicated region
  $region18: #{forward.25} parent=0 // pred_check
    _
  $region19: #{forward.25} parent=0 // pred_check_branch
    %307 = sbr.rel (0) target = $region21
  $region20: #{forward.25} parent=0 // pred_region
    _
  $region21: #{forward.25} parent=0 // pred_fallthru
    _
  // Predicated region
  $region22: #{forward.25} parent=0 // pred_check
    _
  $region23: #{forward.25} parent=0 // pred_check_branch
    %309 = sbr.rel (0) target = $region25
  $region24: #{forward.25} parent=0 // pred_region
    _
  $region25: #{forward.25} parent=0 // pred_fallthru
    _

// kernel: forward.17
$region0: #{forward.17}
  #allocation0 [shape = 'u32[]', space=smem, size = 0x4, offset = 0x4, fixed_abs, tag = 'smem constant byte address 0x4 - core index']
  #allocation1 [shape = 'u32[144,128]{1,0:T(1,128)}', space=vmem, size = 0x12000, scoped, tag = 'internal scratch']
  %s0 = inlined_call_operand.vmem [shape: f32[512,64], index: 0, kind: input, shape index: {}]
  %s1 = inlined_call_operand.vmem [shape: f32[64,64], index: 1, kind: input, shape index: {}]
  %s2 = inlined_call_operand.vmem [shape: f32[1,64], index: 2, kind: input, shape index: {}]
  %s3 = inlined_call_operand.vmem [shape: f32[512,64], index: 3, kind: output, shape index: {}]
  %s4 = sld [smem:[#allocation0]]
  $region22: #{forward.17} parent=0
    _
  %s6 = ssub.s32 1, %s4
  %s7 = scalar_select 0, %s6, %s4
  // Predicated region
  $region2: #{forward.17} parent=0 // pred_check
    _
  $region3: #{forward.17} parent=0 // pred_check_branch
    %9 = sbr.rel (0) target = $region5
  $region4: #{forward.17} parent=0 // pred_region
    _
  $region5: #{forward.17} parent=0 // pred_fallthru
    _
  // Predicated region
  $region6: #{forward.17} parent=0 // pred_check
    _
  $region7: #{forward.17} parent=0 // pred_check_branch
    %11 = sbr.rel (0) target = $region9
  $region8: #{forward.17} parent=0 // pred_region
    _
  $region9: #{forward.17} parent=0 // pred_fallthru
    _
  // Predicated region
  $region10: #{forward.17} parent=0 // pred_check
    _
  $region11: #{forward.17} parent=0 // pred_check_branch
    %13 = sbr.rel (0) target = $region13
  $region12: #{forward.17} parent=0 // pred_region
    _
  $region13: #{forward.17} parent=0 // pred_fallthru
    _
  %v14 = vld [vmem:[%s0] sm:$0xff]
  %v15 = vld [vmem:[%s0 + $0x8] sm:$0xff]
  %v16 = vld [vmem:[%s0 + $0x10] sm:$0xff]
  %v17 = vld [vmem:[%s0 + $0x18] sm:$0xff]
  %v18 = vld [vmem:[%s0 + $0x20] sm:$0xff]
  %v19 = vld [vmem:[%s0 + $0x28] sm:$0xff]
  %v20 = vld [vmem:[%s0 + $0x30] sm:$0xff]
  %v21 = vld [vmem:[%s0 + $0x38] sm:$0xff]
  %v22 = vld [vmem:[%s0 + $0x40] sm:$0xff]
  %v23 = vld [vmem:[%s0 + $0x48] sm:$0xff]
  %v24 = vld [vmem:[%s0 + $0x50] sm:$0xff]
  %v25 = vld [vmem:[%s0 + $0x58] sm:$0xff]
  %v26 = vld [vmem:[%s0 + $0x60] sm:$0xff]
  %v27 = vld [vmem:[%s0 + $0x68] sm:$0xff]
  %v28 = vld [vmem:[%s0 + $0x70] sm:$0xff]
  %v29 = vld [vmem:[%s0 + $0x78] sm:$0xff]
  %v30 = vld [vmem:[%s0 + $0x80] sm:$0xff]
  %v31 = vld [vmem:[%s0 + $0x88] sm:$0xff]
  %v32 = vld [vmem:[%s0 + $0x90] sm:$0xff]
  %v33 = vld [vmem:[%s0 + $0x98] sm:$0xff]
  %v34 = vld [vmem:[%s0 + $0xa0] sm:$0xff]
  %v35 = vld [vmem:[%s0 + $0xa8] sm:$0xff]
  %v36 = vld [vmem:[%s0 + $0xb0] sm:$0xff]
  %v37 = vld [vmem:[%s0 + $0xb8] sm:$0xff]
  %v38 = vld [vmem:[%s0 + $0xc0] sm:$0xff]
  %v39 = vld [vmem:[%s0 + $0xc8] sm:$0xff]
  %v40 = vld [vmem:[%s0 + $0xd0] sm:$0xff]
  %v41 = vld [vmem:[%s0 + $0xd8] sm:$0xff]
  %v42 = vld [vmem:[%s0 + $0xe0] sm:$0xff]
  %v43 = vld [vmem:[%s0 + $0xe8] sm:$0xff]
  %v44 = vld [vmem:[%s0 + $0xf0] sm:$0xff]
  %v45 = vld [vmem:[%s0 + $0xf8] sm:$0xff]
  %v46 = vld [vmem:[%s0 + $0x100] sm:$0xff]
  %v47 = vld [vmem:[%s0 + $0x108] sm:$0xff]
  %v48 = vld [vmem:[%s0 + $0x110] sm:$0xff]
  %v49 = vld [vmem:[%s0 + $0x118] sm:$0xff]
  %v50 = vld [vmem:[%s0 + $0x120] sm:$0xff]
  %v51 = vld [vmem:[%s0 + $0x128] sm:$0xff]
  %v52 = vld [vmem:[%s0 + $0x130] sm:$0xff]
  %v53 = vld [vmem:[%s0 + $0x138] sm:$0xff]
  %v54 = vld [vmem:[%s0 + $0x140] sm:$0xff]
  %v55 = vld [vmem:[%s0 + $0x148] sm:$0xff]
  %v56 = vld [vmem:[%s0 + $0x150] sm:$0xff]
  %v57 = vld [vmem:[%s0 + $0x158] sm:$0xff]
  %v58 = vld [vmem:[%s0 + $0x160] sm:$0xff]
  %v59 = vld [vmem:[%s0 + $0x168] sm:$0xff]
  %v60 = vld [vmem:[%s0 + $0x170] sm:$0xff]
  %v61 = vld [vmem:[%s0 + $0x178] sm:$0xff]
  %v62 = vld [vmem:[%s0 + $0x180] sm:$0xff]
  %v63 = vld [vmem:[%s0 + $0x188] sm:$0xff]
  %v64 = vld [vmem:[%s0 + $0x190] sm:$0xff]
  %v65 = vld [vmem:[%s0 + $0x198] sm:$0xff]
  %v66 = vld [vmem:[%s0 + $0x1a0] sm:$0xff]
  %v67 = vld [vmem:[%s0 + $0x1a8] sm:$0xff]
  %v68 = vld [vmem:[%s0 + $0x1b0] sm:$0xff]
  %v69 = vld [vmem:[%s0 + $0x1b8] sm:$0xff]
  %v70 = vld [vmem:[%s0 + $0x1c0] sm:$0xff]
  %v71 = vld [vmem:[%s0 + $0x1c8] sm:$0xff]
  %v72 = vld [vmem:[%s0 + $0x1d0] sm:$0xff]
  %v73 = vld [vmem:[%s0 + $0x1d8] sm:$0xff]
  %v74 = vld [vmem:[%s0 + $0x1e0] sm:$0xff]
  %v75 = vld [vmem:[%s0 + $0x1e8] sm:$0xff]
  %v76 = vld [vmem:[%s0 + $0x1f0] sm:$0xff]
  %v77 = vld [vmem:[%s0 + $0x1f8] sm:$0xff]
  %v78 = vld [vmem:[%s1] sm:$0xff]
  %v79 = vld [vmem:[%s1 + $0x8] sm:$0xff]
  %v80 = vld [vmem:[%s1 + $0x10] sm:$0xff]
  %v81 = vld [vmem:[%s1 + $0x18] sm:$0xff]
  %v82 = vld [vmem:[%s1 + $0x20] sm:$0xff]
  %v83 = vld [vmem:[%s1 + $0x28] sm:$0xff]
  %v84 = vld [vmem:[%s1 + $0x30] sm:$0xff]
  %v85 = vld [vmem:[%s1 + $0x38] sm:$0xff]
  %v86 = vld [vmem:[%s2] sm:$0x1]
  %v88 = vlaneseq
  %v89 = vshrl.u32 %v88, 7
  %v90 = vsub.s32 0, %v89
  %v91 = vrot.slane %v86, %v90
  %vm93 = vcmask 523264
  %v95 = vsel %vm93, %v14, 0
  %v98 = vsel %vm93, %v15, 0
  %v101 = vsel %vm93, %v16, 0
  %v104 = vsel %vm93, %v17, 0
  %v107 = vsel %vm93, %v18, 0
  %v110 = vsel %vm93, %v19, 0
  %v113 = vsel %vm93, %v20, 0
  %v116 = vsel %vm93, %v21, 0
  %v119 = vsel %vm93, %v22, 0
  %v122 = vsel %vm93, %v23, 0
  %v125 = vsel %vm93, %v24, 0
  %v128 = vsel %vm93, %v25, 0
  %v131 = vsel %vm93, %v26, 0
  %v134 = vsel %vm93, %v27, 0
  %v137 = vsel %vm93, %v28, 0
  %v140 = vsel %vm93, %v29, 0
  %v143 = vsel %vm93, %v30, 0
  %v146 = vsel %vm93, %v31, 0
  %v149 = vsel %vm93, %v32, 0
  %v152 = vsel %vm93, %v33, 0
  %v155 = vsel %vm93, %v34, 0
  %v158 = vsel %vm93, %v35, 0
  %v161 = vsel %vm93, %v36, 0
  %v164 = vsel %vm93, %v37, 0
  %v167 = vsel %vm93, %v38, 0
  %v170 = vsel %vm93, %v39, 0
  %v173 = vsel %vm93, %v40, 0
  %v176 = vsel %vm93, %v41, 0
  %v179 = vsel %vm93, %v42, 0
  %v182 = vsel %vm93, %v43, 0
  %v185 = vsel %vm93, %v44, 0
  %v188 = vsel %vm93, %v45, 0
  %v191 = vsel %vm93, %v46, 0
  %v194 = vsel %vm93, %v47, 0
  %v197 = vsel %vm93, %v48, 0
  %v200 = vsel %vm93, %v49, 0
  %v203 = vsel %vm93, %v50, 0
  %v206 = vsel %vm93, %v51, 0
  %v209 = vsel %vm93, %v52, 0
  %v212 = vsel %vm93, %v53, 0
  %v215 = vsel %vm93, %v54, 0
  %v218 = vsel %vm93, %v55, 0
  %v221 = vsel %vm93, %v56, 0
  %v224 = vsel %vm93, %v57, 0
  %v227 = vsel %vm93, %v58, 0
  %v230 = vsel %vm93, %v59, 0
  %v233 = vsel %vm93, %v60, 0
  %v236 = vsel %vm93, %v61, 0
  %v239 = vsel %vm93, %v62, 0
  %v242 = vsel %vm93, %v63, 0
  %v245 = vsel %vm93, %v64, 0
  %v248 = vsel %vm93, %v65, 0
  %v251 = vsel %vm93, %v66, 0
  %v254 = vsel %vm93, %v67, 0
  %v257 = vsel %vm93, %v68, 0
  %v260 = vsel %vm93, %v69, 0
  %v263 = vsel %vm93, %v70, 0
  %v266 = vsel %vm93, %v71, 0
  %v269 = vsel %vm93, %v72, 0
  %v272 = vsel %vm93, %v73, 0
  %v275 = vsel %vm93, %v74, 0
  %v278 = vsel %vm93, %v75, 0
  %v281 = vsel %vm93, %v76, 0
  %v284 = vsel %vm93, %v77, 0
  %286 = vmatprep.subr.mxu0 0.0
  %287 = vmatpush1.msra.mxu0 %v78
  %288 = vmatprep.subr.mxu0 0.0
  %289 = vmatpush1.msra.mxu0 %v79
  %290 = vmatprep.subr.mxu0 0.0
  %291 = vmatpush1.msra.mxu0 %v80
  %292 = vmatprep.subr.mxu0 0.0
  %293 = vmatpush1.msra.mxu0 %v81
  %294 = vmatprep.subr.mxu0 0.0
  %295 = vmatpush1.msra.mxu0 %v82
  %296 = vmatprep.subr.mxu0 0.0
  %297 = vmatpush1.msra.mxu0 %v83
  %298 = vmatprep.subr.mxu0 0.0
  %299 = vmatpush1.msra.mxu0 %v84
  %300 = vmatprep.subr.mxu0 0.0
  %301 = vmatpush1.msra.mxu0 %v85
  %302 = vmatprep.subr.mxu0 0.0
  %303 = vmatpush1.msra.mxu0 0.0
  %304 = vmatprep.subr.mxu0 0.0
  %305 = vmatpush1.msra.mxu0 0.0
  %306 = vmatprep.subr.mxu0 0.0
  %307 = vmatpush1.msra.mxu0 0.0
  %308 = vmatprep.subr.mxu0 0.0
  %309 = vmatpush1.msra.mxu0 0.0
  %310 = vmatprep.subr.mxu0 0.0
  %311 = vmatpush1.msra.mxu0 0.0
  %312 = vmatprep.subr.mxu0 0.0
  %313 = vmatpush1.msra.mxu0 0.0
  %314 = vmatprep.subr.mxu0 0.0
  %315 = vmatpush1.msra.mxu0 0.0
  %316 = vmatprep.subr.mxu0 0.0
  %317 = vmatpush1.msra.mxu0 0.0
  %318 = vmatprep.subr.mxu0 0.0
  %319 = vmatpush1.msra.mxu0 0.0
  %320 = vmatprep.subr.mxu0 0.0
  %321 = vmatpush1.msra.mxu0 0.0
  %322 = vmatprep.subr.mxu0 0.0
  %323 = vmatpush1.msra.mxu0 0.0
  %324 = vmatprep.subr.mxu0 0.0
  %325 = vmatpush1.msra.mxu0 0.0
  %326 = vmatprep.subr.mxu0 0.0
  %327 = vmatpush1.msra.mxu0 0.0
  %328 = vmatprep.subr.mxu0 0.0
  %329 = vmatpush1.msra.mxu0 0.0
  %330 = vmatprep.subr.mxu0 0.0
  %331 = vmatpush1.msra.mxu0 0.0
  %332 = vmatprep.subr.mxu0 0.0
  %333 = vmatpush1.msra.mxu0 0.0
  %334 = vmatprep.subr.mxu0 0.0
  %335 = vmatpush1.msra.mxu0 0.0
  %336 = vmatprep.subr.mxu0 0.0
  %337 = vmatpush1.msra.mxu0 0.0
  %338 = vmatprep.subr.mxu0 0.0
  %339 = vmatpush1.msra.mxu0 0.0
  %340 = vmatprep.subr.mxu0 0.0
  %341 = vmatpush1.msra.mxu0 0.0
  %342 = vmatprep.subr.mxu0 0.0
  %343 = vmatpush1.msra.mxu0 0.0
  %344 = vmatprep.subr.mxu0 0.0
  %345 = vmatpush1.msra.mxu0 0.0
  %346 = vmatprep.subr.mxu0 0.0
  %347 = vmatpush1.msra.mxu0 0.0
  %348 = vmatprep.subr.mxu0 0.0
  %349 = vmatpush1.msra.mxu0 0.0
  %350 = vmatprep.mubr.f32.mxu0 0.0
  %351 = vmatmul.mubr.f32.gmra.mrb[0].mxu0 %v95
  %v352 = vpop.f32.mrb[0].mxu0
  %v353 = vadd.f32 %v91, %v352
  %v354 = vpop.f32.mrb[0].mxu0
  %355 = vmatprep.mubr.f32.mxu0 0.0
  %356 = vmatmul.mubr.f32.gmra.mrb[0].mxu0 %v98
  %v357 = vpop.f32.mrb[0].mxu0
  %v358 = vadd.f32 %v91, %v357
  %v359 = vpop.f32.mrb[0].mxu0
  %360 = vmatprep.mubr.f32.mxu0 0.0
  %361 = vmatmul.mubr.f32.gmra.mrb[0].mxu0 %v101
  %v362 = vpop.f32.mrb[0].mxu0
  %v363 = vadd.f32 %v91, %v362
  %v364 = vpop.f32.mrb[0].mxu0
  %365 = vmatprep.mubr.f32.mxu0 0.0
  %366 = vmatmul.mubr.f32.gmra.mrb[0].mxu0 %v104
  %v367 = vpop.f32.mrb[0].mxu0
  %v368 = vadd.f32 %v91, %v367
  %v369 = vpop.f32.mrb[0].mxu0
  %370 = vmatprep.mubr.f32.mxu0 0.0
  %371 = vmatmul.mubr.f32.gmra.mrb[0].mxu0 %v107
  %v372 = vpop.f32.mrb[0].mxu0
  %v373 = vadd.f32 %v91, %v372
  %v374 = vpop.f32.mrb[0].mxu0
  %375 = vmatprep.mubr.f32.mxu0 0.0
  %376 = vmatmul.mubr.f32.gmra.mrb[0].mxu0 %v110
  %v377 = vpop.f32.mrb[0].mxu0
  %v378 = vadd.f32 %v91, %v377
  %v379 = vpop.f32.mrb[0].mxu0
  %380 = vmatprep.mubr.f32.mxu0 0.0
  %381 = vmatmul.mubr.f32.gmra.mrb[0].mxu0 %v113
  %v382 = vpop.f32.mrb[0].mxu0
  %v383 = vadd.f32 %v91, %v382
  %v384 = vpop.f32.mrb[0].mxu0
  %385 = vmatprep.mubr.f32.mxu0 0.0
  %386 = vmatmul.mubr.f32.gmra.mrb[0].mxu0 %v116
  %v387 = vpop.f32.mrb[0].mxu0
  %v388 = vadd.f32 %v91, %v387
  %v389 = vpop.f32.mrb[0].mxu0
  %390 = vmatprep.mubr.f32.mxu0 0.0
  %391 = vmatmul.mubr.f32.gmra.mrb[0].mxu0 %v119
  %v392 = vpop.f32.mrb[0].mxu0
  %v393 = vadd.f32 %v91, %v392
  %v394 = vpop.f32.mrb[0].mxu0
  %395 = vmatprep.mubr.f32.mxu0 0.0
  %396 = vmatmul.mubr.f32.gmra.mrb[0].mxu0 %v122
  %v397 = vpop.f32.mrb[0].mxu0
  %v398 = vadd.f32 %v91, %v397
  %v399 = vpop.f32.mrb[0].mxu0
  %400 = vmatprep.mubr.f32.mxu0 0.0
  %401 = vmatmul.mubr.f32.gmra.mrb[0].mxu0 %v125
  %v402 = vpop.f32.mrb[0].mxu0
  %v403 = vadd.f32 %v91, %v402
  %v404 = vpop.f32.mrb[0].mxu0
  %405 = vmatprep.mubr.f32.mxu0 0.0
  %406 = vmatmul.mubr.f32.gmra.mrb[0].mxu0 %v128
  %v407 = vpop.f32.mrb[0].mxu0
  %v408 = vadd.f32 %v91, %v407
  %v409 = vpop.f32.mrb[0].mxu0
  %410 = vmatprep.mubr.f32.mxu0 0.0
  %411 = vmatmul.mubr.f32.gmra.mrb[0].mxu0 %v131
  %v412 = vpop.f32.mrb[0].mxu0
  %v413 = vadd.f32 %v91, %v412
  %v414 = vpop.f32.mrb[0].mxu0
  %415 = vmatprep.mubr.f32.mxu0 0.0
  %416 = vmatmul.mubr.f32.gmra.mrb[0].mxu0 %v134
  %v417 = vpop.f32.mrb[0].mxu0
  %v418 = vadd.f32 %v91, %v417
  %v419 = vpop.f32.mrb[0].mxu0
  %420 = vmatprep.mubr.f32.mxu0 0.0
  %421 = vmatmul.mubr.f32.gmra.mrb[0].mxu0 %v137
  %v422 = vpop.f32.mrb[0].mxu0
  %v423 = vadd.f32 %v91, %v422
  %v424 = vpop.f32.mrb[0].mxu0
  %425 = vmatprep.mubr.f32.mxu0 0.0
  %426 = vmatmul.mubr.f32.gmra.mrb[0].mxu0 %v140
  %v427 = vpop.f32.mrb[0].mxu0
  %v428 = vadd.f32 %v91, %v427
  %v429 = vpop.f32.mrb[0].mxu0
  %430 = vmatprep.mubr.f32.mxu0 0.0
  %431 = vmatmul.mubr.f32.gmra.mrb[0].mxu0 %v143
  %v432 = vpop.f32.mrb[0].mxu0
  %v433 = vadd.f32 %v91, %v432
  %v434 = vpop.f32.mrb[0].mxu0
  %435 = vmatprep.mubr.f32.mxu0 0.0
  %436 = vmatmul.mubr.f32.gmra.mrb[0].mxu0 %v146
  %v437 = vpop.f32.mrb[0].mxu0
  %v438 = vadd.f32 %v91, %v437
  %v439 = vpop.f32.mrb[0].mxu0
  %440 = vmatprep.mubr.f32.mxu0 0.0
  %441 = vmatmul.mubr.f32.gmra.mrb[0].mxu0 %v149
  %v442 = vpop.f32.mrb[0].mxu0
  %v443 = vadd.f32 %v91, %v442
  %v444 = vpop.f32.mrb[0].mxu0
  %445 = vmatprep.mubr.f32.mxu0 0.0
  %446 = vmatmul.mubr.f32.gmra.mrb[0].mxu0 %v152
  %v447 = vpop.f32.mrb[0].mxu0
  %v448 = vadd.f32 %v91, %v447
  %v449 = vpop.f32.mrb[0].mxu0
  %450 = vmatprep.mubr.f32.mxu0 0.0
  %451 = vmatmul.mubr.f32.gmra.mrb[0].mxu0 %v155
  %v452 = vpop.f32.mrb[0].mxu0
  %v453 = vadd.f32 %v91, %v452
  %v454 = vpop.f32.mrb[0].mxu0
  %455 = vmatprep.mubr.f32.mxu0 0.0
  %456 = vmatmul.mubr.f32.gmra.mrb[0].mxu0 %v158
  %v457 = vpop.f32.mrb[0].mxu0
  %v458 = vadd.f32 %v91, %v457
  %v459 = vpop.f32.mrb[0].mxu0
  %460 = vmatprep.mubr.f32.mxu0 0.0
  %461 = vmatmul.mubr.f32.gmra.mrb[0].mxu0 %v161
  %v462 = vpop.f32.mrb[0].mxu0
  %v463 = vadd.f32 %v91, %v462
  %v464 = vpop.f32.mrb[0].mxu0
  %465 = vmatprep.mubr.f32.mxu0 0.0
  %466 = vmatmul.mubr.f32.gmra.mrb[0].mxu0 %v164
  %v467 = vpop.f32.mrb[0].mxu0
  %v468 = vadd.f32 %v91, %v467
  %v469 = vpop.f32.mrb[0].mxu0
  %470 = vmatprep.mubr.f32.mxu0 0.0
  %471 = vmatmul.mubr.f32.gmra.mrb[0].mxu0 %v167
  %v472 = vpop.f32.mrb[0].mxu0
  %v473 = vadd.f32 %v91, %v472
  %v474 = vpop.f32.mrb[0].mxu0
  %475 = vmatprep.mubr.f32.mxu0 0.0
  %476 = vmatmul.mubr.f32.gmra.mrb[0].mxu0 %v170
  %v477 = vpop.f32.mrb[0].mxu0
  %v478 = vadd.f32 %v91, %v477
  %v479 = vpop.f32.mrb[0].mxu0
  %480 = vmatprep.mubr.f32.mxu0 0.0
  %481 = vmatmul.mubr.f32.gmra.mrb[0].mxu0 %v173
  %v482 = vpop.f32.mrb[0].mxu0
  %v483 = vadd.f32 %v91, %v482
  %v484 = vpop.f32.mrb[0].mxu0
  %485 = vmatprep.mubr.f32.mxu0 0.0
  %486 = vmatmul.mubr.f32.gmra.mrb[0].mxu0 %v176
  %v487 = vpop.f32.mrb[0].mxu0
  %v488 = vadd.f32 %v91, %v487
  %v489 = vpop.f32.mrb[0].mxu0
  %490 = vmatprep.mubr.f32.mxu0 0.0
  %491 = vmatmul.mubr.f32.gmra.mrb[0].mxu0 %v179
  %v492 = vpop.f32.mrb[0].mxu0
  %v493 = vadd.f32 %v91, %v492
  %v494 = vpop.f32.mrb[0].mxu0
  %495 = vmatprep.mubr.f32.mxu0 0.0
  %496 = vmatmul.mubr.f32.gmra.mrb[0].mxu0 %v182
  %v497 = vpop.f32.mrb[0].mxu0
  %v498 = vadd.f32 %v91, %v497
  %v499 = vpop.f32.mrb[0].mxu0
  %500 = vmatprep.mubr.f32.mxu0 0.0
  %501 = vmatmul.mubr.f32.gmra.mrb[0].mxu0 %v185
  %v502 = vpop.f32.mrb[0].mxu0
  %v503 = vadd.f32 %v91, %v502
  %v504 = vpop.f32.mrb[0].mxu0
  %505 = vmatprep.mubr.f32.mxu0 0.0
  %506 = vmatmul.mubr.f32.gmra.mrb[0].mxu0 %v188
  %v507 = vpop.f32.mrb[0].mxu0
  %v508 = vadd.f32 %v91, %v507
  %v509 = vpop.f32.mrb[0].mxu0
  %510 = vmatprep.mubr.f32.mxu0 0.0
  %511 = vmatmul.mubr.f32.gmra.mrb[0].mxu0 %v191
  %v512 = vpop.f32.mrb[0].mxu0
  %v513 = vadd.f32 %v91, %v512
  %v514 = vpop.f32.mrb[0].mxu0
  %515 = vmatprep.mubr.f32.mxu0 0.0
  %516 = vmatmul.mubr.f32.gmra.mrb[0].mxu0 %v194
  %v517 = vpop.f32.mrb[0].mxu0
  %v518 = vadd.f32 %v91, %v517
  %v519 = vpop.f32.mrb[0].mxu0
  %520 = vmatprep.mubr.f32.mxu0 0.0
  %521 = vmatmul.mubr.f32.gmra.mrb[0].mxu0 %v197
  %v522 = vpop.f32.mrb[0].mxu0
  %v523 = vadd.f32 %v91, %v522
  %v524 = vpop.f32.mrb[0].mxu0
  %525 = vmatprep.mubr.f32.mxu0 0.0
  %526 = vmatmul.mubr.f32.gmra.mrb[0].mxu0 %v200
  %v527 = vpop.f32.mrb[0].mxu0
  %v528 = vadd.f32 %v91, %v527
  %v529 = vpop.f32.mrb[0].mxu0
  %530 = vmatprep.mubr.f32.mxu0 0.0
  %531 = vmatmul.mubr.f32.gmra.mrb[0].mxu0 %v203
  %v532 = vpop.f32.mrb[0].mxu0
  %v533 = vadd.f32 %v91, %v532
  %v534 = vpop.f32.mrb[0].mxu0
  %535 = vmatprep.mubr.f32.mxu0 0.0
  %536 = vmatmul.mubr.f32.gmra.mrb[0].mxu0 %v206
  %v537 = vpop.f32.mrb[0].mxu0
  %v538 = vadd.f32 %v91, %v537
  %v539 = vpop.f32.mrb[0].mxu0
  %540 = vmatprep.mubr.f32.mxu0 0.0
  %541 = vmatmul.mubr.f32.gmra.mrb[0].mxu0 %v209
  %v542 = vpop.f32.mrb[0].mxu0
  %v543 = vadd.f32 %v91, %v542
  %v544 = vpop.f32.mrb[0].mxu0
  %545 = vmatprep.mubr.f32.mxu0 0.0
  %546 = vmatmul.mubr.f32.gmra.mrb[0].mxu0 %v212
  %v547 = vpop.f32.mrb[0].mxu0
  %v548 = vadd.f32 %v91, %v547
  %v549 = vpop.f32.mrb[0].mxu0
  %550 = vmatprep.mubr.f32.mxu0 0.0
  %551 = vmatmul.mubr.f32.gmra.mrb[0].mxu0 %v215
  %v552 = vpop.f32.mrb[0].mxu0
  %v553 = vadd.f32 %v91, %v552
  %v554 = vpop.f32.mrb[0].mxu0
  %555 = vmatprep.mubr.f32.mxu0 0.0
  %556 = vmatmul.mubr.f32.gmra.mrb[0].mxu0 %v218
  %v557 = vpop.f32.mrb[0].mxu0
  %v558 = vadd.f32 %v91, %v557
  %v559 = vpop.f32.mrb[0].mxu0
  %560 = vmatprep.mubr.f32.mxu0 0.0
  %561 = vmatmul.mubr.f32.gmra.mrb[0].mxu0 %v221
  %v562 = vpop.f32.mrb[0].mxu0
  %v563 = vadd.f32 %v91, %v562
  %v564 = vpop.f32.mrb[0].mxu0
  %565 = vmatprep.mubr.f32.mxu0 0.0
  %566 = vmatmul.mubr.f32.gmra.mrb[0].mxu0 %v224
  %v567 = vpop.f32.mrb[0].mxu0
  %v568 = vadd.f32 %v91, %v567
  %v569 = vpop.f32.mrb[0].mxu0
  %570 = vmatprep.mubr.f32.mxu0 0.0
  %571 = vmatmul.mubr.f32.gmra.mrb[0].mxu0 %v227
  %v572 = vpop.f32.mrb[0].mxu0
  %v573 = vadd.f32 %v91, %v572
  %v574 = vpop.f32.mrb[0].mxu0
  %575 = vmatprep.mubr.f32.mxu0 0.0
  %576 = vmatmul.mubr.f32.gmra.mrb[0].mxu0 %v230
  %v577 = vpop.f32.mrb[0].mxu0
  %v578 = vadd.f32 %v91, %v577
  %v579 = vpop.f32.mrb[0].mxu0
  %580 = vmatprep.mubr.f32.mxu0 0.0
  %581 = vmatmul.mubr.f32.gmra.mrb[0].mxu0 %v233
  %v582 = vpop.f32.mrb[0].mxu0
  %v583 = vadd.f32 %v91, %v582
  %v584 = vpop.f32.mrb[0].mxu0
  %585 = vmatprep.mubr.f32.mxu0 0.0
  %586 = vmatmul.mubr.f32.gmra.mrb[0].mxu0 %v236
  %v587 = vpop.f32.mrb[0].mxu0
  %v588 = vadd.f32 %v91, %v587
  %v589 = vpop.f32.mrb[0].mxu0
  %590 = vmatprep.mubr.f32.mxu0 0.0
  %591 = vmatmul.mubr.f32.gmra.mrb[0].mxu0 %v239
  %v592 = vpop.f32.mrb[0].mxu0
  %v593 = vadd.f32 %v91, %v592
  %v594 = vpop.f32.mrb[0].mxu0
  %595 = vmatprep.mubr.f32.mxu0 0.0
  %596 = vmatmul.mubr.f32.gmra.mrb[0].mxu0 %v242
  %v597 = vpop.f32.mrb[0].mxu0
  %v598 = vadd.f32 %v91, %v597
  %v599 = vpop.f32.mrb[0].mxu0
  %600 = vmatprep.mubr.f32.mxu0 0.0
  %601 = vmatmul.mubr.f32.gmra.mrb[0].mxu0 %v245
  %v602 = vpop.f32.mrb[0].mxu0
  %v603 = vadd.f32 %v91, %v602
  %v604 = vpop.f32.mrb[0].mxu0
  %605 = vmatprep.mubr.f32.mxu0 0.0
  %606 = vmatmul.mubr.f32.gmra.mrb[0].mxu0 %v248
  %v607 = vpop.f32.mrb[0].mxu0
  %v608 = vadd.f32 %v91, %v607
  %v609 = vpop.f32.mrb[0].mxu0
  %610 = vmatprep.mubr.f32.mxu0 0.0
  %611 = vmatmul.mubr.f32.gmra.mrb[0].mxu0 %v251
  %v612 = vpop.f32.mrb[0].mxu0
  %v613 = vadd.f32 %v91, %v612
  %v614 = vpop.f32.mrb[0].mxu0
  %615 = vmatprep.mubr.f32.mxu0 0.0
  %616 = vmatmul.mubr.f32.gmra.mrb[0].mxu0 %v254
  %v617 = vpop.f32.mrb[0].mxu0
  %v618 = vadd.f32 %v91, %v617
  %v619 = vpop.f32.mrb[0].mxu0
  %620 = vmatprep.mubr.f32.mxu0 0.0
  %621 = vmatmul.mubr.f32.gmra.mrb[0].mxu0 %v257
  %v622 = vpop.f32.mrb[0].mxu0
  %v623 = vadd.f32 %v91, %v622
  %v624 = vpop.f32.mrb[0].mxu0
  %625 = vmatprep.mubr.f32.mxu0 0.0
  %626 = vmatmul.mubr.f32.gmra.mrb[0].mxu0 %v260
  %v627 = vpop.f32.mrb[0].mxu0
  %v628 = vadd.f32 %v91, %v627
  %v629 = vpop.f32.mrb[0].mxu0
  %630 = vmatprep.mubr.f32.mxu0 0.0
  %631 = vmatmul.mubr.f32.gmra.mrb[0].mxu0 %v263
  %v632 = vpop.f32.mrb[0].mxu0
  %v633 = vadd.f32 %v91, %v632
  %v634 = vpop.f32.mrb[0].mxu0
  %635 = vmatprep.mubr.f32.mxu0 0.0
  %636 = vmatmul.mubr.f32.gmra.mrb[0].mxu0 %v266
  %v637 = vpop.f32.mrb[0].mxu0
  %v638 = vadd.f32 %v91, %v637
  %v639 = vpop.f32.mrb[0].mxu0
  %640 = vmatprep.mubr.f32.mxu0 0.0
  %641 = vmatmul.mubr.f32.gmra.mrb[0].mxu0 %v269
  %v642 = vpop.f32.mrb[0].mxu0
  %v643 = vadd.f32 %v91, %v642
  %v644 = vpop.f32.mrb[0].mxu0
  %645 = vmatprep.mubr.f32.mxu0 0.0
  %646 = vmatmul.mubr.f32.gmra.mrb[0].mxu0 %v272
  %v647 = vpop.f32.mrb[0].mxu0
  %v648 = vadd.f32 %v91, %v647
  %v649 = vpop.f32.mrb[0].mxu0
  %650 = vmatprep.mubr.f32.mxu0 0.0
  %651 = vmatmul.mubr.f32.gmra.mrb[0].mxu0 %v275
  %v652 = vpop.f32.mrb[0].mxu0
  %v653 = vadd.f32 %v91, %v652
  %v654 = vpop.f32.mrb[0].mxu0
  %655 = vmatprep.mubr.f32.mxu0 0.0
  %656 = vmatmul.mubr.f32.gmra.mrb[0].mxu0 %v278
  %v657 = vpop.f32.mrb[0].mxu0
  %v658 = vadd.f32 %v91, %v657
  %v659 = vpop.f32.mrb[0].mxu0
  %660 = vmatprep.mubr.f32.mxu0 0.0
  %661 = vmatmul.mubr.f32.gmra.mrb[0].mxu0 %v281
  %v662 = vpop.f32.mrb[0].mxu0
  %v663 = vadd.f32 %v91, %v662
  %v664 = vpop.f32.mrb[0].mxu0
  %665 = vmatprep.mubr.f32.mxu0 0.0
  %666 = vmatmul.mubr.f32.gmra.mrb[0].mxu0 %v284
  %v667 = vpop.f32.mrb[0].mxu0
  %v668 = vadd.f32 %v91, %v667
  %v669 = vpop.f32.mrb[0].mxu0
  %670 = vdwg.mxu0
  %671 = vst.msk [vmem:[%s3] sm:$0xff] %vm93, %v353
  %672 = vst.msk [vmem:[%s3 + $0x8] sm:$0xff] %vm93, %v358
  %673 = vst.msk [vmem:[%s3 + $0x10] sm:$0xff] %vm93, %v363
  %674 = vst.msk [vmem:[%s3 + $0x18] sm:$0xff] %vm93, %v368
  %675 = vst.msk [vmem:[%s3 + $0x20] sm:$0xff] %vm93, %v373
  %676 = vst.msk [vmem:[%s3 + $0x28] sm:$0xff] %vm93, %v378
  %677 = vst.msk [vmem:[%s3 + $0x30] sm:$0xff] %vm93, %v383
  %678 = vst.msk [vmem:[%s3 + $0x38] sm:$0xff] %vm93, %v388
  %679 = vst.msk [vmem:[%s3 + $0x40] sm:$0xff] %vm93, %v393
  %680 = vst.msk [vmem:[%s3 + $0x48] sm:$0xff] %vm93, %v398
  %681 = vst.msk [vmem:[%s3 + $0x50] sm:$0xff] %vm93, %v403
  %682 = vst.msk [vmem:[%s3 + $0x58] sm:$0xff] %vm93, %v408
  %683 = vst.msk [vmem:[%s3 + $0x60] sm:$0xff] %vm93, %v413
  %684 = vst.msk [vmem:[%s3 + $0x68] sm:$0xff] %vm93, %v418
  %685 = vst.msk [vmem:[%s3 + $0x70] sm:$0xff] %vm93, %v423
  %686 = vst.msk [vmem:[%s3 + $0x78] sm:$0xff] %vm93, %v428
  %687 = vst.msk [vmem:[%s3 + $0x80] sm:$0xff] %vm93, %v433
  %688 = vst.msk [vmem:[%s3 + $0x88] sm:$0xff] %vm93, %v438
  %689 = vst.msk [vmem:[%s3 + $0x90] sm:$0xff] %vm93, %v443
  %690 = vst.msk [vmem:[%s3 + $0x98] sm:$0xff] %vm93, %v448
  %691 = vst.msk [vmem:[%s3 + $0xa0] sm:$0xff] %vm93, %v453
  %692 = vst.msk [vmem:[%s3 + $0xa8] sm:$0xff] %vm93, %v458
  %693 = vst.msk [vmem:[%s3 + $0xb0] sm:$0xff] %vm93, %v463
  %694 = vst.msk [vmem:[%s3 + $0xb8] sm:$0xff] %vm93, %v468
  %695 = vst.msk [vmem:[%s3 + $0xc0] sm:$0xff] %vm93, %v473
  %696 = vst.msk [vmem:[%s3 + $0xc8] sm:$0xff] %vm93, %v478
  %697 = vst.msk [vmem:[%s3 + $0xd0] sm:$0xff] %vm93, %v483
  %698 = vst.msk [vmem:[%s3 + $0xd8] sm:$0xff] %vm93, %v488
  %699 = vst.msk [vmem:[%s3 + $0xe0] sm:$0xff] %vm93, %v493
  %700 = vst.msk [vmem:[%s3 + $0xe8] sm:$0xff] %vm93, %v498
  %701 = vst.msk [vmem:[%s3 + $0xf0] sm:$0xff] %vm93, %v503
  %702 = vst.msk [vmem:[%s3 + $0xf8] sm:$0xff] %vm93, %v508
  %703 = vst.msk [vmem:[%s3 + $0x100] sm:$0xff] %vm93, %v513
  %704 = vst.msk [vmem:[%s3 + $0x108] sm:$0xff] %vm93, %v518
  %705 = vst.msk [vmem:[%s3 + $0x110] sm:$0xff] %vm93, %v523
  %706 = vst.msk [vmem:[%s3 + $0x118] sm:$0xff] %vm93, %v528
  %707 = vst.msk [vmem:[%s3 + $0x120] sm:$0xff] %vm93, %v533
  %708 = vst.msk [vmem:[%s3 + $0x128] sm:$0xff] %vm93, %v538
  %709 = vst.msk [vmem:[%s3 + $0x130] sm:$0xff] %vm93, %v543
  %710 = vst.msk [vmem:[%s3 + $0x138] sm:$0xff] %vm93, %v548
  %711 = vst.msk [vmem:[%s3 + $0x140] sm:$0xff] %vm93, %v553
  %712 = vst.msk [vmem:[%s3 + $0x148] sm:$0xff] %vm93, %v558
  %713 = vst.msk [vmem:[%s3 + $0x150] sm:$0xff] %vm93, %v563
  %714 = vst.msk [vmem:[%s3 + $0x158] sm:$0xff] %vm93, %v568
  %715 = vst.msk [vmem:[%s3 + $0x160] sm:$0xff] %vm93, %v573
  %716 = vst.msk [vmem:[%s3 + $0x168] sm:$0xff] %vm93, %v578
  %717 = vst.msk [vmem:[%s3 + $0x170] sm:$0xff] %vm93, %v583
  %718 = vst.msk [vmem:[%s3 + $0x178] sm:$0xff] %vm93, %v588
  %719 = vst.msk [vmem:[%s3 + $0x180] sm:$0xff] %vm93, %v593
  %720 = vst.msk [vmem:[%s3 + $0x188] sm:$0xff] %vm93, %v598
  %721 = vst.msk [vmem:[%s3 + $0x190] sm:$0xff] %vm93, %v603
  %722 = vst.msk [vmem:[%s3 + $0x198] sm:$0xff] %vm93, %v608
  %723 = vst.msk [vmem:[%s3 + $0x1a0] sm:$0xff] %vm93, %v613
  %724 = vst.msk [vmem:[%s3 + $0x1a8] sm:$0xff] %vm93, %v618
  %725 = vst.msk [vmem:[%s3 + $0x1b0] sm:$0xff] %vm93, %v623
  %726 = vst.msk [vmem:[%s3 + $0x1b8] sm:$0xff] %vm93, %v628
  %727 = vst.msk [vmem:[%s3 + $0x1c0] sm:$0xff] %vm93, %v633
  %728 = vst.msk [vmem:[%s3 + $0x1c8] sm:$0xff] %vm93, %v638
  %729 = vst.msk [vmem:[%s3 + $0x1d0] sm:$0xff] %vm93, %v643
  %730 = vst.msk [vmem:[%s3 + $0x1d8] sm:$0xff] %vm93, %v648
  %731 = vst.msk [vmem:[%s3 + $0x1e0] sm:$0xff] %vm93, %v653
  %732 = vst.msk [vmem:[%s3 + $0x1e8] sm:$0xff] %vm93, %v658
  %733 = vst.msk [vmem:[%s3 + $0x1f0] sm:$0xff] %vm93, %v663
  %734 = vst.msk [vmem:[%s3 + $0x1f8] sm:$0xff] %vm93, %v668
  // Predicated region
  $region14: #{forward.17} parent=0 // pred_check
    _
  $region15: #{forward.17} parent=0 // pred_check_branch
    %736 = sbr.rel (0) target = $region17
  $region16: #{forward.17} parent=0 // pred_region
    _
  $region17: #{forward.17} parent=0 // pred_fallthru
    _
  // Predicated region
  $region18: #{forward.17} parent=0 // pred_check
    _
  $region19: #{forward.17} parent=0 // pred_check_branch
    %738 = sbr.rel (0) target = $region21
  $region20: #{forward.17} parent=0 // pred_region
    _
  $region21: #{forward.17} parent=0 // pred_fallthru
    _

// kernel: forward.26
$region0: #{forward.26}
  #allocation0 [shape = 'u32[]', space=smem, size = 0x4, offset = 0x4, fixed_abs, tag = 'smem constant byte address 0x4 - core index']
  #allocation1 [shape = 'u32[144,128]{1,0:T(1,128)}', space=vmem, size = 0x12000, scoped, tag = 'internal scratch']
  %s0 = inlined_call_operand.vmem [shape: f32[512,64], index: 0, kind: input, shape index: {}]
  %s1 = inlined_call_operand.vmem [shape: f32[512,64], index: 1, kind: input, shape index: {}]
  %s2 = inlined_call_operand.vmem [shape: f32[64,64], index: 2, kind: input, shape index: {}]
  %s3 = inlined_call_operand.vmem [shape: f32[1,64], index: 3, kind: input, shape index: {}]
  %s4 = inlined_call_operand.vmem [shape: f32[512,64], index: 4, kind: output, shape index: {}]
  %s5 = sld [smem:[#allocation0]]
  $region26: #{forward.26} parent=0
    _
  %s7 = ssub.s32 1, %s5
  %s8 = scalar_select 0, %s7, %s5
  // Predicated region
  $region2: #{forward.26} parent=0 // pred_check
    _
  $region3: #{forward.26} parent=0 // pred_check_branch
    %10 = sbr.rel (0) target = $region5
  $region4: #{forward.26} parent=0 // pred_region
    _
  $region5: #{forward.26} parent=0 // pred_fallthru
    _
  // Predicated region
  $region6: #{forward.26} parent=0 // pred_check
    _
  $region7: #{forward.26} parent=0 // pred_check_branch
    %12 = sbr.rel (0) target = $region9
  $region8: #{forward.26} parent=0 // pred_region
    _
  $region9: #{forward.26} parent=0 // pred_fallthru
    _
  // Predicated region
  $region10: #{forward.26} parent=0 // pred_check
    _
  $region11: #{forward.26} parent=0 // pred_check_branch
    %14 = sbr.rel (0) target = $region13
  $region12: #{forward.26} parent=0 // pred_region
    _
  $region13: #{forward.26} parent=0 // pred_fallthru
    _
  // Predicated region
  $region14: #{forward.26} parent=0 // pred_check
    _
  $region15: #{forward.26} parent=0 // pred_check_branch
    %16 = sbr.rel (0) target = $region17
  $region16: #{forward.26} parent=0 // pred_region
    _
  $region17: #{forward.26} parent=0 // pred_fallthru
    _
  %v17 = vld [vmem:[%s0] sm:$0xff]
  %v18 = vld [vmem:[%s0 + $0x8] sm:$0xff]
  %v19 = vld [vmem:[%s0 + $0x10] sm:$0xff]
  %v20 = vld [vmem:[%s0 + $0x18] sm:$0xff]
  %v21 = vld [vmem:[%s0 + $0x20] sm:$0xff]
  %v22 = vld [vmem:[%s0 + $0x28] sm:$0xff]
  %v23 = vld [vmem:[%s0 + $0x30] sm:$0xff]
  %v24 = vld [vmem:[%s0 + $0x38] sm:$0xff]
  %v25 = vld [vmem:[%s0 + $0x40] sm:$0xff]
  %v26 = vld [vmem:[%s0 + $0x48] sm:$0xff]
  %v27 = vld [vmem:[%s0 + $0x50] sm:$0xff]
  %v28 = vld [vmem:[%s0 + $0x58] sm:$0xff]
  %v29 = vld [vmem:[%s0 + $0x60] sm:$0xff]
  %v30 = vld [vmem:[%s0 + $0x68] sm:$0xff]
  %v31 = vld [vmem:[%s0 + $0x70] sm:$0xff]
  %v32 = vld [vmem:[%s0 + $0x78] sm:$0xff]
  %v33 = vld [vmem:[%s0 + $0x80] sm:$0xff]
  %v34 = vld [vmem:[%s0 + $0x88] sm:$0xff]
  %v35 = vld [vmem:[%s0 + $0x90] sm:$0xff]
  %v36 = vld [vmem:[%s0 + $0x98] sm:$0xff]
  %v37 = vld [vmem:[%s0 + $0xa0] sm:$0xff]
  %v38 = vld [vmem:[%s0 + $0xa8] sm:$0xff]
  %v39 = vld [vmem:[%s0 + $0xb0] sm:$0xff]
  %v40 = vld [vmem:[%s0 + $0xb8] sm:$0xff]
  %v41 = vld [vmem:[%s0 + $0xc0] sm:$0xff]
  %v42 = vld [vmem:[%s0 + $0xc8] sm:$0xff]
  %v43 = vld [vmem:[%s0 + $0xd0] sm:$0xff]
  %v44 = vld [vmem:[%s0 + $0xd8] sm:$0xff]
  %v45 = vld [vmem:[%s0 + $0xe0] sm:$0xff]
  %v46 = vld [vmem:[%s0 + $0xe8] sm:$0xff]
  %v47 = vld [vmem:[%s0 + $0xf0] sm:$0xff]
  %v48 = vld [vmem:[%s0 + $0xf8] sm:$0xff]
  %v49 = vld [vmem:[%s0 + $0x100] sm:$0xff]
  %v50 = vld [vmem:[%s0 + $0x108] sm:$0xff]
  %v51 = vld [vmem:[%s0 + $0x110] sm:$0xff]
  %v52 = vld [vmem:[%s0 + $0x118] sm:$0xff]
  %v53 = vld [vmem:[%s0 + $0x120] sm:$0xff]
  %v54 = vld [vmem:[%s0 + $0x128] sm:$0xff]
  %v55 = vld [vmem:[%s0 + $0x130] sm:$0xff]
  %v56 = vld [vmem:[%s0 + $0x138] sm:$0xff]
  %v57 = vld [vmem:[%s0 + $0x140] sm:$0xff]
  %v58 = vld [vmem:[%s0 + $0x148] sm:$0xff]
  %v59 = vld [vmem:[%s0 + $0x150] sm:$0xff]
  %v60 = vld [vmem:[%s0 + $0x158] sm:$0xff]
  %v61 = vld [vmem:[%s0 + $0x160] sm:$0xff]
  %v62 = vld [vmem:[%s0 + $0x168] sm:$0xff]
  %v63 = vld [vmem:[%s0 + $0x170] sm:$0xff]
  %v64 = vld [vmem:[%s0 + $0x178] sm:$0xff]
  %v65 = vld [vmem:[%s0 + $0x180] sm:$0xff]
  %v66 = vld [vmem:[%s0 + $0x188] sm:$0xff]
  %v67 = vld [vmem:[%s0 + $0x190] sm:$0xff]
  %v68 = vld [vmem:[%s0 + $0x198] sm:$0xff]
  %v69 = vld [vmem:[%s0 + $0x1a0] sm:$0xff]
  %v70 = vld [vmem:[%s0 + $0x1a8] sm:$0xff]
  %v71 = vld [vmem:[%s0 + $0x1b0] sm:$0xff]
  %v72 = vld [vmem:[%s0 + $0x1b8] sm:$0xff]
  %v73 = vld [vmem:[%s0 + $0x1c0] sm:$0xff]
  %v74 = vld [vmem:[%s0 + $0x1c8] sm:$0xff]
  %v75 = vld [vmem:[%s0 + $0x1d0] sm:$0xff]
  %v76 = vld [vmem:[%s0 + $0x1d8] sm:$0xff]
  %v77 = vld [vmem:[%s0 + $0x1e0] sm:$0xff]
  %v78 = vld [vmem:[%s0 + $0x1e8] sm:$0xff]
  %v79 = vld [vmem:[%s0 + $0x1f0] sm:$0xff]
  %v80 = vld [vmem:[%s0 + $0x1f8] sm:$0xff]
  %v81 = vld [vmem:[%s1] sm:$0xff]
  %v82 = vld [vmem:[%s1 + $0x8] sm:$0xff]
  %v83 = vld [vmem:[%s1 + $0x10] sm:$0xff]
  %v84 = vld [vmem:[%s1 + $0x18] sm:$0xff]
  %v85 = vld [vmem:[%s1 + $0x20] sm:$0xff]
  %v86 = vld [vmem:[%s1 + $0x28] sm:$0xff]
  %v87 = vld [vmem:[%s1 + $0x30] sm:$0xff]
  %v88 = vld [vmem:[%s1 + $0x38] sm:$0xff]
  %v89 = vld [vmem:[%s1 + $0x40] sm:$0xff]
  %v90 = vld [vmem:[%s1 + $0x48] sm:$0xff]
  %v91 = vld [vmem:[%s1 + $0x50] sm:$0xff]
  %v92 = vld [vmem:[%s1 + $0x58] sm:$0xff]
  %v93 = vld [vmem:[%s1 + $0x60] sm:$0xff]
  %v94 = vld [vmem:[%s1 + $0x68] sm:$0xff]
  %v95 = vld [vmem:[%s1 + $0x70] sm:$0xff]
  %v96 = vld [vmem:[%s1 + $0x78] sm:$0xff]
  %v97 = vld [vmem:[%s1 + $0x80] sm:$0xff]
  %v98 = vld [vmem:[%s1 + $0x88] sm:$0xff]
  %v99 = vld [vmem:[%s1 + $0x90] sm:$0xff]
  %v100 = vld [vmem:[%s1 + $0x98] sm:$0xff]
  %v101 = vld [vmem:[%s1 + $0xa0] sm:$0xff]
  %v102 = vld [vmem:[%s1 + $0xa8] sm:$0xff]
  %v103 = vld [vmem:[%s1 + $0xb0] sm:$0xff]
  %v104 = vld [vmem:[%s1 + $0xb8] sm:$0xff]
  %v105 = vld [vmem:[%s1 + $0xc0] sm:$0xff]
  %v106 = vld [vmem:[%s1 + $0xc8] sm:$0xff]
  %v107 = vld [vmem:[%s1 + $0xd0] sm:$0xff]
  %v108 = vld [vmem:[%s1 + $0xd8] sm:$0xff]
  %v109 = vld [vmem:[%s1 + $0xe0] sm:$0xff]
  %v110 = vld [vmem:[%s1 + $0xe8] sm:$0xff]
  %v111 = vld [vmem:[%s1 + $0xf0] sm:$0xff]
  %v112 = vld [vmem:[%s1 + $0xf8] sm:$0xff]
  %v113 = vld [vmem:[%s1 + $0x100] sm:$0xff]
  %v114 = vld [vmem:[%s1 + $0x108] sm:$0xff]
  %v115 = vld [vmem:[%s1 + $0x110] sm:$0xff]
  %v116 = vld [vmem:[%s1 + $0x118] sm:$0xff]
  %v117 = vld [vmem:[%s1 + $0x120] sm:$0xff]
  %v118 = vld [vmem:[%s1 + $0x128] sm:$0xff]
  %v119 = vld [vmem:[%s1 + $0x130] sm:$0xff]
  %v120 = vld [vmem:[%s1 + $0x138] sm:$0xff]
  %v121 = vld [vmem:[%s1 + $0x140] sm:$0xff]
  %v122 = vld [vmem:[%s1 + $0x148] sm:$0xff]
  %v123 = vld [vmem:[%s1 + $0x150] sm:$0xff]
  %v124 = vld [vmem:[%s1 + $0x158] sm:$0xff]
  %v125 = vld [vmem:[%s1 + $0x160] sm:$0xff]
  %v126 = vld [vmem:[%s1 + $0x168] sm:$0xff]
  %v127 = vld [vmem:[%s1 + $0x170] sm:$0xff]
  %v128 = vld [vmem:[%s1 + $0x178] sm:$0xff]
  %v129 = vld [vmem:[%s1 + $0x180] sm:$0xff]
  %v130 = vld [vmem:[%s1 + $0x188] sm:$0xff]
  %v131 = vld [vmem:[%s1 + $0x190] sm:$0xff]
  %v132 = vld [vmem:[%s1 + $0x198] sm:$0xff]
  %v133 = vld [vmem:[%s1 + $0x1a0] sm:$0xff]
  %v134 = vld [vmem:[%s1 + $0x1a8] sm:$0xff]
  %v135 = vld [vmem:[%s1 + $0x1b0] sm:$0xff]
  %v136 = vld [vmem:[%s1 + $0x1b8] sm:$0xff]
  %v137 = vld [vmem:[%s1 + $0x1c0] sm:$0xff]
  %v138 = vld [vmem:[%s1 + $0x1c8] sm:$0xff]
  %v139 = vld [vmem:[%s1 + $0x1d0] sm:$0xff]
  %v140 = vld [vmem:[%s1 + $0x1d8] sm:$0xff]
  %v141 = vld [vmem:[%s1 + $0x1e0] sm:$0xff]
  %v142 = vld [vmem:[%s1 + $0x1e8] sm:$0xff]
  %v143 = vld [vmem:[%s1 + $0x1f0] sm:$0xff]
  %v144 = vld [vmem:[%s1 + $0x1f8] sm:$0xff]
  %v145 = vadd.f32 %v17, %v81
  %v146 = vadd.f32 %v18, %v82
  %v147 = vadd.f32 %v19, %v83
  %v148 = vadd.f32 %v20, %v84
  %v149 = vadd.f32 %v21, %v85
  %v150 = vadd.f32 %v22, %v86
  %v151 = vadd.f32 %v23, %v87
  %v152 = vadd.f32 %v24, %v88
  %v153 = vadd.f32 %v25, %v89
  %v154 = vadd.f32 %v26, %v90
  %v155 = vadd.f32 %v27, %v91
  %v156 = vadd.f32 %v28, %v92
  %v157 = vadd.f32 %v29, %v93
  %v158 = vadd.f32 %v30, %v94
  %v159 = vadd.f32 %v31, %v95
  %v160 = vadd.f32 %v32, %v96
  %v161 = vadd.f32 %v33, %v97
  %v162 = vadd.f32 %v34, %v98
  %v163 = vadd.f32 %v35, %v99
  %v164 = vadd.f32 %v36, %v100
  %v165 = vadd.f32 %v37, %v101
  %v166 = vadd.f32 %v38, %v102
  %v167 = vadd.f32 %v39, %v103
  %v168 = vadd.f32 %v40, %v104
  %v169 = vadd.f32 %v41, %v105
  %v170 = vadd.f32 %v42, %v106
  %v171 = vadd.f32 %v43, %v107
  %v172 = vadd.f32 %v44, %v108
  %v173 = vadd.f32 %v45, %v109
  %v174 = vadd.f32 %v46, %v110
  %v175 = vadd.f32 %v47, %v111
  %v176 = vadd.f32 %v48, %v112
  %v177 = vadd.f32 %v49, %v113
  %v178 = vadd.f32 %v50, %v114
  %v179 = vadd.f32 %v51, %v115
  %v180 = vadd.f32 %v52, %v116
  %v181 = vadd.f32 %v53, %v117
  %v182 = vadd.f32 %v54, %v118
  %v183 = vadd.f32 %v55, %v119
  %v184 = vadd.f32 %v56, %v120
  %v185 = vadd.f32 %v57, %v121
  %v186 = vadd.f32 %v58, %v122
  %v187 = vadd.f32 %v59, %v123
  %v188 = vadd.f32 %v60, %v124
  %v189 = vadd.f32 %v61, %v125
  %v190 = vadd.f32 %v62, %v126
  %v191 = vadd.f32 %v63, %v127
  %v192 = vadd.f32 %v64, %v128
  %v193 = vadd.f32 %v65, %v129
  %v194 = vadd.f32 %v66, %v130
  %v195 = vadd.f32 %v67, %v131
  %v196 = vadd.f32 %v68, %v132
  %v197 = vadd.f32 %v69, %v133
  %v198 = vadd.f32 %v70, %v134
  %v199 = vadd.f32 %v71, %v135
  %v200 = vadd.f32 %v72, %v136
  %v201 = vadd.f32 %v73, %v137
  %v202 = vadd.f32 %v74, %v138
  %v203 = vadd.f32 %v75, %v139
  %v204 = vadd.f32 %v76, %v140
  %v205 = vadd.f32 %v77, %v141
  %v206 = vadd.f32 %v78, %v142
  %v207 = vadd.f32 %v79, %v143
  %v208 = vadd.f32 %v80, %v144
  %v209 = vld [vmem:[%s2] sm:$0xff]
  %v210 = vld [vmem:[%s2 + $0x8] sm:$0xff]
  %v211 = vld [vmem:[%s2 + $0x10] sm:$0xff]
  %v212 = vld [vmem:[%s2 + $0x18] sm:$0xff]
  %v213 = vld [vmem:[%s2 + $0x20] sm:$0xff]
  %v214 = vld [vmem:[%s2 + $0x28] sm:$0xff]
  %v215 = vld [vmem:[%s2 + $0x30] sm:$0xff]
  %v216 = vld [vmem:[%s2 + $0x38] sm:$0xff]
  %v217 = vld [vmem:[%s3] sm:$0x1]
  %v219 = vlaneseq
  %v220 = vshrl.u32 %v219, 7
  %v221 = vsub.s32 0, %v220
  %v222 = vrot.slane %v217, %v221
  %vm224 = vcmask 523264
  %v226 = vsel %vm224, %v145, 0
  %v229 = vsel %vm224, %v146, 0
  %v232 = vsel %vm224, %v147, 0
  %v235 = vsel %vm224, %v148, 0
  %v238 = vsel %vm224, %v149, 0
  %v241 = vsel %vm224, %v150, 0
  %v244 = vsel %vm224, %v151, 0
  %v247 = vsel %vm224, %v152, 0
  %v250 = vsel %vm224, %v153, 0
  %v253 = vsel %vm224, %v154, 0
  %v256 = vsel %vm224, %v155, 0
  %v259 = vsel %vm224, %v156, 0
  %v262 = vsel %vm224, %v157, 0
  %v265 = vsel %vm224, %v158, 0
  %v268 = vsel %vm224, %v159, 0
  %v271 = vsel %vm224, %v160, 0
  %v274 = vsel %vm224, %v161, 0
  %v277 = vsel %vm224, %v162, 0
  %v280 = vsel %vm224, %v163, 0
  %v283 = vsel %vm224, %v164, 0
  %v286 = vsel %vm224, %v165, 0
  %v289 = vsel %vm224, %v166, 0
  %v292 = vsel %vm224, %v167, 0
  %v295 = vsel %vm224, %v168, 0
  %v298 = vsel %vm224, %v169, 0
  %v301 = vsel %vm224, %v170, 0
  %v304 = vsel %vm224, %v171, 0
  %v307 = vsel %vm224, %v172, 0
  %v310 = vsel %vm224, %v173, 0
  %v313 = vsel %vm224, %v174, 0
  %v316 = vsel %vm224, %v175, 0
  %v319 = vsel %vm224, %v176, 0
  %v322 = vsel %vm224, %v177, 0
  %v325 = vsel %vm224, %v178, 0
  %v328 = vsel %vm224, %v179, 0
  %v331 = vsel %vm224, %v180, 0
  %v334 = vsel %vm224, %v181, 0
  %v337 = vsel %vm224, %v182, 0
  %v340 = vsel %vm224, %v183, 0
  %v343 = vsel %vm224, %v184, 0
  %v346 = vsel %vm224, %v185, 0
  %v349 = vsel %vm224, %v186, 0
  %v352 = vsel %vm224, %v187, 0
  %v355 = vsel %vm224, %v188, 0
  %v358 = vsel %vm224, %v189, 0
  %v361 = vsel %vm224, %v190, 0
  %v364 = vsel %vm224, %v191, 0
  %v367 = vsel %vm224, %v192, 0
  %v370 = vsel %vm224, %v193, 0
  %v373 = vsel %vm224, %v194, 0
  %v376 = vsel %vm224, %v195, 0
  %v379 = vsel %vm224, %v196, 0
  %v382 = vsel %vm224, %v197, 0
  %v385 = vsel %vm224, %v198, 0
  %v388 = vsel %vm224, %v199, 0
  %v391 = vsel %vm224, %v200, 0
  %v394 = vsel %vm224, %v201, 0
  %v397 = vsel %vm224, %v202, 0
  %v400 = vsel %vm224, %v203, 0
  %v403 = vsel %vm224, %v204, 0
  %v406 = vsel %vm224, %v205, 0
  %v409 = vsel %vm224, %v206, 0
  %v412 = vsel %vm224, %v207, 0
  %v415 = vsel %vm224, %v208, 0
  %417 = vmatprep.subr.mxu0 0.0
  %418 = vmatpush1.msra.mxu0 %v209
  %419 = vmatprep.subr.mxu0 0.0
  %420 = vmatpush1.msra.mxu0 %v210
  %421 = vmatprep.subr.mxu0 0.0
  %422 = vmatpush1.msra.mxu0 %v211
  %423 = vmatprep.subr.mxu0 0.0
  %424 = vmatpush1.msra.mxu0 %v212
  %425 = vmatprep.subr.mxu0 0.0
  %426 = vmatpush1.msra.mxu0 %v213
  %427 = vmatprep.subr.mxu0 0.0
  %428 = vmatpush1.msra.mxu0 %v214
  %429 = vmatprep.subr.mxu0 0.0
  %430 = vmatpush1.msra.mxu0 %v215
  %431 = vmatprep.subr.mxu0 0.0
  %432 = vmatpush1.msra.mxu0 %v216
  %433 = vmatprep.subr.mxu0 0.0
  %434 = vmatpush1.msra.mxu0 0.0
  %435 = vmatprep.subr.mxu0 0.0
  %436 = vmatpush1.msra.mxu0 0.0
  %437 = vmatprep.subr.mxu0 0.0
  %438 = vmatpush1.msra.mxu0 0.0
  %439 = vmatprep.subr.mxu0 0.0
  %440 = vmatpush1.msra.mxu0 0.0
  %441 = vmatprep.subr.mxu0 0.0
  %442 = vmatpush1.msra.mxu0 0.0
  %443 = vmatprep.subr.mxu0 0.0
  %444 = vmatpush1.msra.mxu0 0.0
  %445 = vmatprep.subr.mxu0 0.0
  %446 = vmatpush1.msra.mxu0 0.0
  %447 = vmatprep.subr.mxu0 0.0
  %448 = vmatpush1.msra.mxu0 0.0
  %449 = vmatprep.subr.mxu0 0.0
  %450 = vmatpush1.msra.mxu0 0.0
  %451 = vmatprep.subr.mxu0 0.0
  %452 = vmatpush1.msra.mxu0 0.0
  %453 = vmatprep.subr.mxu0 0.0
  %454 = vmatpush1.msra.mxu0 0.0
  %455 = vmatprep.subr.mxu0 0.0
  %456 = vmatpush1.msra.mxu0 0.0
  %457 = vmatprep.subr.mxu0 0.0
  %458 = vmatpush1.msra.mxu0 0.0
  %459 = vmatprep.subr.mxu0 0.0
  %460 = vmatpush1.msra.mxu0 0.0
  %461 = vmatprep.subr.mxu0 0.0
  %462 = vmatpush1.msra.mxu0 0.0
  %463 = vmatprep.subr.mxu0 0.0
  %464 = vmatpush1.msra.mxu0 0.0
  %465 = vmatprep.subr.mxu0 0.0
  %466 = vmatpush1.msra.mxu0 0.0
  %467 = vmatprep.subr.mxu0 0.0
  %468 = vmatpush1.msra.mxu0 0.0
  %469 = vmatprep.subr.mxu0 0.0
  %470 = vmatpush1.msra.mxu0 0.0
  %471 = vmatprep.subr.mxu0 0.0
  %472 = vmatpush1.msra.mxu0 0.0
  %473 = vmatprep.subr.mxu0 0.0
  %474 = vmatpush1.msra.mxu0 0.0
  %475 = vmatprep.subr.mxu0 0.0
  %476 = vmatpush1.msra.mxu0 0.0
  %477 = vmatprep.subr.mxu0 0.0
  %478 = vmatpush1.msra.mxu0 0.0
  %479 = vmatprep.subr.mxu0 0.0
  %480 = vmatpush1.msra.mxu0 0.0
  %481 = vmatprep.mubr.f32.mxu0 0.0
  %482 = vmatmul.mubr.f32.gmra.mrb[0].mxu0 %v226
  %v483 = vpop.f32.mrb[0].mxu0
  %v484 = vadd.f32 %v222, %v483
  %v485 = vpop.f32.mrb[0].mxu0
  %486 = vmatprep.mubr.f32.mxu0 0.0
  %487 = vmatmul.mubr.f32.gmra.mrb[0].mxu0 %v229
  %v488 = vpop.f32.mrb[0].mxu0
  %v489 = vadd.f32 %v222, %v488
  %v490 = vpop.f32.mrb[0].mxu0
  %491 = vmatprep.mubr.f32.mxu0 0.0
  %492 = vmatmul.mubr.f32.gmra.mrb[0].mxu0 %v232
  %v493 = vpop.f32.mrb[0].mxu0
  %v494 = vadd.f32 %v222, %v493
  %v495 = vpop.f32.mrb[0].mxu0
  %496 = vmatprep.mubr.f32.mxu0 0.0
  %497 = vmatmul.mubr.f32.gmra.mrb[0].mxu0 %v235
  %v498 = vpop.f32.mrb[0].mxu0
  %v499 = vadd.f32 %v222, %v498
  %v500 = vpop.f32.mrb[0].mxu0
  %501 = vmatprep.mubr.f32.mxu0 0.0
  %502 = vmatmul.mubr.f32.gmra.mrb[0].mxu0 %v238
  %v503 = vpop.f32.mrb[0].mxu0
  %v504 = vadd.f32 %v222, %v503
  %v505 = vpop.f32.mrb[0].mxu0
  %506 = vmatprep.mubr.f32.mxu0 0.0
  %507 = vmatmul.mubr.f32.gmra.mrb[0].mxu0 %v241
  %v508 = vpop.f32.mrb[0].mxu0
  %v509 = vadd.f32 %v222, %v508
  %v510 = vpop.f32.mrb[0].mxu0
  %511 = vmatprep.mubr.f32.mxu0 0.0
  %512 = vmatmul.mubr.f32.gmra.mrb[0].mxu0 %v244
  %v513 = vpop.f32.mrb[0].mxu0
  %v514 = vadd.f32 %v222, %v513
  %v515 = vpop.f32.mrb[0].mxu0
  %516 = vmatprep.mubr.f32.mxu0 0.0
  %517 = vmatmul.mubr.f32.gmra.mrb[0].mxu0 %v247
  %v518 = vpop.f32.mrb[0].mxu0
  %v519 = vadd.f32 %v222, %v518
  %v520 = vpop.f32.mrb[0].mxu0
  %521 = vmatprep.mubr.f32.mxu0 0.0
  %522 = vmatmul.mubr.f32.gmra.mrb[0].mxu0 %v250
  %v523 = vpop.f32.mrb[0].mxu0
  %v524 = vadd.f32 %v222, %v523
  %v525 = vpop.f32.mrb[0].mxu0
  %526 = vmatprep.mubr.f32.mxu0 0.0
  %527 = vmatmul.mubr.f32.gmra.mrb[0].mxu0 %v253
  %v528 = vpop.f32.mrb[0].mxu0
  %v529 = vadd.f32 %v222, %v528
  %v530 = vpop.f32.mrb[0].mxu0
  %531 = vmatprep.mubr.f32.mxu0 0.0
  %532 = vmatmul.mubr.f32.gmra.mrb[0].mxu0 %v256
  %v533 = vpop.f32.mrb[0].mxu0
  %v534 = vadd.f32 %v222, %v533
  %v535 = vpop.f32.mrb[0].mxu0
  %536 = vmatprep.mubr.f32.mxu0 0.0
  %537 = vmatmul.mubr.f32.gmra.mrb[0].mxu0 %v259
  %v538 = vpop.f32.mrb[0].mxu0
  %v539 = vadd.f32 %v222, %v538
  %v540 = vpop.f32.mrb[0].mxu0
  %541 = vmatprep.mubr.f32.mxu0 0.0
  %542 = vmatmul.mubr.f32.gmra.mrb[0].mxu0 %v262
  %v543 = vpop.f32.mrb[0].mxu0
  %v544 = vadd.f32 %v222, %v543
  %v545 = vpop.f32.mrb[0].mxu0
  %546 = vmatprep.mubr.f32.mxu0 0.0
  %547 = vmatmul.mubr.f32.gmra.mrb[0].mxu0 %v265
  %v548 = vpop.f32.mrb[0].mxu0
  %v549 = vadd.f32 %v222, %v548
  %v550 = vpop.f32.mrb[0].mxu0
  %551 = vmatprep.mubr.f32.mxu0 0.0
  %552 = vmatmul.mubr.f32.gmra.mrb[0].mxu0 %v268
  %v553 = vpop.f32.mrb[0].mxu0
  %v554 = vadd.f32 %v222, %v553
  %v555 = vpop.f32.mrb[0].mxu0
  %556 = vmatprep.mubr.f32.mxu0 0.0
  %557 = vmatmul.mubr.f32.gmra.mrb[0].mxu0 %v271
  %v558 = vpop.f32.mrb[0].mxu0
  %v559 = vadd.f32 %v222, %v558
  %v560 = vpop.f32.mrb[0].mxu0
  %561 = vmatprep.mubr.f32.mxu0 0.0
  %562 = vmatmul.mubr.f32.gmra.mrb[0].mxu0 %v274
  %v563 = vpop.f32.mrb[0].mxu0
  %v564 = vadd.f32 %v222, %v563
  %v565 = vpop.f32.mrb[0].mxu0
  %566 = vmatprep.mubr.f32.mxu0 0.0
  %567 = vmatmul.mubr.f32.gmra.mrb[0].mxu0 %v277
  %v568 = vpop.f32.mrb[0].mxu0
  %v569 = vadd.f32 %v222, %v568
  %v570 = vpop.f32.mrb[0].mxu0
  %571 = vmatprep.mubr.f32.mxu0 0.0
  %572 = vmatmul.mubr.f32.gmra.mrb[0].mxu0 %v280
  %v573 = vpop.f32.mrb[0].mxu0
  %v574 = vadd.f32 %v222, %v573
  %v575 = vpop.f32.mrb[0].mxu0
  %576 = vmatprep.mubr.f32.mxu0 0.0
  %577 = vmatmul.mubr.f32.gmra.mrb[0].mxu0 %v283
  %v578 = vpop.f32.mrb[0].mxu0
  %v579 = vadd.f32 %v222, %v578
  %v580 = vpop.f32.mrb[0].mxu0
  %581 = vmatprep.mubr.f32.mxu0 0.0
  %582 = vmatmul.mubr.f32.gmra.mrb[0].mxu0 %v286
  %v583 = vpop.f32.mrb[0].mxu0
  %v584 = vadd.f32 %v222, %v583
  %v585 = vpop.f32.mrb[0].mxu0
  %586 = vmatprep.mubr.f32.mxu0 0.0
  %587 = vmatmul.mubr.f32.gmra.mrb[0].mxu0 %v289
  %v588 = vpop.f32.mrb[0].mxu0
  %v589 = vadd.f32 %v222, %v588
  %v590 = vpop.f32.mrb[0].mxu0
  %591 = vmatprep.mubr.f32.mxu0 0.0
  %592 = vmatmul.mubr.f32.gmra.mrb[0].mxu0 %v292
  %v593 = vpop.f32.mrb[0].mxu0
  %v594 = vadd.f32 %v222, %v593
  %v595 = vpop.f32.mrb[0].mxu0
  %596 = vmatprep.mubr.f32.mxu0 0.0
  %597 = vmatmul.mubr.f32.gmra.mrb[0].mxu0 %v295
  %v598 = vpop.f32.mrb[0].mxu0
  %v599 = vadd.f32 %v222, %v598
  %v600 = vpop.f32.mrb[0].mxu0
  %601 = vmatprep.mubr.f32.mxu0 0.0
  %602 = vmatmul.mubr.f32.gmra.mrb[0].mxu0 %v298
  %v603 = vpop.f32.mrb[0].mxu0
  %v604 = vadd.f32 %v222, %v603
  %v605 = vpop.f32.mrb[0].mxu0
  %606 = vmatprep.mubr.f32.mxu0 0.0
  %607 = vmatmul.mubr.f32.gmra.mrb[0].mxu0 %v301
  %v608 = vpop.f32.mrb[0].mxu0
  %v609 = vadd.f32 %v222, %v608
  %v610 = vpop.f32.mrb[0].mxu0
  %611 = vmatprep.mubr.f32.mxu0 0.0
  %612 = vmatmul.mubr.f32.gmra.mrb[0].mxu0 %v304
  %v613 = vpop.f32.mrb[0].mxu0
  %v614 = vadd.f32 %v222, %v613
  %v615 = vpop.f32.mrb[0].mxu0
  %616 = vmatprep.mubr.f32.mxu0 0.0
  %617 = vmatmul.mubr.f32.gmra.mrb[0].mxu0 %v307
  %v618 = vpop.f32.mrb[0].mxu0
  %v619 = vadd.f32 %v222, %v618
  %v620 = vpop.f32.mrb[0].mxu0
  %621 = vmatprep.mubr.f32.mxu0 0.0
  %622 = vmatmul.mubr.f32.gmra.mrb[0].mxu0 %v310
  %v623 = vpop.f32.mrb[0].mxu0
  %v624 = vadd.f32 %v222, %v623
  %v625 = vpop.f32.mrb[0].mxu0
  %626 = vmatprep.mubr.f32.mxu0 0.0
  %627 = vmatmul.mubr.f32.gmra.mrb[0].mxu0 %v313
  %v628 = vpop.f32.mrb[0].mxu0
  %v629 = vadd.f32 %v222, %v628
  %v630 = vpop.f32.mrb[0].mxu0
  %631 = vmatprep.mubr.f32.mxu0 0.0
  %632 = vmatmul.mubr.f32.gmra.mrb[0].mxu0 %v316
  %v633 = vpop.f32.mrb[0].mxu0
  %v634 = vadd.f32 %v222, %v633
  %v635 = vpop.f32.mrb[0].mxu0
  %636 = vmatprep.mubr.f32.mxu0 0.0
  %637 = vmatmul.mubr.f32.gmra.mrb[0].mxu0 %v319
  %v638 = vpop.f32.mrb[0].mxu0
  %v639 = vadd.f32 %v222, %v638
  %v640 = vpop.f32.mrb[0].mxu0
  %641 = vmatprep.mubr.f32.mxu0 0.0
  %642 = vmatmul.mubr.f32.gmra.mrb[0].mxu0 %v322
  %v643 = vpop.f32.mrb[0].mxu0
  %v644 = vadd.f32 %v222, %v643
  %v645 = vpop.f32.mrb[0].mxu0
  %646 = vmatprep.mubr.f32.mxu0 0.0
  %647 = vmatmul.mubr.f32.gmra.mrb[0].mxu0 %v325
  %v648 = vpop.f32.mrb[0].mxu0
  %v649 = vadd.f32 %v222, %v648
  %v650 = vpop.f32.mrb[0].mxu0
  %651 = vmatprep.mubr.f32.mxu0 0.0
  %652 = vmatmul.mubr.f32.gmra.mrb[0].mxu0 %v328
  %v653 = vpop.f32.mrb[0].mxu0
  %v654 = vadd.f32 %v222, %v653
  %v655 = vpop.f32.mrb[0].mxu0
  %656 = vmatprep.mubr.f32.mxu0 0.0
  %657 = vmatmul.mubr.f32.gmra.mrb[0].mxu0 %v331
  %v658 = vpop.f32.mrb[0].mxu0
  %v659 = vadd.f32 %v222, %v658
  %v660 = vpop.f32.mrb[0].mxu0
  %661 = vmatprep.mubr.f32.mxu0 0.0
  %662 = vmatmul.mubr.f32.gmra.mrb[0].mxu0 %v334
  %v663 = vpop.f32.mrb[0].mxu0
  %v664 = vadd.f32 %v222, %v663
  %v665 = vpop.f32.mrb[0].mxu0
  %666 = vmatprep.mubr.f32.mxu0 0.0
  %667 = vmatmul.mubr.f32.gmra.mrb[0].mxu0 %v337
  %v668 = vpop.f32.mrb[0].mxu0
  %v669 = vadd.f32 %v222, %v668
  %v670 = vpop.f32.mrb[0].mxu0
  %671 = vmatprep.mubr.f32.mxu0 0.0
  %672 = vmatmul.mubr.f32.gmra.mrb[0].mxu0 %v340
  %v673 = vpop.f32.mrb[0].mxu0
  %v674 = vadd.f32 %v222, %v673
  %v675 = vpop.f32.mrb[0].mxu0
  %676 = vmatprep.mubr.f32.mxu0 0.0
  %677 = vmatmul.mubr.f32.gmra.mrb[0].mxu0 %v343
  %v678 = vpop.f32.mrb[0].mxu0
  %v679 = vadd.f32 %v222, %v678
  %v680 = vpop.f32.mrb[0].mxu0
  %681 = vmatprep.mubr.f32.mxu0 0.0
  %682 = vmatmul.mubr.f32.gmra.mrb[0].mxu0 %v346
  %v683 = vpop.f32.mrb[0].mxu0
  %v684 = vadd.f32 %v222, %v683
  %v685 = vpop.f32.mrb[0].mxu0
  %686 = vmatprep.mubr.f32.mxu0 0.0
  %687 = vmatmul.mubr.f32.gmra.mrb[0].mxu0 %v349
  %v688 = vpop.f32.mrb[0].mxu0
  %v689 = vadd.f32 %v222, %v688
  %v690 = vpop.f32.mrb[0].mxu0
  %691 = vmatprep.mubr.f32.mxu0 0.0
  %692 = vmatmul.mubr.f32.gmra.mrb[0].mxu0 %v352
  %v693 = vpop.f32.mrb[0].mxu0
  %v694 = vadd.f32 %v222, %v693
  %v695 = vpop.f32.mrb[0].mxu0
  %696 = vmatprep.mubr.f32.mxu0 0.0
  %697 = vmatmul.mubr.f32.gmra.mrb[0].mxu0 %v355
  %v698 = vpop.f32.mrb[0].mxu0
  %v699 = vadd.f32 %v222, %v698
  %v700 = vpop.f32.mrb[0].mxu0
  %701 = vmatprep.mubr.f32.mxu0 0.0
  %702 = vmatmul.mubr.f32.gmra.mrb[0].mxu0 %v358
  %v703 = vpop.f32.mrb[0].mxu0
  %v704 = vadd.f32 %v222, %v703
  %v705 = vpop.f32.mrb[0].mxu0
  %706 = vmatprep.mubr.f32.mxu0 0.0
  %707 = vmatmul.mubr.f32.gmra.mrb[0].mxu0 %v361
  %v708 = vpop.f32.mrb[0].mxu0
  %v709 = vadd.f32 %v222, %v708
  %v710 = vpop.f32.mrb[0].mxu0
  %711 = vmatprep.mubr.f32.mxu0 0.0
  %712 = vmatmul.mubr.f32.gmra.mrb[0].mxu0 %v364
  %v713 = vpop.f32.mrb[0].mxu0
  %v714 = vadd.f32 %v222, %v713
  %v715 = vpop.f32.mrb[0].mxu0
  %716 = vmatprep.mubr.f32.mxu0 0.0
  %717 = vmatmul.mubr.f32.gmra.mrb[0].mxu0 %v367
  %v718 = vpop.f32.mrb[0].mxu0
  %v719 = vadd.f32 %v222, %v718
  %v720 = vpop.f32.mrb[0].mxu0
  %721 = vmatprep.mubr.f32.mxu0 0.0
  %722 = vmatmul.mubr.f32.gmra.mrb[0].mxu0 %v370
  %v723 = vpop.f32.mrb[0].mxu0
  %v724 = vadd.f32 %v222, %v723
  %v725 = vpop.f32.mrb[0].mxu0
  %726 = vmatprep.mubr.f32.mxu0 0.0
  %727 = vmatmul.mubr.f32.gmra.mrb[0].mxu0 %v373
  %v728 = vpop.f32.mrb[0].mxu0
  %v729 = vadd.f32 %v222, %v728
  %v730 = vpop.f32.mrb[0].mxu0
  %731 = vmatprep.mubr.f32.mxu0 0.0
  %732 = vmatmul.mubr.f32.gmra.mrb[0].mxu0 %v376
  %v733 = vpop.f32.mrb[0].mxu0
  %v734 = vadd.f32 %v222, %v733
  %v735 = vpop.f32.mrb[0].mxu0
  %736 = vmatprep.mubr.f32.mxu0 0.0
  %737 = vmatmul.mubr.f32.gmra.mrb[0].mxu0 %v379
  %v738 = vpop.f32.mrb[0].mxu0
  %v739 = vadd.f32 %v222, %v738
  %v740 = vpop.f32.mrb[0].mxu0
  %741 = vmatprep.mubr.f32.mxu0 0.0
  %742 = vmatmul.mubr.f32.gmra.mrb[0].mxu0 %v382
  %v743 = vpop.f32.mrb[0].mxu0
  %v744 = vadd.f32 %v222, %v743
  %v745 = vpop.f32.mrb[0].mxu0
  %746 = vmatprep.mubr.f32.mxu0 0.0
  %747 = vmatmul.mubr.f32.gmra.mrb[0].mxu0 %v385
  %v748 = vpop.f32.mrb[0].mxu0
  %v749 = vadd.f32 %v222, %v748
  %v750 = vpop.f32.mrb[0].mxu0
  %751 = vmatprep.mubr.f32.mxu0 0.0
  %752 = vmatmul.mubr.f32.gmra.mrb[0].mxu0 %v388
  %v753 = vpop.f32.mrb[0].mxu0
  %v754 = vadd.f32 %v222, %v753
  %v755 = vpop.f32.mrb[0].mxu0
  %756 = vmatprep.mubr.f32.mxu0 0.0
  %757 = vmatmul.mubr.f32.gmra.mrb[0].mxu0 %v391
  %v758 = vpop.f32.mrb[0].mxu0
  %v759 = vadd.f32 %v222, %v758
  %v760 = vpop.f32.mrb[0].mxu0
  %761 = vmatprep.mubr.f32.mxu0 0.0
  %762 = vmatmul.mubr.f32.gmra.mrb[0].mxu0 %v394
  %v763 = vpop.f32.mrb[0].mxu0
  %v764 = vadd.f32 %v222, %v763
  %v765 = vpop.f32.mrb[0].mxu0
  %766 = vmatprep.mubr.f32.mxu0 0.0
  %767 = vmatmul.mubr.f32.gmra.mrb[0].mxu0 %v397
  %v768 = vpop.f32.mrb[0].mxu0
  %v769 = vadd.f32 %v222, %v768
  %v770 = vpop.f32.mrb[0].mxu0
  %771 = vmatprep.mubr.f32.mxu0 0.0
  %772 = vmatmul.mubr.f32.gmra.mrb[0].mxu0 %v400
  %v773 = vpop.f32.mrb[0].mxu0
  %v774 = vadd.f32 %v222, %v773
  %v775 = vpop.f32.mrb[0].mxu0
  %776 = vmatprep.mubr.f32.mxu0 0.0
  %777 = vmatmul.mubr.f32.gmra.mrb[0].mxu0 %v403
  %v778 = vpop.f32.mrb[0].mxu0
  %v779 = vadd.f32 %v222, %v778
  %v780 = vpop.f32.mrb[0].mxu0
  %781 = vmatprep.mubr.f32.mxu0 0.0
  %782 = vmatmul.mubr.f32.gmra.mrb[0].mxu0 %v406
  %v783 = vpop.f32.mrb[0].mxu0
  %v784 = vadd.f32 %v222, %v783
  %v785 = vpop.f32.mrb[0].mxu0
  %786 = vmatprep.mubr.f32.mxu0 0.0
  %787 = vmatmul.mubr.f32.gmra.mrb[0].mxu0 %v409
  %v788 = vpop.f32.mrb[0].mxu0
  %v789 = vadd.f32 %v222, %v788
  %v790 = vpop.f32.mrb[0].mxu0
  %791 = vmatprep.mubr.f32.mxu0 0.0
  %792 = vmatmul.mubr.f32.gmra.mrb[0].mxu0 %v412
  %v793 = vpop.f32.mrb[0].mxu0
  %v794 = vadd.f32 %v222, %v793
  %v795 = vpop.f32.mrb[0].mxu0
  %796 = vmatprep.mubr.f32.mxu0 0.0
  %797 = vmatmul.mubr.f32.gmra.mrb[0].mxu0 %v415
  %v798 = vpop.f32.mrb[0].mxu0
  %v799 = vadd.f32 %v222, %v798
  %v800 = vpop.f32.mrb[0].mxu0
  %801 = vdwg.mxu0
  %v802 = vmax.f32 %v484, 0.0
  %v803 = vmax.f32 %v489, 0.0
  %v804 = vmax.f32 %v494, 0.0
  %v805 = vmax.f32 %v499, 0.0
  %v806 = vmax.f32 %v504, 0.0
  %v807 = vmax.f32 %v509, 0.0
  %v808 = vmax.f32 %v514, 0.0
  %v809 = vmax.f32 %v519, 0.0
  %v810 = vmax.f32 %v524, 0.0
  %v811 = vmax.f32 %v529, 0.0
  %v812 = vmax.f32 %v534, 0.0
  %v813 = vmax.f32 %v539, 0.0
  %v814 = vmax.f32 %v544, 0.0
  %v815 = vmax.f32 %v549, 0.0
  %v816 = vmax.f32 %v554, 0.0
  %v817 = vmax.f32 %v559, 0.0
  %v818 = vmax.f32 %v564, 0.0
  %v819 = vmax.f32 %v569, 0.0
  %v820 = vmax.f32 %v574, 0.0
  %v821 = vmax.f32 %v579, 0.0
  %v822 = vmax.f32 %v584, 0.0
  %v823 = vmax.f32 %v589, 0.0
  %v824 = vmax.f32 %v594, 0.0
  %v825 = vmax.f32 %v599, 0.0
  %v826 = vmax.f32 %v604, 0.0
  %v827 = vmax.f32 %v609, 0.0
  %v828 = vmax.f32 %v614, 0.0
  %v829 = vmax.f32 %v619, 0.0
  %v830 = vmax.f32 %v624, 0.0
  %v831 = vmax.f32 %v629, 0.0
  %v832 = vmax.f32 %v634, 0.0
  %v833 = vmax.f32 %v639, 0.0
  %v834 = vmax.f32 %v644, 0.0
  %v835 = vmax.f32 %v649, 0.0
  %v836 = vmax.f32 %v654, 0.0
  %v837 = vmax.f32 %v659, 0.0
  %v838 = vmax.f32 %v664, 0.0
  %v839 = vmax.f32 %v669, 0.0
  %v840 = vmax.f32 %v674, 0.0
  %v841 = vmax.f32 %v679, 0.0
  %v842 = vmax.f32 %v684, 0.0
  %v843 = vmax.f32 %v689, 0.0
  %v844 = vmax.f32 %v694, 0.0
  %v845 = vmax.f32 %v699, 0.0
  %v846 = vmax.f32 %v704, 0.0
  %v847 = vmax.f32 %v709, 0.0
  %v848 = vmax.f32 %v714, 0.0
  %v849 = vmax.f32 %v719, 0.0
  %v850 = vmax.f32 %v724, 0.0
  %v851 = vmax.f32 %v729, 0.0
  %v852 = vmax.f32 %v734, 0.0
  %v853 = vmax.f32 %v739, 0.0
  %v854 = vmax.f32 %v744, 0.0
  %v855 = vmax.f32 %v749, 0.0
  %v856 = vmax.f32 %v754, 0.0
  %v857 = vmax.f32 %v759, 0.0
  %v858 = vmax.f32 %v764, 0.0
  %v859 = vmax.f32 %v769, 0.0
  %v860 = vmax.f32 %v774, 0.0
  %v861 = vmax.f32 %v779, 0.0
  %v862 = vmax.f32 %v784, 0.0
  %v863 = vmax.f32 %v789, 0.0
  %v864 = vmax.f32 %v794, 0.0
  %v865 = vmax.f32 %v799, 0.0
  %866 = vst.msk [vmem:[%s4] sm:$0xff] %vm224, %v802
  %867 = vst.msk [vmem:[%s4 + $0x8] sm:$0xff] %vm224, %v803
  %868 = vst.msk [vmem:[%s4 + $0x10] sm:$0xff] %vm224, %v804
  %869 = vst.msk [vmem:[%s4 + $0x18] sm:$0xff] %vm224, %v805
  %870 = vst.msk [vmem:[%s4 + $0x20] sm:$0xff] %vm224, %v806
  %871 = vst.msk [vmem:[%s4 + $0x28] sm:$0xff] %vm224, %v807
  %872 = vst.msk [vmem:[%s4 + $0x30] sm:$0xff] %vm224, %v808
  %873 = vst.msk [vmem:[%s4 + $0x38] sm:$0xff] %vm224, %v809
  %874 = vst.msk [vmem:[%s4 + $0x40] sm:$0xff] %vm224, %v810
  %875 = vst.msk [vmem:[%s4 + $0x48] sm:$0xff] %vm224, %v811
  %876 = vst.msk [vmem:[%s4 + $0x50] sm:$0xff] %vm224, %v812
  %877 = vst.msk [vmem:[%s4 + $0x58] sm:$0xff] %vm224, %v813
  %878 = vst.msk [vmem:[%s4 + $0x60] sm:$0xff] %vm224, %v814
  %879 = vst.msk [vmem:[%s4 + $0x68] sm:$0xff] %vm224, %v815
  %880 = vst.msk [vmem:[%s4 + $0x70] sm:$0xff] %vm224, %v816
  %881 = vst.msk [vmem:[%s4 + $0x78] sm:$0xff] %vm224, %v817
  %882 = vst.msk [vmem:[%s4 + $0x80] sm:$0xff] %vm224, %v818
  %883 = vst.msk [vmem:[%s4 + $0x88] sm:$0xff] %vm224, %v819
  %884 = vst.msk [vmem:[%s4 + $0x90] sm:$0xff] %vm224, %v820
  %885 = vst.msk [vmem:[%s4 + $0x98] sm:$0xff] %vm224, %v821
  %886 = vst.msk [vmem:[%s4 + $0xa0] sm:$0xff] %vm224, %v822
  %887 = vst.msk [vmem:[%s4 + $0xa8] sm:$0xff] %vm224, %v823
  %888 = vst.msk [vmem:[%s4 + $0xb0] sm:$0xff] %vm224, %v824
  %889 = vst.msk [vmem:[%s4 + $0xb8] sm:$0xff] %vm224, %v825
  %890 = vst.msk [vmem:[%s4 + $0xc0] sm:$0xff] %vm224, %v826
  %891 = vst.msk [vmem:[%s4 + $0xc8] sm:$0xff] %vm224, %v827
  %892 = vst.msk [vmem:[%s4 + $0xd0] sm:$0xff] %vm224, %v828
  %893 = vst.msk [vmem:[%s4 + $0xd8] sm:$0xff] %vm224, %v829
  %894 = vst.msk [vmem:[%s4 + $0xe0] sm:$0xff] %vm224, %v830
  %895 = vst.msk [vmem:[%s4 + $0xe8] sm:$0xff] %vm224, %v831
  %896 = vst.msk [vmem:[%s4 + $0xf0] sm:$0xff] %vm224, %v832
  %897 = vst.msk [vmem:[%s4 + $0xf8] sm:$0xff] %vm224, %v833
  %898 = vst.msk [vmem:[%s4 + $0x100] sm:$0xff] %vm224, %v834
  %899 = vst.msk [vmem:[%s4 + $0x108] sm:$0xff] %vm224, %v835
  %900 = vst.msk [vmem:[%s4 + $0x110] sm:$0xff] %vm224, %v836
  %901 = vst.msk [vmem:[%s4 + $0x118] sm:$0xff] %vm224, %v837
  %902 = vst.msk [vmem:[%s4 + $0x120] sm:$0xff] %vm224, %v838
  %903 = vst.msk [vmem:[%s4 + $0x128] sm:$0xff] %vm224, %v839
  %904 = vst.msk [vmem:[%s4 + $0x130] sm:$0xff] %vm224, %v840
  %905 = vst.msk [vmem:[%s4 + $0x138] sm:$0xff] %vm224, %v841
  %906 = vst.msk [vmem:[%s4 + $0x140] sm:$0xff] %vm224, %v842
  %907 = vst.msk [vmem:[%s4 + $0x148] sm:$0xff] %vm224, %v843
  %908 = vst.msk [vmem:[%s4 + $0x150] sm:$0xff] %vm224, %v844
  %909 = vst.msk [vmem:[%s4 + $0x158] sm:$0xff] %vm224, %v845
  %910 = vst.msk [vmem:[%s4 + $0x160] sm:$0xff] %vm224, %v846
  %911 = vst.msk [vmem:[%s4 + $0x168] sm:$0xff] %vm224, %v847
  %912 = vst.msk [vmem:[%s4 + $0x170] sm:$0xff] %vm224, %v848
  %913 = vst.msk [vmem:[%s4 + $0x178] sm:$0xff] %vm224, %v849
  %914 = vst.msk [vmem:[%s4 + $0x180] sm:$0xff] %vm224, %v850
  %915 = vst.msk [vmem:[%s4 + $0x188] sm:$0xff] %vm224, %v851
  %916 = vst.msk [vmem:[%s4 + $0x190] sm:$0xff] %vm224, %v852
  %917 = vst.msk [vmem:[%s4 + $0x198] sm:$0xff] %vm224, %v853
  %918 = vst.msk [vmem:[%s4 + $0x1a0] sm:$0xff] %vm224, %v854
  %919 = vst.msk [vmem:[%s4 + $0x1a8] sm:$0xff] %vm224, %v855
  %920 = vst.msk [vmem:[%s4 + $0x1b0] sm:$0xff] %vm224, %v856
  %921 = vst.msk [vmem:[%s4 + $0x1b8] sm:$0xff] %vm224, %v857
  %922 = vst.msk [vmem:[%s4 + $0x1c0] sm:$0xff] %vm224, %v858
  %923 = vst.msk [vmem:[%s4 + $0x1c8] sm:$0xff] %vm224, %v859
  %924 = vst.msk [vmem:[%s4 + $0x1d0] sm:$0xff] %vm224, %v860
  %925 = vst.msk [vmem:[%s4 + $0x1d8] sm:$0xff] %vm224, %v861
  %926 = vst.msk [vmem:[%s4 + $0x1e0] sm:$0xff] %vm224, %v862
  %927 = vst.msk [vmem:[%s4 + $0x1e8] sm:$0xff] %vm224, %v863
  %928 = vst.msk [vmem:[%s4 + $0x1f0] sm:$0xff] %vm224, %v864
  %929 = vst.msk [vmem:[%s4 + $0x1f8] sm:$0xff] %vm224, %v865
  // Predicated region
  $region18: #{forward.26} parent=0 // pred_check
    _
  $region19: #{forward.26} parent=0 // pred_check_branch
    %931 = sbr.rel (0) target = $region21
  $region20: #{forward.26} parent=0 // pred_region
    _
  $region21: #{forward.26} parent=0 // pred_fallthru
    _
  // Predicated region
  $region22: #{forward.26} parent=0 // pred_check
    _
  $region23: #{forward.26} parent=0 // pred_check_branch
    %933 = sbr.rel (0) target = $region25
  $region24: #{forward.26} parent=0 // pred_region
    _
  $region25: #{forward.26} parent=0 // pred_fallthru
    _

// kernel: forward.28
$region0: #{forward.28}
  #allocation0 [shape = 'u32[]', space=smem, size = 0x4, offset = 0x4, fixed_abs, tag = 'smem constant byte address 0x4 - core index']
  #allocation1 [shape = 'u32[144,128]{1,0:T(1,128)}', space=vmem, size = 0x12000, scoped, tag = 'internal scratch']
  %s0 = inlined_call_operand.vmem [shape: f32[32,64], index: 0, kind: input, shape index: {}]
  %s1 = inlined_call_operand.vmem [shape: f32[32,64], index: 1, kind: input, shape index: {}]
  %s2 = inlined_call_operand.vmem [shape: f32[32,64], index: 2, kind: input, shape index: {}]
  %s3 = inlined_call_operand.vmem [shape: f32[64,64], index: 3, kind: input, shape index: {}]
  %s4 = inlined_call_operand.vmem [shape: f32[1,64], index: 4, kind: input, shape index: {}]
  %s5 = inlined_call_operand.vmem [shape: f32[32,64], index: 5, kind: output, shape index: {}]
  %s6 = sld [smem:[#allocation0]]
  $region30: #{forward.28} parent=0
    _
  %s8 = ssub.s32 1, %s6
  %s9 = scalar_select 0, %s8, %s6
  // Predicated region
  $region2: #{forward.28} parent=0 // pred_check
    _
  $region3: #{forward.28} parent=0 // pred_check_branch
    %11 = sbr.rel (0) target = $region5
  $region4: #{forward.28} parent=0 // pred_region
    _
  $region5: #{forward.28} parent=0 // pred_fallthru
    _
  // Predicated region
  $region6: #{forward.28} parent=0 // pred_check
    _
  $region7: #{forward.28} parent=0 // pred_check_branch
    %13 = sbr.rel (0) target = $region9
  $region8: #{forward.28} parent=0 // pred_region
    _
  $region9: #{forward.28} parent=0 // pred_fallthru
    _
  // Predicated region
  $region10: #{forward.28} parent=0 // pred_check
    _
  $region11: #{forward.28} parent=0 // pred_check_branch
    %15 = sbr.rel (0) target = $region13
  $region12: #{forward.28} parent=0 // pred_region
    _
  $region13: #{forward.28} parent=0 // pred_fallthru
    _
  // Predicated region
  $region14: #{forward.28} parent=0 // pred_check
    _
  $region15: #{forward.28} parent=0 // pred_check_branch
    %17 = sbr.rel (0) target = $region17
  $region16: #{forward.28} parent=0 // pred_region
    _
  $region17: #{forward.28} parent=0 // pred_fallthru
    _
  // Predicated region
  $region18: #{forward.28} parent=0 // pred_check
    _
  $region19: #{forward.28} parent=0 // pred_check_branch
    %19 = sbr.rel (0) target = $region21
  $region20: #{forward.28} parent=0 // pred_region
    _
  $region21: #{forward.28} parent=0 // pred_fallthru
    _
  %v20 = vld [vmem:[%s0] sm:$0xff]
  %v21 = vld [vmem:[%s0 + $0x8] sm:$0xff]
  %v22 = vld [vmem:[%s0 + $0x10] sm:$0xff]
  %v23 = vld [vmem:[%s0 + $0x18] sm:$0xff]
  %v24 = vld [vmem:[%s1] sm:$0xff]
  %v25 = vld [vmem:[%s1 + $0x8] sm:$0xff]
  %v26 = vld [vmem:[%s1 + $0x10] sm:$0xff]
  %v27 = vld [vmem:[%s1 + $0x18] sm:$0xff]
  %v28 = vadd.f32 %v20, %v24
  %v29 = vadd.f32 %v21, %v25
  %v30 = vadd.f32 %v22, %v26
  %v31 = vadd.f32 %v23, %v27
  %v32 = vld [vmem:[%s2] sm:$0xff]
  %v33 = vld [vmem:[%s2 + $0x8] sm:$0xff]
  %v34 = vld [vmem:[%s2 + $0x10] sm:$0xff]
  %v35 = vld [vmem:[%s2 + $0x18] sm:$0xff]
  %v36 = vadd.f32 %v28, %v32
  %v37 = vadd.f32 %v29, %v33
  %v38 = vadd.f32 %v30, %v34
  %v39 = vadd.f32 %v31, %v35
  %v40 = vld [vmem:[%s3] sm:$0xff]
  %v41 = vld [vmem:[%s3 + $0x8] sm:$0xff]
  %v42 = vld [vmem:[%s3 + $0x10] sm:$0xff]
  %v43 = vld [vmem:[%s3 + $0x18] sm:$0xff]
  %v44 = vld [vmem:[%s3 + $0x20] sm:$0xff]
  %v45 = vld [vmem:[%s3 + $0x28] sm:$0xff]
  %v46 = vld [vmem:[%s3 + $0x30] sm:$0xff]
  %v47 = vld [vmem:[%s3 + $0x38] sm:$0xff]
  %v48 = vld [vmem:[%s4] sm:$0x1]
  %v50 = vlaneseq
  %v51 = vshrl.u32 %v50, 7
  %v52 = vsub.s32 0, %v51
  %v53 = vrot.slane %v48, %v52
  %vm55 = vcmask 523264
  %v57 = vsel %vm55, %v36, 0
  %v60 = vsel %vm55, %v37, 0
  %v63 = vsel %vm55, %v38, 0
  %v66 = vsel %vm55, %v39, 0
  %68 = vmatprep.subr.mxu0 0.0
  %69 = vmatpush1.msra.mxu0 %v40
  %70 = vmatprep.subr.mxu0 0.0
  %71 = vmatpush1.msra.mxu0 %v41
  %72 = vmatprep.subr.mxu0 0.0
  %73 = vmatpush1.msra.mxu0 %v42
  %74 = vmatprep.subr.mxu0 0.0
  %75 = vmatpush1.msra.mxu0 %v43
  %76 = vmatprep.subr.mxu0 0.0
  %77 = vmatpush1.msra.mxu0 %v44
  %78 = vmatprep.subr.mxu0 0.0
  %79 = vmatpush1.msra.mxu0 %v45
  %80 = vmatprep.subr.mxu0 0.0
  %81 = vmatpush1.msra.mxu0 %v46
  %82 = vmatprep.subr.mxu0 0.0
  %83 = vmatpush1.msra.mxu0 %v47
  %84 = vmatprep.subr.mxu0 0.0
  %85 = vmatpush1.msra.mxu0 0.0
  %86 = vmatprep.subr.mxu0 0.0
  %87 = vmatpush1.msra.mxu0 0.0
  %88 = vmatprep.subr.mxu0 0.0
  %89 = vmatpush1.msra.mxu0 0.0
  %90 = vmatprep.subr.mxu0 0.0
  %91 = vmatpush1.msra.mxu0 0.0
  %92 = vmatprep.subr.mxu0 0.0
  %93 = vmatpush1.msra.mxu0 0.0
  %94 = vmatprep.subr.mxu0 0.0
  %95 = vmatpush1.msra.mxu0 0.0
  %96 = vmatprep.subr.mxu0 0.0
  %97 = vmatpush1.msra.mxu0 0.0
  %98 = vmatprep.subr.mxu0 0.0
  %99 = vmatpush1.msra.mxu0 0.0
  %100 = vmatprep.subr.mxu0 0.0
  %101 = vmatpush1.msra.mxu0 0.0
  %102 = vmatprep.subr.mxu0 0.0
  %103 = vmatpush1.msra.mxu0 0.0
  %104 = vmatprep.subr.mxu0 0.0
  %105 = vmatpush1.msra.mxu0 0.0
  %106 = vmatprep.subr.mxu0 0.0
  %107 = vmatpush1.msra.mxu0 0.0
  %108 = vmatprep.subr.mxu0 0.0
  %109 = vmatpush1.msra.mxu0 0.0
  %110 = vmatprep.subr.mxu0 0.0
  %111 = vmatpush1.msra.mxu0 0.0
  %112 = vmatprep.subr.mxu0 0.0
  %113 = vmatpush1.msra.mxu0 0.0
  %114 = vmatprep.subr.mxu0 0.0
  %115 = vmatpush1.msra.mxu0 0.0
  %116 = vmatprep.subr.mxu0 0.0
  %117 = vmatpush1.msra.mxu0 0.0
  %118 = vmatprep.subr.mxu0 0.0
  %119 = vmatpush1.msra.mxu0 0.0
  %120 = vmatprep.subr.mxu0 0.0
  %121 = vmatpush1.msra.mxu0 0.0
  %122 = vmatprep.subr.mxu0 0.0
  %123 = vmatpush1.msra.mxu0 0.0
  %124 = vmatprep.subr.mxu0 0.0
  %125 = vmatpush1.msra.mxu0 0.0
  %126 = vmatprep.subr.mxu0 0.0
  %127 = vmatpush1.msra.mxu0 0.0
  %128 = vmatprep.subr.mxu0 0.0
  %129 = vmatpush1.msra.mxu0 0.0
  %130 = vmatprep.subr.mxu0 0.0
  %131 = vmatpush1.msra.mxu0 0.0
  %132 = vmatprep.mubr.f32.mxu0 0.0
  %133 = vmatmul.mubr.f32.gmra.mrb[0].mxu0 %v57
  %v134 = vpop.f32.mrb[0].mxu0
  %v135 = vadd.f32 %v53, %v134
  %v136 = vpop.f32.mrb[0].mxu0
  %137 = vmatprep.mubr.f32.mxu0 0.0
  %138 = vmatmul.mubr.f32.gmra.mrb[0].mxu0 %v60
  %v139 = vpop.f32.mrb[0].mxu0
  %v140 = vadd.f32 %v53, %v139
  %v141 = vpop.f32.mrb[0].mxu0
  %142 = vmatprep.mubr.f32.mxu0 0.0
  %143 = vmatmul.mubr.f32.gmra.mrb[0].mxu0 %v63
  %v144 = vpop.f32.mrb[0].mxu0
  %v145 = vadd.f32 %v53, %v144
  %v146 = vpop.f32.mrb[0].mxu0
  %147 = vmatprep.mubr.f32.mxu0 0.0
  %148 = vmatmul.mubr.f32.gmra.mrb[0].mxu0 %v66
  %v149 = vpop.f32.mrb[0].mxu0
  %v150 = vadd.f32 %v53, %v149
  %v151 = vpop.f32.mrb[0].mxu0
  %152 = vdwg.mxu0
  %v153 = vmax.f32 %v135, 0.0
  %v154 = vmax.f32 %v140, 0.0
  %v155 = vmax.f32 %v145, 0.0
  %v156 = vmax.f32 %v150, 0.0
  %157 = vst.msk [vmem:[%s5] sm:$0xff] %vm55, %v153
  %158 = vst.msk [vmem:[%s5 + $0x8] sm:$0xff] %vm55, %v154
  %159 = vst.msk [vmem:[%s5 + $0x10] sm:$0xff] %vm55, %v155
  %160 = vst.msk [vmem:[%s5 + $0x18] sm:$0xff] %vm55, %v156
  // Predicated region
  $region22: #{forward.28} parent=0 // pred_check
    _
  $region23: #{forward.28} parent=0 // pred_check_branch
    %162 = sbr.rel (0) target = $region25
  $region24: #{forward.28} parent=0 // pred_region
    _
  $region25: #{forward.28} parent=0 // pred_fallthru
    _
  // Predicated region
  $region26: #{forward.28} parent=0 // pred_check
    _
  $region27: #{forward.28} parent=0 // pred_check_branch
    %164 = sbr.rel (0) target = $region29
  $region28: #{forward.28} parent=0 // pred_region
    _
  $region29: #{forward.28} parent=0 // pred_fallthru
    _

// kernel: forward.27
$region0: #{forward.27}
  #allocation0 [shape = 'u32[]', space=smem, size = 0x4, offset = 0x4, fixed_abs, tag = 'smem constant byte address 0x4 - core index']
  #allocation1 [shape = 'u32[144,128]{1,0:T(1,128)}', space=vmem, size = 0x12000, scoped, tag = 'internal scratch']
  %s0 = inlined_call_operand.vmem [shape: f32[128,64], index: 0, kind: input, shape index: {}]
  %s1 = inlined_call_operand.vmem [shape: f32[128,64], index: 1, kind: input, shape index: {}]
  %s2 = inlined_call_operand.vmem [shape: f32[128,64], index: 2, kind: input, shape index: {}]
  %s3 = inlined_call_operand.vmem [shape: f32[64,64], index: 3, kind: input, shape index: {}]
  %s4 = inlined_call_operand.vmem [shape: f32[1,64], index: 4, kind: input, shape index: {}]
  %s5 = inlined_call_operand.vmem [shape: f32[128,64], index: 5, kind: output, shape index: {}]
  %s6 = sld [smem:[#allocation0]]
  $region30: #{forward.27} parent=0
    _
  %s8 = ssub.s32 1, %s6
  %s9 = scalar_select 0, %s8, %s6
  // Predicated region
  $region2: #{forward.27} parent=0 // pred_check
    _
  $region3: #{forward.27} parent=0 // pred_check_branch
    %11 = sbr.rel (0) target = $region5
  $region4: #{forward.27} parent=0 // pred_region
    _
  $region5: #{forward.27} parent=0 // pred_fallthru
    _
  // Predicated region
  $region6: #{forward.27} parent=0 // pred_check
    _
  $region7: #{forward.27} parent=0 // pred_check_branch
    %13 = sbr.rel (0) target = $region9
  $region8: #{forward.27} parent=0 // pred_region
    _
  $region9: #{forward.27} parent=0 // pred_fallthru
    _
  // Predicated region
  $region10: #{forward.27} parent=0 // pred_check
    _
  $region11: #{forward.27} parent=0 // pred_check_branch
    %15 = sbr.rel (0) target = $region13
  $region12: #{forward.27} parent=0 // pred_region
    _
  $region13: #{forward.27} parent=0 // pred_fallthru
    _
  // Predicated region
  $region14: #{forward.27} parent=0 // pred_check
    _
  $region15: #{forward.27} parent=0 // pred_check_branch
    %17 = sbr.rel (0) target = $region17
  $region16: #{forward.27} parent=0 // pred_region
    _
  $region17: #{forward.27} parent=0 // pred_fallthru
    _
  // Predicated region
  $region18: #{forward.27} parent=0 // pred_check
    _
  $region19: #{forward.27} parent=0 // pred_check_branch
    %19 = sbr.rel (0) target = $region21
  $region20: #{forward.27} parent=0 // pred_region
    _
  $region21: #{forward.27} parent=0 // pred_fallthru
    _
  %v20 = vld [vmem:[%s0] sm:$0xff]
  %v21 = vld [vmem:[%s0 + $0x8] sm:$0xff]
  %v22 = vld [vmem:[%s0 + $0x10] sm:$0xff]
  %v23 = vld [vmem:[%s0 + $0x18] sm:$0xff]
  %v24 = vld [vmem:[%s0 + $0x20] sm:$0xff]
  %v25 = vld [vmem:[%s0 + $0x28] sm:$0xff]
  %v26 = vld [vmem:[%s0 + $0x30] sm:$0xff]
  %v27 = vld [vmem:[%s0 + $0x38] sm:$0xff]
  %v28 = vld [vmem:[%s0 + $0x40] sm:$0xff]
  %v29 = vld [vmem:[%s0 + $0x48] sm:$0xff]
  %v30 = vld [vmem:[%s0 + $0x50] sm:$0xff]
  %v31 = vld [vmem:[%s0 + $0x58] sm:$0xff]
  %v32 = vld [vmem:[%s0 + $0x60] sm:$0xff]
  %v33 = vld [vmem:[%s0 + $0x68] sm:$0xff]
  %v34 = vld [vmem:[%s0 + $0x70] sm:$0xff]
  %v35 = vld [vmem:[%s0 + $0x78] sm:$0xff]
  %v36 = vld [vmem:[%s1] sm:$0xff]
  %v37 = vld [vmem:[%s1 + $0x8] sm:$0xff]
  %v38 = vld [vmem:[%s1 + $0x10] sm:$0xff]
  %v39 = vld [vmem:[%s1 + $0x18] sm:$0xff]
  %v40 = vld [vmem:[%s1 + $0x20] sm:$0xff]
  %v41 = vld [vmem:[%s1 + $0x28] sm:$0xff]
  %v42 = vld [vmem:[%s1 + $0x30] sm:$0xff]
  %v43 = vld [vmem:[%s1 + $0x38] sm:$0xff]
  %v44 = vld [vmem:[%s1 + $0x40] sm:$0xff]
  %v45 = vld [vmem:[%s1 + $0x48] sm:$0xff]
  %v46 = vld [vmem:[%s1 + $0x50] sm:$0xff]
  %v47 = vld [vmem:[%s1 + $0x58] sm:$0xff]
  %v48 = vld [vmem:[%s1 + $0x60] sm:$0xff]
  %v49 = vld [vmem:[%s1 + $0x68] sm:$0xff]
  %v50 = vld [vmem:[%s1 + $0x70] sm:$0xff]
  %v51 = vld [vmem:[%s1 + $0x78] sm:$0xff]
  %v52 = vadd.f32 %v20, %v36
  %v53 = vadd.f32 %v21, %v37
  %v54 = vadd.f32 %v22, %v38
  %v55 = vadd.f32 %v23, %v39
  %v56 = vadd.f32 %v24, %v40
  %v57 = vadd.f32 %v25, %v41
  %v58 = vadd.f32 %v26, %v42
  %v59 = vadd.f32 %v27, %v43
  %v60 = vadd.f32 %v28, %v44
  %v61 = vadd.f32 %v29, %v45
  %v62 = vadd.f32 %v30, %v46
  %v63 = vadd.f32 %v31, %v47
  %v64 = vadd.f32 %v32, %v48
  %v65 = vadd.f32 %v33, %v49
  %v66 = vadd.f32 %v34, %v50
  %v67 = vadd.f32 %v35, %v51
  %v68 = vld [vmem:[%s2] sm:$0xff]
  %v69 = vld [vmem:[%s2 + $0x8] sm:$0xff]
  %v70 = vld [vmem:[%s2 + $0x10] sm:$0xff]
  %v71 = vld [vmem:[%s2 + $0x18] sm:$0xff]
  %v72 = vld [vmem:[%s2 + $0x20] sm:$0xff]
  %v73 = vld [vmem:[%s2 + $0x28] sm:$0xff]
  %v74 = vld [vmem:[%s2 + $0x30] sm:$0xff]
  %v75 = vld [vmem:[%s2 + $0x38] sm:$0xff]
  %v76 = vld [vmem:[%s2 + $0x40] sm:$0xff]
  %v77 = vld [vmem:[%s2 + $0x48] sm:$0xff]
  %v78 = vld [vmem:[%s2 + $0x50] sm:$0xff]
  %v79 = vld [vmem:[%s2 + $0x58] sm:$0xff]
  %v80 = vld [vmem:[%s2 + $0x60] sm:$0xff]
  %v81 = vld [vmem:[%s2 + $0x68] sm:$0xff]
  %v82 = vld [vmem:[%s2 + $0x70] sm:$0xff]
  %v83 = vld [vmem:[%s2 + $0x78] sm:$0xff]
  %v84 = vadd.f32 %v52, %v68
  %v85 = vadd.f32 %v53, %v69
  %v86 = vadd.f32 %v54, %v70
  %v87 = vadd.f32 %v55, %v71
  %v88 = vadd.f32 %v56, %v72
  %v89 = vadd.f32 %v57, %v73
  %v90 = vadd.f32 %v58, %v74
  %v91 = vadd.f32 %v59, %v75
  %v92 = vadd.f32 %v60, %v76
  %v93 = vadd.f32 %v61, %v77
  %v94 = vadd.f32 %v62, %v78
  %v95 = vadd.f32 %v63, %v79
  %v96 = vadd.f32 %v64, %v80
  %v97 = vadd.f32 %v65, %v81
  %v98 = vadd.f32 %v66, %v82
  %v99 = vadd.f32 %v67, %v83
  %v100 = vld [vmem:[%s3] sm:$0xff]
  %v101 = vld [vmem:[%s3 + $0x8] sm:$0xff]
  %v102 = vld [vmem:[%s3 + $0x10] sm:$0xff]
  %v103 = vld [vmem:[%s3 + $0x18] sm:$0xff]
  %v104 = vld [vmem:[%s3 + $0x20] sm:$0xff]
  %v105 = vld [vmem:[%s3 + $0x28] sm:$0xff]
  %v106 = vld [vmem:[%s3 + $0x30] sm:$0xff]
  %v107 = vld [vmem:[%s3 + $0x38] sm:$0xff]
  %v108 = vld [vmem:[%s4] sm:$0x1]
  %v110 = vlaneseq
  %v111 = vshrl.u32 %v110, 7
  %v112 = vsub.s32 0, %v111
  %v113 = vrot.slane %v108, %v112
  %vm115 = vcmask 523264
  %v117 = vsel %vm115, %v84, 0
  %v120 = vsel %vm115, %v85, 0
  %v123 = vsel %vm115, %v86, 0
  %v126 = vsel %vm115, %v87, 0
  %v129 = vsel %vm115, %v88, 0
  %v132 = vsel %vm115, %v89, 0
  %v135 = vsel %vm115, %v90, 0
  %v138 = vsel %vm115, %v91, 0
  %v141 = vsel %vm115, %v92, 0
  %v144 = vsel %vm115, %v93, 0
  %v147 = vsel %vm115, %v94, 0
  %v150 = vsel %vm115, %v95, 0
  %v153 = vsel %vm115, %v96, 0
  %v156 = vsel %vm115, %v97, 0
  %v159 = vsel %vm115, %v98, 0
  %v162 = vsel %vm115, %v99, 0
  %164 = vmatprep.subr.mxu0 0.0
  %165 = vmatpush1.msra.mxu0 %v100
  %166 = vmatprep.subr.mxu0 0.0
  %167 = vmatpush1.msra.mxu0 %v101
  %168 = vmatprep.subr.mxu0 0.0
  %169 = vmatpush1.msra.mxu0 %v102
  %170 = vmatprep.subr.mxu0 0.0
  %171 = vmatpush1.msra.mxu0 %v103
  %172 = vmatprep.subr.mxu0 0.0
  %173 = vmatpush1.msra.mxu0 %v104
  %174 = vmatprep.subr.mxu0 0.0
  %175 = vmatpush1.msra.mxu0 %v105
  %176 = vmatprep.subr.mxu0 0.0
  %177 = vmatpush1.msra.mxu0 %v106
  %178 = vmatprep.subr.mxu0 0.0
  %179 = vmatpush1.msra.mxu0 %v107
  %180 = vmatprep.subr.mxu0 0.0
  %181 = vmatpush1.msra.mxu0 0.0
  %182 = vmatprep.subr.mxu0 0.0
  %183 = vmatpush1.msra.mxu0 0.0
  %184 = vmatprep.subr.mxu0 0.0
  %185 = vmatpush1.msra.mxu0 0.0
  %186 = vmatprep.subr.mxu0 0.0
  %187 = vmatpush1.msra.mxu0 0.0
  %188 = vmatprep.subr.mxu0 0.0
  %189 = vmatpush1.msra.mxu0 0.0
  %190 = vmatprep.subr.mxu0 0.0
  %191 = vmatpush1.msra.mxu0 0.0
  %192 = vmatprep.subr.mxu0 0.0
  %193 = vmatpush1.msra.mxu0 0.0
  %194 = vmatprep.subr.mxu0 0.0
  %195 = vmatpush1.msra.mxu0 0.0
  %196 = vmatprep.subr.mxu0 0.0
  %197 = vmatpush1.msra.mxu0 0.0
  %198 = vmatprep.subr.mxu0 0.0
  %199 = vmatpush1.msra.mxu0 0.0
  %200 = vmatprep.subr.mxu0 0.0
  %201 = vmatpush1.msra.mxu0 0.0
  %202 = vmatprep.subr.mxu0 0.0
  %203 = vmatpush1.msra.mxu0 0.0
  %204 = vmatprep.subr.mxu0 0.0
  %205 = vmatpush1.msra.mxu0 0.0
  %206 = vmatprep.subr.mxu0 0.0
  %207 = vmatpush1.msra.mxu0 0.0
  %208 = vmatprep.subr.mxu0 0.0
  %209 = vmatpush1.msra.mxu0 0.0
  %210 = vmatprep.subr.mxu0 0.0
  %211 = vmatpush1.msra.mxu0 0.0
  %212 = vmatprep.subr.mxu0 0.0
  %213 = vmatpush1.msra.mxu0 0.0
  %214 = vmatprep.subr.mxu0 0.0
  %215 = vmatpush1.msra.mxu0 0.0
  %216 = vmatprep.subr.mxu0 0.0
  %217 = vmatpush1.msra.mxu0 0.0
  %218 = vmatprep.subr.mxu0 0.0
  %219 = vmatpush1.msra.mxu0 0.0
  %220 = vmatprep.subr.mxu0 0.0
  %221 = vmatpush1.msra.mxu0 0.0
  %222 = vmatprep.subr.mxu0 0.0
  %223 = vmatpush1.msra.mxu0 0.0
  %224 = vmatprep.subr.mxu0 0.0
  %225 = vmatpush1.msra.mxu0 0.0
  %226 = vmatprep.subr.mxu0 0.0
  %227 = vmatpush1.msra.mxu0 0.0
  %228 = vmatprep.mubr.f32.mxu0 0.0
  %229 = vmatmul.mubr.f32.gmra.mrb[0].mxu0 %v117
  %v230 = vpop.f32.mrb[0].mxu0
  %v231 = vadd.f32 %v113, %v230
  %v232 = vpop.f32.mrb[0].mxu0
  %233 = vmatprep.mubr.f32.mxu0 0.0
  %234 = vmatmul.mubr.f32.gmra.mrb[0].mxu0 %v120
  %v235 = vpop.f32.mrb[0].mxu0
  %v236 = vadd.f32 %v113, %v235
  %v237 = vpop.f32.mrb[0].mxu0
  %238 = vmatprep.mubr.f32.mxu0 0.0
  %239 = vmatmul.mubr.f32.gmra.mrb[0].mxu0 %v123
  %v240 = vpop.f32.mrb[0].mxu0
  %v241 = vadd.f32 %v113, %v240
  %v242 = vpop.f32.mrb[0].mxu0
  %243 = vmatprep.mubr.f32.mxu0 0.0
  %244 = vmatmul.mubr.f32.gmra.mrb[0].mxu0 %v126
  %v245 = vpop.f32.mrb[0].mxu0
  %v246 = vadd.f32 %v113, %v245
  %v247 = vpop.f32.mrb[0].mxu0
  %248 = vmatprep.mubr.f32.mxu0 0.0
  %249 = vmatmul.mubr.f32.gmra.mrb[0].mxu0 %v129
  %v250 = vpop.f32.mrb[0].mxu0
  %v251 = vadd.f32 %v113, %v250
  %v252 = vpop.f32.mrb[0].mxu0
  %253 = vmatprep.mubr.f32.mxu0 0.0
  %254 = vmatmul.mubr.f32.gmra.mrb[0].mxu0 %v132
  %v255 = vpop.f32.mrb[0].mxu0
  %v256 = vadd.f32 %v113, %v255
  %v257 = vpop.f32.mrb[0].mxu0
  %258 = vmatprep.mubr.f32.mxu0 0.0
  %259 = vmatmul.mubr.f32.gmra.mrb[0].mxu0 %v135
  %v260 = vpop.f32.mrb[0].mxu0
  %v261 = vadd.f32 %v113, %v260
  %v262 = vpop.f32.mrb[0].mxu0
  %263 = vmatprep.mubr.f32.mxu0 0.0
  %264 = vmatmul.mubr.f32.gmra.mrb[0].mxu0 %v138
  %v265 = vpop.f32.mrb[0].mxu0
  %v266 = vadd.f32 %v113, %v265
  %v267 = vpop.f32.mrb[0].mxu0
  %268 = vmatprep.mubr.f32.mxu0 0.0
  %269 = vmatmul.mubr.f32.gmra.mrb[0].mxu0 %v141
  %v270 = vpop.f32.mrb[0].mxu0
  %v271 = vadd.f32 %v113, %v270
  %v272 = vpop.f32.mrb[0].mxu0
  %273 = vmatprep.mubr.f32.mxu0 0.0
  %274 = vmatmul.mubr.f32.gmra.mrb[0].mxu0 %v144
  %v275 = vpop.f32.mrb[0].mxu0
  %v276 = vadd.f32 %v113, %v275
  %v277 = vpop.f32.mrb[0].mxu0
  %278 = vmatprep.mubr.f32.mxu0 0.0
  %279 = vmatmul.mubr.f32.gmra.mrb[0].mxu0 %v147
  %v280 = vpop.f32.mrb[0].mxu0
  %v281 = vadd.f32 %v113, %v280
  %v282 = vpop.f32.mrb[0].mxu0
  %283 = vmatprep.mubr.f32.mxu0 0.0
  %284 = vmatmul.mubr.f32.gmra.mrb[0].mxu0 %v150
  %v285 = vpop.f32.mrb[0].mxu0
  %v286 = vadd.f32 %v113, %v285
  %v287 = vpop.f32.mrb[0].mxu0
  %288 = vmatprep.mubr.f32.mxu0 0.0
  %289 = vmatmul.mubr.f32.gmra.mrb[0].mxu0 %v153
  %v290 = vpop.f32.mrb[0].mxu0
  %v291 = vadd.f32 %v113, %v290
  %v292 = vpop.f32.mrb[0].mxu0
  %293 = vmatprep.mubr.f32.mxu0 0.0
  %294 = vmatmul.mubr.f32.gmra.mrb[0].mxu0 %v156
  %v295 = vpop.f32.mrb[0].mxu0
  %v296 = vadd.f32 %v113, %v295
  %v297 = vpop.f32.mrb[0].mxu0
  %298 = vmatprep.mubr.f32.mxu0 0.0
  %299 = vmatmul.mubr.f32.gmra.mrb[0].mxu0 %v159
  %v300 = vpop.f32.mrb[0].mxu0
  %v301 = vadd.f32 %v113, %v300
  %v302 = vpop.f32.mrb[0].mxu0
  %303 = vmatprep.mubr.f32.mxu0 0.0
  %304 = vmatmul.mubr.f32.gmra.mrb[0].mxu0 %v162
  %v305 = vpop.f32.mrb[0].mxu0
  %v306 = vadd.f32 %v113, %v305
  %v307 = vpop.f32.mrb[0].mxu0
  %308 = vdwg.mxu0
  %v309 = vmax.f32 %v231, 0.0
  %v310 = vmax.f32 %v236, 0.0
  %v311 = vmax.f32 %v241, 0.0
  %v312 = vmax.f32 %v246, 0.0
  %v313 = vmax.f32 %v251, 0.0
  %v314 = vmax.f32 %v256, 0.0
  %v315 = vmax.f32 %v261, 0.0
  %v316 = vmax.f32 %v266, 0.0
  %v317 = vmax.f32 %v271, 0.0
  %v318 = vmax.f32 %v276, 0.0
  %v319 = vmax.f32 %v281, 0.0
  %v320 = vmax.f32 %v286, 0.0
  %v321 = vmax.f32 %v291, 0.0
  %v322 = vmax.f32 %v296, 0.0
  %v323 = vmax.f32 %v301, 0.0
  %v324 = vmax.f32 %v306, 0.0
  %325 = vst.msk [vmem:[%s5] sm:$0xff] %vm115, %v309
  %326 = vst.msk [vmem:[%s5 + $0x8] sm:$0xff] %vm115, %v310
  %327 = vst.msk [vmem:[%s5 + $0x10] sm:$0xff] %vm115, %v311
  %328 = vst.msk [vmem:[%s5 + $0x18] sm:$0xff] %vm115, %v312
  %329 = vst.msk [vmem:[%s5 + $0x20] sm:$0xff] %vm115, %v313
  %330 = vst.msk [vmem:[%s5 + $0x28] sm:$0xff] %vm115, %v314
  %331 = vst.msk [vmem:[%s5 + $0x30] sm:$0xff] %vm115, %v315
  %332 = vst.msk [vmem:[%s5 + $0x38] sm:$0xff] %vm115, %v316
  %333 = vst.msk [vmem:[%s5 + $0x40] sm:$0xff] %vm115, %v317
  %334 = vst.msk [vmem:[%s5 + $0x48] sm:$0xff] %vm115, %v318
  %335 = vst.msk [vmem:[%s5 + $0x50] sm:$0xff] %vm115, %v319
  %336 = vst.msk [vmem:[%s5 + $0x58] sm:$0xff] %vm115, %v320
  %337 = vst.msk [vmem:[%s5 + $0x60] sm:$0xff] %vm115, %v321
  %338 = vst.msk [vmem:[%s5 + $0x68] sm:$0xff] %vm115, %v322
  %339 = vst.msk [vmem:[%s5 + $0x70] sm:$0xff] %vm115, %v323
  %340 = vst.msk [vmem:[%s5 + $0x78] sm:$0xff] %vm115, %v324
  // Predicated region
  $region22: #{forward.27} parent=0 // pred_check
    _
  $region23: #{forward.27} parent=0 // pred_check_branch
    %342 = sbr.rel (0) target = $region25
  $region24: #{forward.27} parent=0 // pred_region
    _
  $region25: #{forward.27} parent=0 // pred_fallthru
    _
  // Predicated region
  $region26: #{forward.27} parent=0 // pred_check
    _
  $region27: #{forward.27} parent=0 // pred_check_branch
    %344 = sbr.rel (0) target = $region29
  $region28: #{forward.27} parent=0 // pred_region
    _
  $region29: #{forward.27} parent=0 // pred_fallthru
    _

// kernel: forward.29
$region0: #{forward.29}
  #allocation0 [shape = 'u32[]', space=smem, size = 0x4, offset = 0x4, fixed_abs, tag = 'smem constant byte address 0x4 - core index']
  #allocation1 [shape = 'u32[144,128]{1,0:T(1,128)}', space=vmem, size = 0x12000, scoped, tag = 'internal scratch']
  %s0 = inlined_call_operand.vmem [shape: f32[8,64], index: 0, kind: input, shape index: {}]
  %s1 = inlined_call_operand.vmem [shape: f32[8,64], index: 1, kind: input, shape index: {}]
  %s2 = inlined_call_operand.vmem [shape: f32[8,64], index: 2, kind: input, shape index: {}]
  %s3 = inlined_call_operand.vmem [shape: f32[64,64], index: 3, kind: input, shape index: {}]
  %s4 = inlined_call_operand.vmem [shape: f32[1,64], index: 4, kind: input, shape index: {}]
  %s5 = inlined_call_operand.vmem [shape: f32[8,64], index: 5, kind: output, shape index: {}]
  %s6 = sld [smem:[#allocation0]]
  $region30: #{forward.29} parent=0
    _
  %s8 = ssub.s32 1, %s6
  %s9 = scalar_select 0, %s8, %s6
  // Predicated region
  $region2: #{forward.29} parent=0 // pred_check
    _
  $region3: #{forward.29} parent=0 // pred_check_branch
    %11 = sbr.rel (0) target = $region5
  $region4: #{forward.29} parent=0 // pred_region
    _
  $region5: #{forward.29} parent=0 // pred_fallthru
    _
  // Predicated region
  $region6: #{forward.29} parent=0 // pred_check
    _
  $region7: #{forward.29} parent=0 // pred_check_branch
    %13 = sbr.rel (0) target = $region9
  $region8: #{forward.29} parent=0 // pred_region
    _
  $region9: #{forward.29} parent=0 // pred_fallthru
    _
  // Predicated region
  $region10: #{forward.29} parent=0 // pred_check
    _
  $region11: #{forward.29} parent=0 // pred_check_branch
    %15 = sbr.rel (0) target = $region13
  $region12: #{forward.29} parent=0 // pred_region
    _
  $region13: #{forward.29} parent=0 // pred_fallthru
    _
  // Predicated region
  $region14: #{forward.29} parent=0 // pred_check
    _
  $region15: #{forward.29} parent=0 // pred_check_branch
    %17 = sbr.rel (0) target = $region17
  $region16: #{forward.29} parent=0 // pred_region
    _
  $region17: #{forward.29} parent=0 // pred_fallthru
    _
  // Predicated region
  $region18: #{forward.29} parent=0 // pred_check
    _
  $region19: #{forward.29} parent=0 // pred_check_branch
    %19 = sbr.rel (0) target = $region21
  $region20: #{forward.29} parent=0 // pred_region
    _
  $region21: #{forward.29} parent=0 // pred_fallthru
    _
  %v20 = vld [vmem:[%s0] sm:$0xff]
  %v21 = vld [vmem:[%s1] sm:$0xff]
  %v22 = vadd.f32 %v20, %v21
  %v23 = vld [vmem:[%s2] sm:$0xff]
  %v24 = vadd.f32 %v22, %v23
  %v25 = vld [vmem:[%s3] sm:$0xff]
  %v26 = vld [vmem:[%s3 + $0x8] sm:$0xff]
  %v27 = vld [vmem:[%s3 + $0x10] sm:$0xff]
  %v28 = vld [vmem:[%s3 + $0x18] sm:$0xff]
  %v29 = vld [vmem:[%s3 + $0x20] sm:$0xff]
  %v30 = vld [vmem:[%s3 + $0x28] sm:$0xff]
  %v31 = vld [vmem:[%s3 + $0x30] sm:$0xff]
  %v32 = vld [vmem:[%s3 + $0x38] sm:$0xff]
  %v33 = vld [vmem:[%s4] sm:$0x1]
  %v35 = vlaneseq
  %v36 = vshrl.u32 %v35, 7
  %v37 = vsub.s32 0, %v36
  %v38 = vrot.slane %v33, %v37
  %vm40 = vcmask 523264
  %v42 = vsel %vm40, %v24, 0
  %44 = vmatprep.subr.mxu0 0.0
  %45 = vmatpush1.msra.mxu0 %v25
  %46 = vmatprep.subr.mxu0 0.0
  %47 = vmatpush1.msra.mxu0 %v26
  %48 = vmatprep.subr.mxu0 0.0
  %49 = vmatpush1.msra.mxu0 %v27
  %50 = vmatprep.subr.mxu0 0.0
  %51 = vmatpush1.msra.mxu0 %v28
  %52 = vmatprep.subr.mxu0 0.0
  %53 = vmatpush1.msra.mxu0 %v29
  %54 = vmatprep.subr.mxu0 0.0
  %55 = vmatpush1.msra.mxu0 %v30
  %56 = vmatprep.subr.mxu0 0.0
  %57 = vmatpush1.msra.mxu0 %v31
  %58 = vmatprep.subr.mxu0 0.0
  %59 = vmatpush1.msra.mxu0 %v32
  %60 = vmatprep.subr.mxu0 0.0
  %61 = vmatpush1.msra.mxu0 0.0
  %62 = vmatprep.subr.mxu0 0.0
  %63 = vmatpush1.msra.mxu0 0.0
  %64 = vmatprep.subr.mxu0 0.0
  %65 = vmatpush1.msra.mxu0 0.0
  %66 = vmatprep.subr.mxu0 0.0
  %67 = vmatpush1.msra.mxu0 0.0
  %68 = vmatprep.subr.mxu0 0.0
  %69 = vmatpush1.msra.mxu0 0.0
  %70 = vmatprep.subr.mxu0 0.0
  %71 = vmatpush1.msra.mxu0 0.0
  %72 = vmatprep.subr.mxu0 0.0
  %73 = vmatpush1.msra.mxu0 0.0
  %74 = vmatprep.subr.mxu0 0.0
  %75 = vmatpush1.msra.mxu0 0.0
  %76 = vmatprep.subr.mxu0 0.0
  %77 = vmatpush1.msra.mxu0 0.0
  %78 = vmatprep.subr.mxu0 0.0
  %79 = vmatpush1.msra.mxu0 0.0
  %80 = vmatprep.subr.mxu0 0.0
  %81 = vmatpush1.msra.mxu0 0.0
  %82 = vmatprep.subr.mxu0 0.0
  %83 = vmatpush1.msra.mxu0 0.0
  %84 = vmatprep.subr.mxu0 0.0
  %85 = vmatpush1.msra.mxu0 0.0
  %86 = vmatprep.subr.mxu0 0.0
  %87 = vmatpush1.msra.mxu0 0.0
  %88 = vmatprep.subr.mxu0 0.0
  %89 = vmatpush1.msra.mxu0 0.0
  %90 = vmatprep.subr.mxu0 0.0
  %91 = vmatpush1.msra.mxu0 0.0
  %92 = vmatprep.subr.mxu0 0.0
  %93 = vmatpush1.msra.mxu0 0.0
  %94 = vmatprep.subr.mxu0 0.0
  %95 = vmatpush1.msra.mxu0 0.0
  %96 = vmatprep.subr.mxu0 0.0
  %97 = vmatpush1.msra.mxu0 0.0
  %98 = vmatprep.subr.mxu0 0.0
  %99 = vmatpush1.msra.mxu0 0.0
  %100 = vmatprep.subr.mxu0 0.0
  %101 = vmatpush1.msra.mxu0 0.0
  %102 = vmatprep.subr.mxu0 0.0
  %103 = vmatpush1.msra.mxu0 0.0
  %104 = vmatprep.subr.mxu0 0.0
  %105 = vmatpush1.msra.mxu0 0.0
  %106 = vmatprep.subr.mxu0 0.0
  %107 = vmatpush1.msra.mxu0 0.0
  %108 = vmatprep.mubr.f32.mxu0 0.0
  %109 = vmatmul.mubr.f32.gmra.mrb[0].mxu0 %v42
  %v110 = vpop.f32.mrb[0].mxu0
  %v111 = vadd.f32 %v38, %v110
  %v112 = vpop.f32.mrb[0].mxu0
  %113 = vdwg.mxu0
  %v114 = vmax.f32 %v111, 0.0
  %115 = vst.msk [vmem:[%s5] sm:$0xff] %vm40, %v114
  // Predicated region
  $region22: #{forward.29} parent=0 // pred_check
    _
  $region23: #{forward.29} parent=0 // pred_check_branch
    %117 = sbr.rel (0) target = $region25
  $region24: #{forward.29} parent=0 // pred_region
    _
  $region25: #{forward.29} parent=0 // pred_fallthru
    _
  // Predicated region
  $region26: #{forward.29} parent=0 // pred_check
    _
  $region27: #{forward.29} parent=0 // pred_check_branch
    %119 = sbr.rel (0) target = $region29
  $region28: #{forward.29} parent=0 // pred_region
    _
  $region29: #{forward.29} parent=0 // pred_fallthru
    _

// kernel: forward.30
$region0: #{forward.30}
  #allocation0 [shape = 'u32[]', space=smem, size = 0x4, offset = 0x4, fixed_abs, tag = 'smem constant byte address 0x4 - core index']
  #allocation1 [shape = 'u32[144,128]{1,0:T(1,128)}', space=vmem, size = 0x12000, scoped, tag = 'internal scratch']
  %s0 = inlined_call_operand.vmem [shape: f32[2,64], index: 0, kind: input, shape index: {}]
  %s1 = inlined_call_operand.vmem [shape: f32[2,64], index: 1, kind: input, shape index: {}]
  %s2 = inlined_call_operand.vmem [shape: f32[2,64], index: 2, kind: input, shape index: {}]
  %s3 = inlined_call_operand.vmem [shape: f32[64,64], index: 3, kind: input, shape index: {}]
  %s4 = inlined_call_operand.vmem [shape: f32[1,64], index: 4, kind: input, shape index: {}]
  %s5 = inlined_call_operand.vmem [shape: f32[2,64], index: 5, kind: output, shape index: {}]
  %s6 = sld [smem:[#allocation0]]
  $region30: #{forward.30} parent=0
    _
  %s8 = ssub.s32 1, %s6
  %s9 = scalar_select 0, %s8, %s6
  // Predicated region
  $region2: #{forward.30} parent=0 // pred_check
    _
  $region3: #{forward.30} parent=0 // pred_check_branch
    %11 = sbr.rel (0) target = $region5
  $region4: #{forward.30} parent=0 // pred_region
    _
  $region5: #{forward.30} parent=0 // pred_fallthru
    _
  // Predicated region
  $region6: #{forward.30} parent=0 // pred_check
    _
  $region7: #{forward.30} parent=0 // pred_check_branch
    %13 = sbr.rel (0) target = $region9
  $region8: #{forward.30} parent=0 // pred_region
    _
  $region9: #{forward.30} parent=0 // pred_fallthru
    _
  // Predicated region
  $region10: #{forward.30} parent=0 // pred_check
    _
  $region11: #{forward.30} parent=0 // pred_check_branch
    %15 = sbr.rel (0) target = $region13
  $region12: #{forward.30} parent=0 // pred_region
    _
  $region13: #{forward.30} parent=0 // pred_fallthru
    _
  // Predicated region
  $region14: #{forward.30} parent=0 // pred_check
    _
  $region15: #{forward.30} parent=0 // pred_check_branch
    %17 = sbr.rel (0) target = $region17
  $region16: #{forward.30} parent=0 // pred_region
    _
  $region17: #{forward.30} parent=0 // pred_fallthru
    _
  // Predicated region
  $region18: #{forward.30} parent=0 // pred_check
    _
  $region19: #{forward.30} parent=0 // pred_check_branch
    %19 = sbr.rel (0) target = $region21
  $region20: #{forward.30} parent=0 // pred_region
    _
  $region21: #{forward.30} parent=0 // pred_fallthru
    _
  %v20 = vld [vmem:[%s0] sm:$0x3]
  %v21 = vld [vmem:[%s1] sm:$0x3]
  %v22 = vadd.f32 %v20, %v21
  %v23 = vld [vmem:[%s2] sm:$0x3]
  %v24 = vadd.f32 %v22, %v23
  %v25 = vld [vmem:[%s3] sm:$0xff]
  %v26 = vld [vmem:[%s3 + $0x8] sm:$0xff]
  %v27 = vld [vmem:[%s3 + $0x10] sm:$0xff]
  %v28 = vld [vmem:[%s3 + $0x18] sm:$0xff]
  %v29 = vld [vmem:[%s3 + $0x20] sm:$0xff]
  %v30 = vld [vmem:[%s3 + $0x28] sm:$0xff]
  %v31 = vld [vmem:[%s3 + $0x30] sm:$0xff]
  %v32 = vld [vmem:[%s3 + $0x38] sm:$0xff]
  %v33 = vld [vmem:[%s4] sm:$0x1]
  %v35 = vlaneseq
  %v36 = vshrl.u32 %v35, 7
  %v37 = vsub.s32 0, %v36
  %v38 = vrot.slane %v33, %v37
  %vm40 = vcmask 523264
  %v42 = vsel %vm40, %v24, 0
  %44 = vmatprep.subr.mxu0 0.0
  %45 = vmatpush1.msra.mxu0 %v25
  %46 = vmatprep.subr.mxu0 0.0
  %47 = vmatpush1.msra.mxu0 %v26
  %48 = vmatprep.subr.mxu0 0.0
  %49 = vmatpush1.msra.mxu0 %v27
  %50 = vmatprep.subr.mxu0 0.0
  %51 = vmatpush1.msra.mxu0 %v28
  %52 = vmatprep.subr.mxu0 0.0
  %53 = vmatpush1.msra.mxu0 %v29
  %54 = vmatprep.subr.mxu0 0.0
  %55 = vmatpush1.msra.mxu0 %v30
  %56 = vmatprep.subr.mxu0 0.0
  %57 = vmatpush1.msra.mxu0 %v31
  %58 = vmatprep.subr.mxu0 0.0
  %59 = vmatpush1.msra.mxu0 %v32
  %60 = vmatprep.subr.mxu0 0.0
  %61 = vmatpush1.msra.mxu0 0.0
  %62 = vmatprep.subr.mxu0 0.0
  %63 = vmatpush1.msra.mxu0 0.0
  %64 = vmatprep.subr.mxu0 0.0
  %65 = vmatpush1.msra.mxu0 0.0
  %66 = vmatprep.subr.mxu0 0.0
  %67 = vmatpush1.msra.mxu0 0.0
  %68 = vmatprep.subr.mxu0 0.0
  %69 = vmatpush1.msra.mxu0 0.0
  %70 = vmatprep.subr.mxu0 0.0
  %71 = vmatpush1.msra.mxu0 0.0
  %72 = vmatprep.subr.mxu0 0.0
  %73 = vmatpush1.msra.mxu0 0.0
  %74 = vmatprep.subr.mxu0 0.0
  %75 = vmatpush1.msra.mxu0 0.0
  %76 = vmatprep.subr.mxu0 0.0
  %77 = vmatpush1.msra.mxu0 0.0
  %78 = vmatprep.subr.mxu0 0.0
  %79 = vmatpush1.msra.mxu0 0.0
  %80 = vmatprep.subr.mxu0 0.0
  %81 = vmatpush1.msra.mxu0 0.0
  %82 = vmatprep.subr.mxu0 0.0
  %83 = vmatpush1.msra.mxu0 0.0
  %84 = vmatprep.subr.mxu0 0.0
  %85 = vmatpush1.msra.mxu0 0.0
  %86 = vmatprep.subr.mxu0 0.0
  %87 = vmatpush1.msra.mxu0 0.0
  %88 = vmatprep.subr.mxu0 0.0
  %89 = vmatpush1.msra.mxu0 0.0
  %90 = vmatprep.subr.mxu0 0.0
  %91 = vmatpush1.msra.mxu0 0.0
  %92 = vmatprep.subr.mxu0 0.0
  %93 = vmatpush1.msra.mxu0 0.0
  %94 = vmatprep.subr.mxu0 0.0
  %95 = vmatpush1.msra.mxu0 0.0
  %96 = vmatprep.subr.mxu0 0.0
  %97 = vmatpush1.msra.mxu0 0.0
  %98 = vmatprep.subr.mxu0 0.0
  %99 = vmatpush1.msra.mxu0 0.0
  %100 = vmatprep.subr.mxu0 0.0
  %101 = vmatpush1.msra.mxu0 0.0
  %102 = vmatprep.subr.mxu0 0.0
  %103 = vmatpush1.msra.mxu0 0.0
  %104 = vmatprep.subr.mxu0 0.0
  %105 = vmatpush1.msra.mxu0 0.0
  %106 = vmatprep.subr.mxu0 0.0
  %107 = vmatpush1.msra.mxu0 0.0
  %108 = vmatprep.mubr.f32.mxu0 0.0
  %109 = vmatmul.mubr.f32.gmra.mrb[0].mxu0 %v42
  %v110 = vpop.f32.mrb[0].mxu0
  %v111 = vadd.f32 %v38, %v110
  %v112 = vpop.f32.mrb[0].mxu0
  %113 = vdwg.mxu0
  %v114 = vmax.f32 %v111, 0.0
  %vm115 = vcmask 517120
  %116 = vst.msk [vmem:[%s5] sm:$0x3] %vm115, %v114
  // Predicated region
  $region22: #{forward.30} parent=0 // pred_check
    _
  $region23: #{forward.30} parent=0 // pred_check_branch
    %118 = sbr.rel (0) target = $region25
  $region24: #{forward.30} parent=0 // pred_region
    _
  $region25: #{forward.30} parent=0 // pred_fallthru
    _
  // Predicated region
  $region26: #{forward.30} parent=0 // pred_check
    _
  $region27: #{forward.30} parent=0 // pred_check_branch
    %120 = sbr.rel (0) target = $region29
  $region28: #{forward.30} parent=0 // pred_region
    _
  $region29: #{forward.30} parent=0 // pred_fallthru
    _

// kernel: forward.33
$region0: #{forward.33}
  #allocation0 [shape = 'u32[]', space=smem, size = 0x4, offset = 0x4, fixed_abs, tag = 'smem constant byte address 0x4 - core index']
  #allocation1 [shape = 'u32[144,128]{1,0:T(1,128)}', space=vmem, size = 0x12000, scoped, tag = 'internal scratch']
  %s0 = inlined_call_operand.vmem [shape: f32[2,64], index: 0, kind: input, shape index: {}]
  %s1 = inlined_call_operand.vmem [shape: f32[64,64], index: 1, kind: input, shape index: {}]
  %s2 = inlined_call_operand.vmem [shape: f32[1,64], index: 2, kind: input, shape index: {}]
  %s3 = inlined_call_operand.vmem [shape: f32[64,20], index: 3, kind: input, shape index: {}]
  %s4 = inlined_call_operand.vmem [shape: f32[1,20], index: 4, kind: input, shape index: {}]
  %s5 = inlined_call_operand.vmem [shape: f32[2,20], index: 5, kind: output, shape index: {}]
  %s6 = sld [smem:[#allocation0]]
  $region30: #{forward.33} parent=0
    _
  %s8 = ssub.s32 1, %s6
  %s9 = scalar_select 0, %s8, %s6
  // Predicated region
  $region2: #{forward.33} parent=0 // pred_check
    _
  $region3: #{forward.33} parent=0 // pred_check_branch
    %11 = sbr.rel (0) target = $region5
  $region4: #{forward.33} parent=0 // pred_region
    _
  $region5: #{forward.33} parent=0 // pred_fallthru
    _
  // Predicated region
  $region6: #{forward.33} parent=0 // pred_check
    _
  $region7: #{forward.33} parent=0 // pred_check_branch
    %13 = sbr.rel (0) target = $region9
  $region8: #{forward.33} parent=0 // pred_region
    _
  $region9: #{forward.33} parent=0 // pred_fallthru
    _
  // Predicated region
  $region10: #{forward.33} parent=0 // pred_check
    _
  $region11: #{forward.33} parent=0 // pred_check_branch
    %15 = sbr.rel (0) target = $region13
  $region12: #{forward.33} parent=0 // pred_region
    _
  $region13: #{forward.33} parent=0 // pred_fallthru
    _
  // Predicated region
  $region14: #{forward.33} parent=0 // pred_check
    _
  $region15: #{forward.33} parent=0 // pred_check_branch
    %17 = sbr.rel (0) target = $region17
  $region16: #{forward.33} parent=0 // pred_region
    _
  $region17: #{forward.33} parent=0 // pred_fallthru
    _
  // Predicated region
  $region18: #{forward.33} parent=0 // pred_check
    _
  $region19: #{forward.33} parent=0 // pred_check_branch
    %19 = sbr.rel (0) target = $region21
  $region20: #{forward.33} parent=0 // pred_region
    _
  $region21: #{forward.33} parent=0 // pred_fallthru
    _
  %v20 = vld [vmem:[%s0] sm:$0x3]
  %v21 = vld [vmem:[%s1] sm:$0xff]
  %v22 = vld [vmem:[%s1 + $0x8] sm:$0xff]
  %v23 = vld [vmem:[%s1 + $0x10] sm:$0xff]
  %v24 = vld [vmem:[%s1 + $0x18] sm:$0xff]
  %v25 = vld [vmem:[%s1 + $0x20] sm:$0xff]
  %v26 = vld [vmem:[%s1 + $0x28] sm:$0xff]
  %v27 = vld [vmem:[%s1 + $0x30] sm:$0xff]
  %v28 = vld [vmem:[%s1 + $0x38] sm:$0xff]
  %v29 = vld [vmem:[%s2] sm:$0x1]
  %v31 = vlaneseq
  %v32 = vshrl.u32 %v31, 7
  %v33 = vsub.s32 0, %v32
  %v34 = vrot.slane %v29, %v33
  %vm36 = vcmask 523264
  %v38 = vsel %vm36, %v20, 0
  %40 = vmatprep.subr.mxu0 0.0
  %41 = vmatpush1.msra.mxu0 %v21
  %42 = vmatprep.subr.mxu0 0.0
  %43 = vmatpush1.msra.mxu0 %v22
  %44 = vmatprep.subr.mxu0 0.0
  %45 = vmatpush1.msra.mxu0 %v23
  %46 = vmatprep.subr.mxu0 0.0
  %47 = vmatpush1.msra.mxu0 %v24
  %48 = vmatprep.subr.mxu0 0.0
  %49 = vmatpush1.msra.mxu0 %v25
  %50 = vmatprep.subr.mxu0 0.0
  %51 = vmatpush1.msra.mxu0 %v26
  %52 = vmatprep.subr.mxu0 0.0
  %53 = vmatpush1.msra.mxu0 %v27
  %54 = vmatprep.subr.mxu0 0.0
  %55 = vmatpush1.msra.mxu0 %v28
  %56 = vmatprep.subr.mxu0 0.0
  %57 = vmatpush1.msra.mxu0 0.0
  %58 = vmatprep.subr.mxu0 0.0
  %59 = vmatpush1.msra.mxu0 0.0
  %60 = vmatprep.subr.mxu0 0.0
  %61 = vmatpush1.msra.mxu0 0.0
  %62 = vmatprep.subr.mxu0 0.0
  %63 = vmatpush1.msra.mxu0 0.0
  %64 = vmatprep.subr.mxu0 0.0
  %65 = vmatpush1.msra.mxu0 0.0
  %66 = vmatprep.subr.mxu0 0.0
  %67 = vmatpush1.msra.mxu0 0.0
  %68 = vmatprep.subr.mxu0 0.0
  %69 = vmatpush1.msra.mxu0 0.0
  %70 = vmatprep.subr.mxu0 0.0
  %71 = vmatpush1.msra.mxu0 0.0
  %72 = vmatprep.subr.mxu0 0.0
  %73 = vmatpush1.msra.mxu0 0.0
  %74 = vmatprep.subr.mxu0 0.0
  %75 = vmatpush1.msra.mxu0 0.0
  %76 = vmatprep.subr.mxu0 0.0
  %77 = vmatpush1.msra.mxu0 0.0
  %78 = vmatprep.subr.mxu0 0.0
  %79 = vmatpush1.msra.mxu0 0.0
  %80 = vmatprep.subr.mxu0 0.0
  %81 = vmatpush1.msra.mxu0 0.0
  %82 = vmatprep.subr.mxu0 0.0
  %83 = vmatpush1.msra.mxu0 0.0
  %84 = vmatprep.subr.mxu0 0.0
  %85 = vmatpush1.msra.mxu0 0.0
  %86 = vmatprep.subr.mxu0 0.0
  %87 = vmatpush1.msra.mxu0 0.0
  %88 = vmatprep.subr.mxu0 0.0
  %89 = vmatpush1.msra.mxu0 0.0
  %90 = vmatprep.subr.mxu0 0.0
  %91 = vmatpush1.msra.mxu0 0.0
  %92 = vmatprep.subr.mxu0 0.0
  %93 = vmatpush1.msra.mxu0 0.0
  %94 = vmatprep.subr.mxu0 0.0
  %95 = vmatpush1.msra.mxu0 0.0
  %96 = vmatprep.subr.mxu0 0.0
  %97 = vmatpush1.msra.mxu0 0.0
  %98 = vmatprep.subr.mxu0 0.0
  %99 = vmatpush1.msra.mxu0 0.0
  %100 = vmatprep.subr.mxu0 0.0
  %101 = vmatpush1.msra.mxu0 0.0
  %102 = vmatprep.subr.mxu0 0.0
  %103 = vmatpush1.msra.mxu0 0.0
  %104 = vmatprep.mubr.f32.mxu0 0.0
  %105 = vmatmul.mubr.f32.gmra.mrb[0].mxu0 %v38
  %v106 = vpop.f32.mrb[0].mxu0
  %v107 = vadd.f32 %v34, %v106
  %v108 = vpop.f32.mrb[0].mxu0
  %109 = vdwg.mxu0
  %v110 = vmax.f32 %v107, 0.0
  %v111 = vld [vmem:[%s3] sm:$0xff]
  %v112 = vld [vmem:[%s3 + $0x8] sm:$0xff]
  %v113 = vld [vmem:[%s3 + $0x10] sm:$0xff]
  %v114 = vld [vmem:[%s3 + $0x18] sm:$0xff]
  %v115 = vld [vmem:[%s3 + $0x20] sm:$0xff]
  %v116 = vld [vmem:[%s3 + $0x28] sm:$0xff]
  %v117 = vld [vmem:[%s3 + $0x30] sm:$0xff]
  %v118 = vld [vmem:[%s3 + $0x38] sm:$0xff]
  %v119 = vld [vmem:[%s4] sm:$0x1]
  %v121 = vlaneseq
  %v122 = vshrl.u32 %v121, 7
  %v123 = vsub.s32 0, %v122
  %v124 = vrot.slane %v119, %v123
  %v127 = vsel %vm36, %v110, 0
  %129 = vmatprep.subr.mxu0 0.0
  %130 = vmatpush1.msra.mxu0 %v111
  %131 = vmatprep.subr.mxu0 0.0
  %132 = vmatpush1.msra.mxu0 %v112
  %133 = vmatprep.subr.mxu0 0.0
  %134 = vmatpush1.msra.mxu0 %v113
  %135 = vmatprep.subr.mxu0 0.0
  %136 = vmatpush1.msra.mxu0 %v114
  %137 = vmatprep.subr.mxu0 0.0
  %138 = vmatpush1.msra.mxu0 %v115
  %139 = vmatprep.subr.mxu0 0.0
  %140 = vmatpush1.msra.mxu0 %v116
  %141 = vmatprep.subr.mxu0 0.0
  %142 = vmatpush1.msra.mxu0 %v117
  %143 = vmatprep.subr.mxu0 0.0
  %144 = vmatpush1.msra.mxu0 %v118
  %145 = vmatprep.subr.mxu0 0.0
  %146 = vmatpush1.msra.mxu0 0.0
  %147 = vmatprep.subr.mxu0 0.0
  %148 = vmatpush1.msra.mxu0 0.0
  %149 = vmatprep.subr.mxu0 0.0
  %150 = vmatpush1.msra.mxu0 0.0
  %151 = vmatprep.subr.mxu0 0.0
  %152 = vmatpush1.msra.mxu0 0.0
  %153 = vmatprep.subr.mxu0 0.0
  %154 = vmatpush1.msra.mxu0 0.0
  %155 = vmatprep.subr.mxu0 0.0
  %156 = vmatpush1.msra.mxu0 0.0
  %157 = vmatprep.subr.mxu0 0.0
  %158 = vmatpush1.msra.mxu0 0.0
  %159 = vmatprep.subr.mxu0 0.0
  %160 = vmatpush1.msra.mxu0 0.0
  %161 = vmatprep.subr.mxu0 0.0
  %162 = vmatpush1.msra.mxu0 0.0
  %163 = vmatprep.subr.mxu0 0.0
  %164 = vmatpush1.msra.mxu0 0.0
  %165 = vmatprep.subr.mxu0 0.0
  %166 = vmatpush1.msra.mxu0 0.0
  %167 = vmatprep.subr.mxu0 0.0
  %168 = vmatpush1.msra.mxu0 0.0
  %169 = vmatprep.subr.mxu0 0.0
  %170 = vmatpush1.msra.mxu0 0.0
  %171 = vmatprep.subr.mxu0 0.0
  %172 = vmatpush1.msra.mxu0 0.0
  %173 = vmatprep.subr.mxu0 0.0
  %174 = vmatpush1.msra.mxu0 0.0
  %175 = vmatprep.subr.mxu0 0.0
  %176 = vmatpush1.msra.mxu0 0.0
  %177 = vmatprep.subr.mxu0 0.0
  %178 = vmatpush1.msra.mxu0 0.0
  %179 = vmatprep.subr.mxu0 0.0
  %180 = vmatpush1.msra.mxu0 0.0
  %181 = vmatprep.subr.mxu0 0.0
  %182 = vmatpush1.msra.mxu0 0.0
  %183 = vmatprep.subr.mxu0 0.0
  %184 = vmatpush1.msra.mxu0 0.0
  %185 = vmatprep.subr.mxu0 0.0
  %186 = vmatpush1.msra.mxu0 0.0
  %187 = vmatprep.subr.mxu0 0.0
  %188 = vmatpush1.msra.mxu0 0.0
  %189 = vmatprep.subr.mxu0 0.0
  %190 = vmatpush1.msra.mxu0 0.0
  %191 = vmatprep.subr.mxu0 0.0
  %192 = vmatpush1.msra.mxu0 0.0
  %193 = vmatprep.mubr.f32.mxu0 0.0
  %194 = vmatmul.mubr.f32.gmra.mrb[0].mxu0 %v127
  %v195 = vpop.f32.mrb[0].mxu0
  %v196 = vadd.f32 %v124, %v195
  %v197 = vpop.f32.mrb[0].mxu0
  %198 = vdwg.mxu0
  %vm199 = vcmask 156672
  %200 = vst.msk [vmem:[%s5] sm:$0x3] %vm199, %v196
  // Predicated region
  $region22: #{forward.33} parent=0 // pred_check
    _
  $region23: #{forward.33} parent=0 // pred_check_branch
    %202 = sbr.rel (0) target = $region25
  $region24: #{forward.33} parent=0 // pred_region
    _
  $region25: #{forward.33} parent=0 // pred_fallthru
    _
  // Predicated region
  $region26: #{forward.33} parent=0 // pred_check
    _
  $region27: #{forward.33} parent=0 // pred_check_branch
    %204 = sbr.rel (0) target = $region29
  $region28: #{forward.33} parent=0 // pred_region
    _
  $region29: #{forward.33} parent=0 // pred_fallthru
    _

// kernel: forward.32
$region0: #{forward.32}
  #allocation0 [shape = 'u32[]', space=smem, size = 0x4, offset = 0x4, fixed_abs, tag = 'smem constant byte address 0x4 - core index']
  #allocation1 [shape = 'u32[144,128]{1,0:T(1,128)}', space=vmem, size = 0x12000, scoped, tag = 'internal scratch']
  %s0 = inlined_call_operand.vmem [shape: f32[8,64], index: 0, kind: input, shape index: {}]
  %s1 = inlined_call_operand.vmem [shape: f32[64,64], index: 1, kind: input, shape index: {}]
  %s2 = inlined_call_operand.vmem [shape: f32[1,64], index: 2, kind: input, shape index: {}]
  %s3 = inlined_call_operand.vmem [shape: f32[64,20], index: 3, kind: input, shape index: {}]
  %s4 = inlined_call_operand.vmem [shape: f32[1,20], index: 4, kind: input, shape index: {}]
  %s5 = inlined_call_operand.vmem [shape: f32[8,20], index: 5, kind: output, shape index: {}]
  %s6 = sld [smem:[#allocation0]]
  $region30: #{forward.32} parent=0
    _
  %s8 = ssub.s32 1, %s6
  %s9 = scalar_select 0, %s8, %s6
  // Predicated region
  $region2: #{forward.32} parent=0 // pred_check
    _
  $region3: #{forward.32} parent=0 // pred_check_branch
    %11 = sbr.rel (0) target = $region5
  $region4: #{forward.32} parent=0 // pred_region
    _
  $region5: #{forward.32} parent=0 // pred_fallthru
    _
  // Predicated region
  $region6: #{forward.32} parent=0 // pred_check
    _
  $region7: #{forward.32} parent=0 // pred_check_branch
    %13 = sbr.rel (0) target = $region9
  $region8: #{forward.32} parent=0 // pred_region
    _
  $region9: #{forward.32} parent=0 // pred_fallthru
    _
  // Predicated region
  $region10: #{forward.32} parent=0 // pred_check
    _
  $region11: #{forward.32} parent=0 // pred_check_branch
    %15 = sbr.rel (0) target = $region13
  $region12: #{forward.32} parent=0 // pred_region
    _
  $region13: #{forward.32} parent=0 // pred_fallthru
    _
  // Predicated region
  $region14: #{forward.32} parent=0 // pred_check
    _
  $region15: #{forward.32} parent=0 // pred_check_branch
    %17 = sbr.rel (0) target = $region17
  $region16: #{forward.32} parent=0 // pred_region
    _
  $region17: #{forward.32} parent=0 // pred_fallthru
    _
  // Predicated region
  $region18: #{forward.32} parent=0 // pred_check
    _
  $region19: #{forward.32} parent=0 // pred_check_branch
    %19 = sbr.rel (0) target = $region21
  $region20: #{forward.32} parent=0 // pred_region
    _
  $region21: #{forward.32} parent=0 // pred_fallthru
    _
  %v20 = vld [vmem:[%s0] sm:$0xff]
  %v21 = vld [vmem:[%s1] sm:$0xff]
  %v22 = vld [vmem:[%s1 + $0x8] sm:$0xff]
  %v23 = vld [vmem:[%s1 + $0x10] sm:$0xff]
  %v24 = vld [vmem:[%s1 + $0x18] sm:$0xff]
  %v25 = vld [vmem:[%s1 + $0x20] sm:$0xff]
  %v26 = vld [vmem:[%s1 + $0x28] sm:$0xff]
  %v27 = vld [vmem:[%s1 + $0x30] sm:$0xff]
  %v28 = vld [vmem:[%s1 + $0x38] sm:$0xff]
  %v29 = vld [vmem:[%s2] sm:$0x1]
  %v31 = vlaneseq
  %v32 = vshrl.u32 %v31, 7
  %v33 = vsub.s32 0, %v32
  %v34 = vrot.slane %v29, %v33
  %vm36 = vcmask 523264
  %v38 = vsel %vm36, %v20, 0
  %40 = vmatprep.subr.mxu0 0.0
  %41 = vmatpush1.msra.mxu0 %v21
  %42 = vmatprep.subr.mxu0 0.0
  %43 = vmatpush1.msra.mxu0 %v22
  %44 = vmatprep.subr.mxu0 0.0
  %45 = vmatpush1.msra.mxu0 %v23
  %46 = vmatprep.subr.mxu0 0.0
  %47 = vmatpush1.msra.mxu0 %v24
  %48 = vmatprep.subr.mxu0 0.0
  %49 = vmatpush1.msra.mxu0 %v25
  %50 = vmatprep.subr.mxu0 0.0
  %51 = vmatpush1.msra.mxu0 %v26
  %52 = vmatprep.subr.mxu0 0.0
  %53 = vmatpush1.msra.mxu0 %v27
  %54 = vmatprep.subr.mxu0 0.0
  %55 = vmatpush1.msra.mxu0 %v28
  %56 = vmatprep.subr.mxu0 0.0
  %57 = vmatpush1.msra.mxu0 0.0
  %58 = vmatprep.subr.mxu0 0.0
  %59 = vmatpush1.msra.mxu0 0.0
  %60 = vmatprep.subr.mxu0 0.0
  %61 = vmatpush1.msra.mxu0 0.0
  %62 = vmatprep.subr.mxu0 0.0
  %63 = vmatpush1.msra.mxu0 0.0
  %64 = vmatprep.subr.mxu0 0.0
  %65 = vmatpush1.msra.mxu0 0.0
  %66 = vmatprep.subr.mxu0 0.0
  %67 = vmatpush1.msra.mxu0 0.0
  %68 = vmatprep.subr.mxu0 0.0
  %69 = vmatpush1.msra.mxu0 0.0
  %70 = vmatprep.subr.mxu0 0.0
  %71 = vmatpush1.msra.mxu0 0.0
  %72 = vmatprep.subr.mxu0 0.0
  %73 = vmatpush1.msra.mxu0 0.0
  %74 = vmatprep.subr.mxu0 0.0
  %75 = vmatpush1.msra.mxu0 0.0
  %76 = vmatprep.subr.mxu0 0.0
  %77 = vmatpush1.msra.mxu0 0.0
  %78 = vmatprep.subr.mxu0 0.0
  %79 = vmatpush1.msra.mxu0 0.0
  %80 = vmatprep.subr.mxu0 0.0
  %81 = vmatpush1.msra.mxu0 0.0
  %82 = vmatprep.subr.mxu0 0.0
  %83 = vmatpush1.msra.mxu0 0.0
  %84 = vmatprep.subr.mxu0 0.0
  %85 = vmatpush1.msra.mxu0 0.0
  %86 = vmatprep.subr.mxu0 0.0
  %87 = vmatpush1.msra.mxu0 0.0
  %88 = vmatprep.subr.mxu0 0.0
  %89 = vmatpush1.msra.mxu0 0.0
  %90 = vmatprep.subr.mxu0 0.0
  %91 = vmatpush1.msra.mxu0 0.0
  %92 = vmatprep.subr.mxu0 0.0
  %93 = vmatpush1.msra.mxu0 0.0
  %94 = vmatprep.subr.mxu0 0.0
  %95 = vmatpush1.msra.mxu0 0.0
  %96 = vmatprep.subr.mxu0 0.0
  %97 = vmatpush1.msra.mxu0 0.0
  %98 = vmatprep.subr.mxu0 0.0
  %99 = vmatpush1.msra.mxu0 0.0
  %100 = vmatprep.subr.mxu0 0.0
  %101 = vmatpush1.msra.mxu0 0.0
  %102 = vmatprep.subr.mxu0 0.0
  %103 = vmatpush1.msra.mxu0 0.0
  %104 = vmatprep.mubr.f32.mxu0 0.0
  %105 = vmatmul.mubr.f32.gmra.mrb[0].mxu0 %v38
  %v106 = vpop.f32.mrb[0].mxu0
  %v107 = vadd.f32 %v34, %v106
  %v108 = vpop.f32.mrb[0].mxu0
  %109 = vdwg.mxu0
  %v110 = vmax.f32 %v107, 0.0
  %v111 = vld [vmem:[%s3] sm:$0xff]
  %v112 = vld [vmem:[%s3 + $0x8] sm:$0xff]
  %v113 = vld [vmem:[%s3 + $0x10] sm:$0xff]
  %v114 = vld [vmem:[%s3 + $0x18] sm:$0xff]
  %v115 = vld [vmem:[%s3 + $0x20] sm:$0xff]
  %v116 = vld [vmem:[%s3 + $0x28] sm:$0xff]
  %v117 = vld [vmem:[%s3 + $0x30] sm:$0xff]
  %v118 = vld [vmem:[%s3 + $0x38] sm:$0xff]
  %v119 = vld [vmem:[%s4] sm:$0x1]
  %v121 = vlaneseq
  %v122 = vshrl.u32 %v121, 7
  %v123 = vsub.s32 0, %v122
  %v124 = vrot.slane %v119, %v123
  %v127 = vsel %vm36, %v110, 0
  %129 = vmatprep.subr.mxu0 0.0
  %130 = vmatpush1.msra.mxu0 %v111
  %131 = vmatprep.subr.mxu0 0.0
  %132 = vmatpush1.msra.mxu0 %v112
  %133 = vmatprep.subr.mxu0 0.0
  %134 = vmatpush1.msra.mxu0 %v113
  %135 = vmatprep.subr.mxu0 0.0
  %136 = vmatpush1.msra.mxu0 %v114
  %137 = vmatprep.subr.mxu0 0.0
  %138 = vmatpush1.msra.mxu0 %v115
  %139 = vmatprep.subr.mxu0 0.0
  %140 = vmatpush1.msra.mxu0 %v116
  %141 = vmatprep.subr.mxu0 0.0
  %142 = vmatpush1.msra.mxu0 %v117
  %143 = vmatprep.subr.mxu0 0.0
  %144 = vmatpush1.msra.mxu0 %v118
  %145 = vmatprep.subr.mxu0 0.0
  %146 = vmatpush1.msra.mxu0 0.0
  %147 = vmatprep.subr.mxu0 0.0
  %148 = vmatpush1.msra.mxu0 0.0
  %149 = vmatprep.subr.mxu0 0.0
  %150 = vmatpush1.msra.mxu0 0.0
  %151 = vmatprep.subr.mxu0 0.0
  %152 = vmatpush1.msra.mxu0 0.0
  %153 = vmatprep.subr.mxu0 0.0
  %154 = vmatpush1.msra.mxu0 0.0
  %155 = vmatprep.subr.mxu0 0.0
  %156 = vmatpush1.msra.mxu0 0.0
  %157 = vmatprep.subr.mxu0 0.0
  %158 = vmatpush1.msra.mxu0 0.0
  %159 = vmatprep.subr.mxu0 0.0
  %160 = vmatpush1.msra.mxu0 0.0
  %161 = vmatprep.subr.mxu0 0.0
  %162 = vmatpush1.msra.mxu0 0.0
  %163 = vmatprep.subr.mxu0 0.0
  %164 = vmatpush1.msra.mxu0 0.0
  %165 = vmatprep.subr.mxu0 0.0
  %166 = vmatpush1.msra.mxu0 0.0
  %167 = vmatprep.subr.mxu0 0.0
  %168 = vmatpush1.msra.mxu0 0.0
  %169 = vmatprep.subr.mxu0 0.0
  %170 = vmatpush1.msra.mxu0 0.0
  %171 = vmatprep.subr.mxu0 0.0
  %172 = vmatpush1.msra.mxu0 0.0
  %173 = vmatprep.subr.mxu0 0.0
  %174 = vmatpush1.msra.mxu0 0.0
  %175 = vmatprep.subr.mxu0 0.0
  %176 = vmatpush1.msra.mxu0 0.0
  %177 = vmatprep.subr.mxu0 0.0
  %178 = vmatpush1.msra.mxu0 0.0
  %179 = vmatprep.subr.mxu0 0.0
  %180 = vmatpush1.msra.mxu0 0.0
  %181 = vmatprep.subr.mxu0 0.0
  %182 = vmatpush1.msra.mxu0 0.0
  %183 = vmatprep.subr.mxu0 0.0
  %184 = vmatpush1.msra.mxu0 0.0
  %185 = vmatprep.subr.mxu0 0.0
  %186 = vmatpush1.msra.mxu0 0.0
  %187 = vmatprep.subr.mxu0 0.0
  %188 = vmatpush1.msra.mxu0 0.0
  %189 = vmatprep.subr.mxu0 0.0
  %190 = vmatpush1.msra.mxu0 0.0
  %191 = vmatprep.subr.mxu0 0.0
  %192 = vmatpush1.msra.mxu0 0.0
  %193 = vmatprep.mubr.f32.mxu0 0.0
  %194 = vmatmul.mubr.f32.gmra.mrb[0].mxu0 %v127
  %v195 = vpop.f32.mrb[0].mxu0
  %v196 = vadd.f32 %v124, %v195
  %v197 = vpop.f32.mrb[0].mxu0
  %198 = vdwg.mxu0
  %vm199 = vcmask 162816
  %200 = vst.msk [vmem:[%s5] sm:$0xff] %vm199, %v196
  // Predicated region
  $region22: #{forward.32} parent=0 // pred_check
    _
  $region23: #{forward.32} parent=0 // pred_check_branch
    %202 = sbr.rel (0) target = $region25
  $region24: #{forward.32} parent=0 // pred_region
    _
  $region25: #{forward.32} parent=0 // pred_fallthru
    _
  // Predicated region
  $region26: #{forward.32} parent=0 // pred_check
    _
  $region27: #{forward.32} parent=0 // pred_check_branch
    %204 = sbr.rel (0) target = $region29
  $region28: #{forward.32} parent=0 // pred_region
    _
  $region29: #{forward.32} parent=0 // pred_fallthru
    _

// kernel: forward.31
$region0: #{forward.31}
  #allocation0 [shape = 'u32[]', space=smem, size = 0x4, offset = 0x4, fixed_abs, tag = 'smem constant byte address 0x4 - core index']
  #allocation1 [shape = 'u32[144,128]{1,0:T(1,128)}', space=vmem, size = 0x12000, scoped, tag = 'internal scratch']
  %s0 = inlined_call_operand.vmem [shape: f32[32,64], index: 0, kind: input, shape index: {}]
  %s1 = inlined_call_operand.vmem [shape: f32[64,64], index: 1, kind: input, shape index: {}]
  %s2 = inlined_call_operand.vmem [shape: f32[1,64], index: 2, kind: input, shape index: {}]
  %s3 = inlined_call_operand.vmem [shape: f32[64,20], index: 3, kind: input, shape index: {}]
  %s4 = inlined_call_operand.vmem [shape: f32[1,20], index: 4, kind: input, shape index: {}]
  %s5 = inlined_call_operand.vmem [shape: f32[32,20], index: 5, kind: output, shape index: {}]
  %s6 = sld [smem:[#allocation0]]
  $region30: #{forward.31} parent=0
    _
  %s8 = ssub.s32 1, %s6
  %s9 = scalar_select 0, %s8, %s6
  // Predicated region
  $region2: #{forward.31} parent=0 // pred_check
    _
  $region3: #{forward.31} parent=0 // pred_check_branch
    %11 = sbr.rel (0) target = $region5
  $region4: #{forward.31} parent=0 // pred_region
    _
  $region5: #{forward.31} parent=0 // pred_fallthru
    _
  // Predicated region
  $region6: #{forward.31} parent=0 // pred_check
    _
  $region7: #{forward.31} parent=0 // pred_check_branch
    %13 = sbr.rel (0) target = $region9
  $region8: #{forward.31} parent=0 // pred_region
    _
  $region9: #{forward.31} parent=0 // pred_fallthru
    _
  // Predicated region
  $region10: #{forward.31} parent=0 // pred_check
    _
  $region11: #{forward.31} parent=0 // pred_check_branch
    %15 = sbr.rel (0) target = $region13
  $region12: #{forward.31} parent=0 // pred_region
    _
  $region13: #{forward.31} parent=0 // pred_fallthru
    _
  // Predicated region
  $region14: #{forward.31} parent=0 // pred_check
    _
  $region15: #{forward.31} parent=0 // pred_check_branch
    %17 = sbr.rel (0) target = $region17
  $region16: #{forward.31} parent=0 // pred_region
    _
  $region17: #{forward.31} parent=0 // pred_fallthru
    _
  // Predicated region
  $region18: #{forward.31} parent=0 // pred_check
    _
  $region19: #{forward.31} parent=0 // pred_check_branch
    %19 = sbr.rel (0) target = $region21
  $region20: #{forward.31} parent=0 // pred_region
    _
  $region21: #{forward.31} parent=0 // pred_fallthru
    _
  %v20 = vld [vmem:[%s0] sm:$0xff]
  %v21 = vld [vmem:[%s0 + $0x8] sm:$0xff]
  %v22 = vld [vmem:[%s0 + $0x10] sm:$0xff]
  %v23 = vld [vmem:[%s0 + $0x18] sm:$0xff]
  %v24 = vld [vmem:[%s1] sm:$0xff]
  %v25 = vld [vmem:[%s1 + $0x8] sm:$0xff]
  %v26 = vld [vmem:[%s1 + $0x10] sm:$0xff]
  %v27 = vld [vmem:[%s1 + $0x18] sm:$0xff]
  %v28 = vld [vmem:[%s1 + $0x20] sm:$0xff]
  %v29 = vld [vmem:[%s1 + $0x28] sm:$0xff]
  %v30 = vld [vmem:[%s1 + $0x30] sm:$0xff]
  %v31 = vld [vmem:[%s1 + $0x38] sm:$0xff]
  %v32 = vld [vmem:[%s2] sm:$0x1]
  %v34 = vlaneseq
  %v35 = vshrl.u32 %v34, 7
  %v36 = vsub.s32 0, %v35
  %v37 = vrot.slane %v32, %v36
  %vm39 = vcmask 523264
  %v41 = vsel %vm39, %v20, 0
  %v44 = vsel %vm39, %v21, 0
  %v47 = vsel %vm39, %v22, 0
  %v50 = vsel %vm39, %v23, 0
  %52 = vmatprep.subr.mxu0 0.0
  %53 = vmatpush1.msra.mxu0 %v24
  %54 = vmatprep.subr.mxu0 0.0
  %55 = vmatpush1.msra.mxu0 %v25
  %56 = vmatprep.subr.mxu0 0.0
  %57 = vmatpush1.msra.mxu0 %v26
  %58 = vmatprep.subr.mxu0 0.0
  %59 = vmatpush1.msra.mxu0 %v27
  %60 = vmatprep.subr.mxu0 0.0
  %61 = vmatpush1.msra.mxu0 %v28
  %62 = vmatprep.subr.mxu0 0.0
  %63 = vmatpush1.msra.mxu0 %v29
  %64 = vmatprep.subr.mxu0 0.0
  %65 = vmatpush1.msra.mxu0 %v30
  %66 = vmatprep.subr.mxu0 0.0
  %67 = vmatpush1.msra.mxu0 %v31
  %68 = vmatprep.subr.mxu0 0.0
  %69 = vmatpush1.msra.mxu0 0.0
  %70 = vmatprep.subr.mxu0 0.0
  %71 = vmatpush1.msra.mxu0 0.0
  %72 = vmatprep.subr.mxu0 0.0
  %73 = vmatpush1.msra.mxu0 0.0
  %74 = vmatprep.subr.mxu0 0.0
  %75 = vmatpush1.msra.mxu0 0.0
  %76 = vmatprep.subr.mxu0 0.0
  %77 = vmatpush1.msra.mxu0 0.0
  %78 = vmatprep.subr.mxu0 0.0
  %79 = vmatpush1.msra.mxu0 0.0
  %80 = vmatprep.subr.mxu0 0.0
  %81 = vmatpush1.msra.mxu0 0.0
  %82 = vmatprep.subr.mxu0 0.0
  %83 = vmatpush1.msra.mxu0 0.0
  %84 = vmatprep.subr.mxu0 0.0
  %85 = vmatpush1.msra.mxu0 0.0
  %86 = vmatprep.subr.mxu0 0.0
  %87 = vmatpush1.msra.mxu0 0.0
  %88 = vmatprep.subr.mxu0 0.0
  %89 = vmatpush1.msra.mxu0 0.0
  %90 = vmatprep.subr.mxu0 0.0
  %91 = vmatpush1.msra.mxu0 0.0
  %92 = vmatprep.subr.mxu0 0.0
  %93 = vmatpush1.msra.mxu0 0.0
  %94 = vmatprep.subr.mxu0 0.0
  %95 = vmatpush1.msra.mxu0 0.0
  %96 = vmatprep.subr.mxu0 0.0
  %97 = vmatpush1.msra.mxu0 0.0
  %98 = vmatprep.subr.mxu0 0.0
  %99 = vmatpush1.msra.mxu0 0.0
  %100 = vmatprep.subr.mxu0 0.0
  %101 = vmatpush1.msra.mxu0 0.0
  %102 = vmatprep.subr.mxu0 0.0
  %103 = vmatpush1.msra.mxu0 0.0
  %104 = vmatprep.subr.mxu0 0.0
  %105 = vmatpush1.msra.mxu0 0.0
  %106 = vmatprep.subr.mxu0 0.0
  %107 = vmatpush1.msra.mxu0 0.0
  %108 = vmatprep.subr.mxu0 0.0
  %109 = vmatpush1.msra.mxu0 0.0
  %110 = vmatprep.subr.mxu0 0.0
  %111 = vmatpush1.msra.mxu0 0.0
  %112 = vmatprep.subr.mxu0 0.0
  %113 = vmatpush1.msra.mxu0 0.0
  %114 = vmatprep.subr.mxu0 0.0
  %115 = vmatpush1.msra.mxu0 0.0
  %116 = vmatprep.mubr.f32.mxu0 0.0
  %117 = vmatmul.mubr.f32.gmra.mrb[0].mxu0 %v41
  %v118 = vpop.f32.mrb[0].mxu0
  %v119 = vadd.f32 %v37, %v118
  %v120 = vpop.f32.mrb[0].mxu0
  %121 = vmatprep.mubr.f32.mxu0 0.0
  %122 = vmatmul.mubr.f32.gmra.mrb[0].mxu0 %v44
  %v123 = vpop.f32.mrb[0].mxu0
  %v124 = vadd.f32 %v37, %v123
  %v125 = vpop.f32.mrb[0].mxu0
  %126 = vmatprep.mubr.f32.mxu0 0.0
  %127 = vmatmul.mubr.f32.gmra.mrb[0].mxu0 %v47
  %v128 = vpop.f32.mrb[0].mxu0
  %v129 = vadd.f32 %v37, %v128
  %v130 = vpop.f32.mrb[0].mxu0
  %131 = vmatprep.mubr.f32.mxu0 0.0
  %132 = vmatmul.mubr.f32.gmra.mrb[0].mxu0 %v50
  %v133 = vpop.f32.mrb[0].mxu0
  %v134 = vadd.f32 %v37, %v133
  %v135 = vpop.f32.mrb[0].mxu0
  %136 = vdwg.mxu0
  %v137 = vmax.f32 %v119, 0.0
  %v138 = vmax.f32 %v124, 0.0
  %v139 = vmax.f32 %v129, 0.0
  %v140 = vmax.f32 %v134, 0.0
  %v141 = vld [vmem:[%s3] sm:$0xff]
  %v142 = vld [vmem:[%s3 + $0x8] sm:$0xff]
  %v143 = vld [vmem:[%s3 + $0x10] sm:$0xff]
  %v144 = vld [vmem:[%s3 + $0x18] sm:$0xff]
  %v145 = vld [vmem:[%s3 + $0x20] sm:$0xff]
  %v146 = vld [vmem:[%s3 + $0x28] sm:$0xff]
  %v147 = vld [vmem:[%s3 + $0x30] sm:$0xff]
  %v148 = vld [vmem:[%s3 + $0x38] sm:$0xff]
  %v149 = vld [vmem:[%s4] sm:$0x1]
  %v151 = vlaneseq
  %v152 = vshrl.u32 %v151, 7
  %v153 = vsub.s32 0, %v152
  %v154 = vrot.slane %v149, %v153
  %v157 = vsel %vm39, %v137, 0
  %v160 = vsel %vm39, %v138, 0
  %v163 = vsel %vm39, %v139, 0
  %v166 = vsel %vm39, %v140, 0
  %168 = vmatprep.subr.mxu0 0.0
  %169 = vmatpush1.msra.mxu0 %v141
  %170 = vmatprep.subr.mxu0 0.0
  %171 = vmatpush1.msra.mxu0 %v142
  %172 = vmatprep.subr.mxu0 0.0
  %173 = vmatpush1.msra.mxu0 %v143
  %174 = vmatprep.subr.mxu0 0.0
  %175 = vmatpush1.msra.mxu0 %v144
  %176 = vmatprep.subr.mxu0 0.0
  %177 = vmatpush1.msra.mxu0 %v145
  %178 = vmatprep.subr.mxu0 0.0
  %179 = vmatpush1.msra.mxu0 %v146
  %180 = vmatprep.subr.mxu0 0.0
  %181 = vmatpush1.msra.mxu0 %v147
  %182 = vmatprep.subr.mxu0 0.0
  %183 = vmatpush1.msra.mxu0 %v148
  %184 = vmatprep.subr.mxu0 0.0
  %185 = vmatpush1.msra.mxu0 0.0
  %186 = vmatprep.subr.mxu0 0.0
  %187 = vmatpush1.msra.mxu0 0.0
  %188 = vmatprep.subr.mxu0 0.0
  %189 = vmatpush1.msra.mxu0 0.0
  %190 = vmatprep.subr.mxu0 0.0
  %191 = vmatpush1.msra.mxu0 0.0
  %192 = vmatprep.subr.mxu0 0.0
  %193 = vmatpush1.msra.mxu0 0.0
  %194 = vmatprep.subr.mxu0 0.0
  %195 = vmatpush1.msra.mxu0 0.0
  %196 = vmatprep.subr.mxu0 0.0
  %197 = vmatpush1.msra.mxu0 0.0
  %198 = vmatprep.subr.mxu0 0.0
  %199 = vmatpush1.msra.mxu0 0.0
  %200 = vmatprep.subr.mxu0 0.0
  %201 = vmatpush1.msra.mxu0 0.0
  %202 = vmatprep.subr.mxu0 0.0
  %203 = vmatpush1.msra.mxu0 0.0
  %204 = vmatprep.subr.mxu0 0.0
  %205 = vmatpush1.msra.mxu0 0.0
  %206 = vmatprep.subr.mxu0 0.0
  %207 = vmatpush1.msra.mxu0 0.0
  %208 = vmatprep.subr.mxu0 0.0
  %209 = vmatpush1.msra.mxu0 0.0
  %210 = vmatprep.subr.mxu0 0.0
  %211 = vmatpush1.msra.mxu0 0.0
  %212 = vmatprep.subr.mxu0 0.0
  %213 = vmatpush1.msra.mxu0 0.0
  %214 = vmatprep.subr.mxu0 0.0
  %215 = vmatpush1.msra.mxu0 0.0
  %216 = vmatprep.subr.mxu0 0.0
  %217 = vmatpush1.msra.mxu0 0.0
  %218 = vmatprep.subr.mxu0 0.0
  %219 = vmatpush1.msra.mxu0 0.0
  %220 = vmatprep.subr.mxu0 0.0
  %221 = vmatpush1.msra.mxu0 0.0
  %222 = vmatprep.subr.mxu0 0.0
  %223 = vmatpush1.msra.mxu0 0.0
  %224 = vmatprep.subr.mxu0 0.0
  %225 = vmatpush1.msra.mxu0 0.0
  %226 = vmatprep.subr.mxu0 0.0
  %227 = vmatpush1.msra.mxu0 0.0
  %228 = vmatprep.subr.mxu0 0.0
  %229 = vmatpush1.msra.mxu0 0.0
  %230 = vmatprep.subr.mxu0 0.0
  %231 = vmatpush1.msra.mxu0 0.0
  %232 = vmatprep.mubr.f32.mxu0 0.0
  %233 = vmatmul.mubr.f32.gmra.mrb[0].mxu0 %v157
  %v234 = vpop.f32.mrb[0].mxu0
  %v235 = vadd.f32 %v154, %v234
  %v236 = vpop.f32.mrb[0].mxu0
  %237 = vmatprep.mubr.f32.mxu0 0.0
  %238 = vmatmul.mubr.f32.gmra.mrb[0].mxu0 %v160
  %v239 = vpop.f32.mrb[0].mxu0
  %v240 = vadd.f32 %v154, %v239
  %v241 = vpop.f32.mrb[0].mxu0
  %242 = vmatprep.mubr.f32.mxu0 0.0
  %243 = vmatmul.mubr.f32.gmra.mrb[0].mxu0 %v163
  %v244 = vpop.f32.mrb[0].mxu0
  %v245 = vadd.f32 %v154, %v244
  %v246 = vpop.f32.mrb[0].mxu0
  %247 = vmatprep.mubr.f32.mxu0 0.0
  %248 = vmatmul.mubr.f32.gmra.mrb[0].mxu0 %v166
  %v249 = vpop.f32.mrb[0].mxu0
  %v250 = vadd.f32 %v154, %v249
  %v251 = vpop.f32.mrb[0].mxu0
  %252 = vdwg.mxu0
  %vm253 = vcmask 162816
  %254 = vst.msk [vmem:[%s5] sm:$0xff] %vm253, %v235
  %255 = vst.msk [vmem:[%s5 + $0x8] sm:$0xff] %vm253, %v240
  %256 = vst.msk [vmem:[%s5 + $0x10] sm:$0xff] %vm253, %v245
  %257 = vst.msk [vmem:[%s5 + $0x18] sm:$0xff] %vm253, %v250
  // Predicated region
  $region22: #{forward.31} parent=0 // pred_check
    _
  $region23: #{forward.31} parent=0 // pred_check_branch
    %259 = sbr.rel (0) target = $region25
  $region24: #{forward.31} parent=0 // pred_region
    _
  $region25: #{forward.31} parent=0 // pred_fallthru
    _
  // Predicated region
  $region26: #{forward.31} parent=0 // pred_check
    _
  $region27: #{forward.31} parent=0 // pred_check_branch
    %261 = sbr.rel (0) target = $region29
  $region28: #{forward.31} parent=0 // pred_region
    _
  $region29: #{forward.31} parent=0 // pred_fallthru
    _

</llo_original>
